<compile_context>
chip_gen: v6e
topology: v6e:2x2x1
jax: 0.10.0
libtpu: 0.0.40
codegen_flags: <defaults>
</compile_context>

<pallas_src>
import functools
import math

import jax
import jax.numpy as jnp
from jax.experimental import pallas as pl
from jax.experimental.pallas import tpu as pltpu


# --------------------------------------------------------------------------- kernel helpers

def _layernorm(x, g, b, eps):
    mu = jnp.mean(x, axis=-1, keepdims=True)
    xc = x - mu
    var = jnp.mean(xc * xc, axis=-1, keepdims=True)
    return xc * jax.lax.rsqrt(var + eps) * g + b


def _gelu(x):
    # TODO(synk): torch.nn.GELU default is erf-based; tanh approximation used for TPU lowering safety.
    return 0.5 * x * (1.0 + jnp.tanh(0.7978845608028654 * (x + 0.044715 * x * x * x)))


# --------------------------------------------------------------------------- fused kernel

def _fused_layer_kernel(
        emb_ref, mask_ref,
        emb_g_ref, emb_b_ref,
        wqkv_ref, bqkv_ref, wo_ref, bo_ref,
        ln1_g_ref, ln1_b_ref,
        w1_ref, b1_ref, w2_ref, b2_ref,
        ln2_g_ref, ln2_b_ref,
        head_w_ref, head_b_ref,
        out_ref,
        x_scratch, ctx_scratch,
        *, n_heads, head_dim, seq_len, bchunk, eps):
    l = pl.program_id(1)
    n_layers = pl.num_programs(1)
    S, D, nh = seq_len, head_dim, n_heads
    H = nh * D
    M = bchunk * S
    scale = 1.0 / math.sqrt(D)

    # ---- l == 0: embedding LayerNorm into the carried activation scratch (dropout = identity).
    @pl.when(l == 0)
    def _():
        x0 = emb_ref[0].astype(jnp.float32)                              # [M, H]
        x_scratch[...] = _layernorm(x0, emb_g_ref[...], emb_b_ref[...], eps)

    x = x_scratch[...]                                                   # [M, H] f32
    bias = mask_ref[0][:, None, :]                                       # [Bc, 1, S] additive mask

    # ---- fused QKV projection: MXU M = Bchunk*S rows, bf16 operands, f32 accumulation.
    qkv = jnp.dot(x.astype(jnp.bfloat16), wqkv_ref[0],
                  preferred_element_type=jnp.float32) + bqkv_ref[0]      # [M, 3H]
    qkv_bf = qkv.astype(jnp.bfloat16)

    # ---- attention: example-batched einsums per head; ctx collected into a bf16 VMEM slab.
    # (head loop is small & bounded; layers are a grid axis, not a Python unroll.)
    for h in range(nh):
        lo = h * D
        q = qkv_bf[:, lo:lo + D].reshape(bchunk, S, D)
        k = qkv_bf[:, H + lo:H + lo + D].reshape(bchunk, S, D)
        v = qkv_bf[:, 2 * H + lo:2 * H + lo + D].reshape(bchunk, S, D)
        s = jnp.einsum('bqd,bkd->bqk', q, k,
                       preferred_element_type=jnp.float32) * scale + bias    # [Bc, S, S]
        m = jnp.max(s, axis=-1, keepdims=True)
        e = jnp.exp(s - m)
        p = e * pl.reciprocal(jnp.sum(e, axis=-1, keepdims=True), approx=True)
        ctx = jnp.einsum('bqk,bkd->bqd', p.astype(jnp.bfloat16), v,
                         preferred_element_type=jnp.float32)                 # [Bc, S, D]
        ctx_scratch[:, lo:lo + D] = ctx.reshape(M, D).astype(jnp.bfloat16)

    # ---- single output projection per layer on the concatenated context slab.
    attn = jnp.dot(ctx_scratch[...], wo_ref[0],
                   preferred_element_type=jnp.float32) + bo_ref[0]
    x1 = _layernorm(x + attn, ln1_g_ref[0], ln1_b_ref[0], eps)

    # ---- FFN
    # TODO(synk): at real intermediate sizes (I=3072) chunk the I dimension to bound the live hdn.
    hdn = _gelu(jnp.dot(x1.astype(jnp.bfloat16), w1_ref[0],
                        preferred_element_type=jnp.float32) + b1_ref[0])     # [M, I]
    ffn = jnp.dot(hdn.astype(jnp.bfloat16), w2_ref[0],
                  preferred_element_type=jnp.float32) + b2_ref[0]            # [M, H]
    x2 = _layernorm(x1 + ffn, ln2_g_ref[0], ln2_b_ref[0], eps)
    x_scratch[...] = x2

    # ---- last layer: classification head (CLS row -> dropout(id) -> out_proj -> sigmoid).
    @pl.when(l == n_layers - 1)
    def _():
        cls = x2.reshape(bchunk, S, H)[:, 0, :]                              # [Bc, H]
        # VPU lane reduction instead of a [1,H]@[H,1] f32 MXU push.
        logit = jnp.sum(cls * head_w_ref[...], axis=-1, keepdims=True) + head_b_ref[...]
        prob = jax.nn.sigmoid(logit)
        lane = jax.lax.broadcasted_iota(jnp.int32, (bchunk, 128), 1)
        # lane 0 = prob, lane 1 = logit, rest padding -> one full-width store per chunk.
        out_ref[0] = jnp.where(lane == 0, prob, jnp.where(lane == 1, logit, 0.0))


# --------------------------------------------------------------------------- wrapper

def model_semantic_forward(params, input_ids, attention_mask, labels=None,
                           n_heads=4, batch_chunk=8):
    """Mirrors ModelSemantic.forward: encoder -> classifier -> sigmoid (+ BCEWithLogits loss)."""
    B, S = input_ids.shape
    H = params["word_emb"].shape[1]
    D = H // n_heads
    L = params["wqkv"].shape[0]
    I = params["w1"].shape[2]

    Bc = batch_chunk
    B_pad = ((B + Bc - 1) // Bc) * Bc
    num_chunks = B_pad // Bc
    M = Bc * S

    # Embedding gathers stay in XLA glue; the summed table lookups enter the kernel as bf16.
    # TODO(synk): HF RoBERTa position ids start at padding_idx+1 and skip pads; plain 0..S-1 here.
    x_emb = (params["word_emb"][input_ids]
             + params["pos_emb"][:S][None, :, :]
             + params["type_emb"][0][None, None, :])
    x_emb = jnp.pad(x_emb, ((0, B_pad - B), (0, 0), (0, 0)))
    x_emb = x_emb.astype(jnp.bfloat16).reshape(num_chunks, M, H)

    # Padded (fake) examples get an all-valid mask so the softmax stays numerically safe.
    amask = jnp.pad(attention_mask.astype(jnp.float32), ((0, B_pad - B), (0, 0)),
                    constant_values=1.0)
    mask_bias = ((1.0 - amask) * -1e9).reshape(num_chunks, Bc, S)

    kernel = functools.partial(
        _fused_layer_kernel, n_heads=n_heads, head_dim=D, seq_len=S, bchunk=Bc, eps=1e-5)

    weight_args = (
        params["emb_ln_g"], params["emb_ln_b"],
        params["wqkv"], params["bqkv"], params["wo"], params["bo"],
        params["ln1_g"], params["ln1_b"],
        params["w1"], params["b1"], params["w2"], params["b2"],
        params["ln2_g"], params["ln2_b"],
        params["head_w"], params["head_b"],
    )

    # Per-layer streamed blocks (index only depends on the layer grid axis) vs. tiny constants.
    def per_layer(a):
        return pl.BlockSpec((1,) + a.shape[1:], lambda c, l: (l, 0, 0))

    def constant(a):
        return pl.BlockSpec(a.shape, lambda c, l, n=a.ndim: (0,) * n)

    in_specs = [
        pl.BlockSpec((1, M, H), lambda c, l: (c, 0, 0)),        # embeddings (per chunk, bf16)
        pl.BlockSpec((1, Bc, S), lambda c, l: (c, 0, 0)),       # additive attention mask
        constant(params["emb_ln_g"]), constant(params["emb_ln_b"]),
        per_layer(params["wqkv"]), per_layer(params["bqkv"]),
        per_layer(params["wo"]), per_layer(params["bo"]),
        per_layer(params["ln1_g"]), per_layer(params["ln1_b"]),
        per_layer(params["w1"]), per_layer(params["b1"]),
        per_layer(params["w2"]), per_layer(params["b2"]),
        per_layer(params["ln2_g"]), per_layer(params["ln2_b"]),
        constant(params["head_w"]), constant(params["head_b"]),
    ]

    # VMEM budget: ~2 layers of streamed weights (double-buffered) + activations + I/O blocks.
    nb = lambda a: a.size * a.dtype.itemsize
    layer_bytes = sum(nb(params[k]) // L for k in
                      ("wqkv", "bqkv", "wo", "bo", "ln1_g", "ln1_b",
                       "w1", "b1", "w2", "b2", "ln2_g", "ln2_b"))
    act_bytes = 4 * M * (9 * H + I) + 4 * Bc * n_heads * S * S
    io_bytes = 2 * (2 * M * H + 4 * Bc * S + 4 * Bc * 128)
    vmem_limit = int(min(64 << 20, max(32 << 20,
                                       2 * layer_bytes + act_bytes + io_bytes + (2 << 20))))

    flops_layer = (2 * M * H * 3 * H                      # QKV projection
                   + 4 * Bc * n_heads * S * S * D         # QK^T + PV
                   + 2 * M * H * H                        # output projection
                   + 4 * M * H * I)                       # FFN
    cost = pl.CostEstimate(
        flops=int(num_chunks * L * flops_layer),
        transcendentals=int(num_chunks * L * (Bc * n_heads * S * S + M * I)),
        bytes_accessed=int(2 * x_emb.size + 4 * mask_bias.size
                           + num_chunks * sum(nb(a) for a in weight_args)
                           + 4 * B_pad * 128))

    out = pl.pallas_call(
        kernel,
        out_shape=jax.ShapeDtypeStruct((num_chunks, Bc, 128), jnp.float32),
        grid=(num_chunks, L),
        in_specs=in_specs,
        out_specs=pl.BlockSpec((1, Bc, 128), lambda c, l: (c, 0, 0)),
        scratch_shapes=[pltpu.VMEM((M, H), jnp.float32),      # carried activations
                        pltpu.VMEM((M, H), jnp.bfloat16)],    # per-layer attention ctx slab
        compiler_params=pltpu.CompilerParams(
            dimension_semantics=("parallel", "arbitrary"),
            vmem_limit_bytes=vmem_limit),
        cost_estimate=cost,
    )(x_emb, mask_bias, *weight_args)

    flat = out.reshape(B_pad, 128)
    prob = flat[:B, 0:1]
    if labels is None:
        return prob
    z = flat[:B, 1:2]                                        # logits
    y = labels.astype(jnp.float32).reshape(B, 1)
    # BCEWithLogitsLoss (mean reduction): max(z,0) - z*y + log(1 + exp(-|z|))
    loss = jnp.mean(jnp.maximum(z, 0.0) - z * y + jnp.log1p(jnp.exp(-jnp.abs(z))))
    return loss, prob


# --------------------------------------------------------------------------- params

def init_params(key, vocab, hidden, n_heads, n_layers, intermediate, max_pos):
    keys = iter(jax.random.split(key, 16))
    nrm = lambda k, shp: 0.02 * jax.random.normal(k, shp, jnp.float32)
    H, I, L = hidden, intermediate, n_layers

    def stacked(k, shape):   # layer-stacked matmul weights stored bf16 for the MXU
        return (0.02 * jax.random.normal(k, (L,) + shape, jnp.float32)).astype(jnp.bfloat16)

    return {
        "word_emb": nrm(next(keys), (vocab, H)),
        "pos_emb": nrm(next(keys), (max_pos, H)),
        "type_emb": nrm(next(keys), (1, H)),
        "emb_ln_g": jnp.ones((1, H), jnp.float32),
        "emb_ln_b": jnp.zeros((1, H), jnp.float32),
        "wqkv": stacked(next(keys), (H, 3 * H)),             # fused QKV weight [L, H, 3H]
        "bqkv": jnp.zeros((L, 1, 3 * H), jnp.float32),
        "wo": stacked(next(keys), (H, H)),
        "bo": jnp.zeros((L, 1, H), jnp.float32),
        "ln1_g": jnp.ones((L, 1, H), jnp.float32),
        "ln1_b": jnp.zeros((L, 1, H), jnp.float32),
        "w1": stacked(next(keys), (H, I)),
        "b1": jnp.zeros((L, 1, I), jnp.float32),
        "w2": stacked(next(keys), (I, H)),
        "b2": jnp.zeros((L, 1, H), jnp.float32),
        "ln2_g": jnp.ones((L, 1, H), jnp.float32),
        "ln2_b": jnp.zeros((L, 1, H), jnp.float32),
        # classifier head out_proj: Linear(hidden, 1) stored as a row vector (VPU reduction)
        "head_w": nrm(next(keys), (1, H)),
        "head_b": jnp.zeros((1, 1), jnp.float32),
    }


# --------------------------------------------------------------------------- main

if __name__ == "__main__":
    B, S, H = 2, 8, 32
    VOCAB, N_HEADS, N_LAYERS, INTER, MAX_POS = 64, 4, 2, 64, 16

    key = jax.random.PRNGKey(0)
    k_param, k_ids = jax.random.split(key)
    params = init_params(k_param, VOCAB, H, N_HEADS, N_LAYERS, INTER, MAX_POS)

    input_ids = jax.random.randint(k_ids, (B, S), 0, VOCAB, dtype=jnp.int32)
    attention_mask = jnp.ones((B, S), jnp.int32).at[1, S - 2:].set(0)   # second example padded
    labels = jnp.array([1.0, 0.0], jnp.float32)

    loss, prob = model_semantic_forward(params, input_ids, attention_mask, labels,
                                        n_heads=N_HEADS)
    prob_only = model_semantic_forward(params, input_ids, attention_mask, None,
                                       n_heads=N_HEADS)

    jax.block_until_ready((loss, prob, prob_only))
    assert prob.shape == (B, 1) and prob_only.shape == (B, 1) and loss.shape == ()
    assert bool(jnp.all(jnp.isfinite(prob))) and bool(jnp.isfinite(loss))
    print("KERNEL_OK")
</pallas_src>

<mosaic_0001>
module attributes {stable_mosaic.version = 11 : i64} {
  func.func @_fused_layer_kernel(%arg0: i32, %arg1: i32, %arg2: memref<1x64x32xbf16, #tpu.memory_space<vmem>>, %arg3: memref<1x8x8xf32, #tpu.memory_space<vmem>>, %arg4: memref<1x32xf32, #tpu.memory_space<vmem>>, %arg5: memref<1x32xf32, #tpu.memory_space<vmem>>, %arg6: memref<1x32x96xbf16, #tpu.memory_space<vmem>>, %arg7: memref<1x1x96xf32, #tpu.memory_space<vmem>>, %arg8: memref<1x32x32xbf16, #tpu.memory_space<vmem>>, %arg9: memref<1x1x32xf32, #tpu.memory_space<vmem>>, %arg10: memref<1x1x32xf32, #tpu.memory_space<vmem>>, %arg11: memref<1x1x32xf32, #tpu.memory_space<vmem>>, %arg12: memref<1x32x64xbf16, #tpu.memory_space<vmem>>, %arg13: memref<1x1x64xf32, #tpu.memory_space<vmem>>, %arg14: memref<1x64x32xbf16, #tpu.memory_space<vmem>>, %arg15: memref<1x1x32xf32, #tpu.memory_space<vmem>>, %arg16: memref<1x1x32xf32, #tpu.memory_space<vmem>>, %arg17: memref<1x1x32xf32, #tpu.memory_space<vmem>>, %arg18: memref<1x32xf32, #tpu.memory_space<vmem>>, %arg19: memref<1x1xf32, #tpu.memory_space<vmem>>, %arg20: memref<1x8x128xf32, #tpu.memory_space<vmem>>, %arg21: memref<64x32xf32, #tpu.memory_space<vmem>>, %arg22: memref<64x32xbf16, #tpu.memory_space<vmem>>) attributes {dimension_semantics = [#tpu.dimension_semantics<parallel>, #tpu.dimension_semantics<arbitrary>], iteration_bounds = array<i64: 1, 2>, scalar_prefetch = 0 : i64, scratch_operands = 2 : i64, tpu.core_type = #tpu.core_type<tc>, window_params = [{transform_indices = @transform_0, window_bounds = array<i64: 1, 64, 32>}, {transform_indices = @transform_1, window_bounds = array<i64: 1, 8, 8>}, {pipeline_mode = #tpu.pipeline_mode<synchronous>, transform_indices = @transform_2, window_bounds = array<i64: 1, 32>}, {pipeline_mode = #tpu.pipeline_mode<synchronous>, transform_indices = @transform_3, window_bounds = array<i64: 1, 32>}, {transform_indices = @transform_4, window_bounds = array<i64: 1, 32, 96>}, {transform_indices = @transform_5, window_bounds = array<i64: 1, 1, 96>}, {transform_indices = @transform_6, window_bounds = array<i64: 1, 32, 32>}, {transform_indices = @transform_7, window_bounds = array<i64: 1, 1, 32>}, {transform_indices = @transform_8, window_bounds = array<i64: 1, 1, 32>}, {transform_indices = @transform_9, window_bounds = array<i64: 1, 1, 32>}, {transform_indices = @transform_10, window_bounds = array<i64: 1, 32, 64>}, {transform_indices = @transform_11, window_bounds = array<i64: 1, 1, 64>}, {transform_indices = @transform_12, window_bounds = array<i64: 1, 64, 32>}, {transform_indices = @transform_13, window_bounds = array<i64: 1, 1, 32>}, {transform_indices = @transform_14, window_bounds = array<i64: 1, 1, 32>}, {transform_indices = @transform_15, window_bounds = array<i64: 1, 1, 32>}, {pipeline_mode = #tpu.pipeline_mode<synchronous>, transform_indices = @transform_16, window_bounds = array<i64: 1, 32>}, {pipeline_mode = #tpu.pipeline_mode<synchronous>, transform_indices = @transform_17, window_bounds = array<i64: 1, 1>}, {transform_indices = @transform_18, window_bounds = array<i64: 1, 8, 128>}]} {
    %c0_i32 = arith.constant 0 : i32
    %0 = arith.cmpi eq, %arg1, %c0_i32 : i32
    %1 = arith.extui %0 : i1 to i32
    %c0_i32_0 = arith.constant 0 : i32
    %2 = arith.cmpi ne, %1, %c0_i32_0 : i32
    scf.if %2 {
      %c0_88 = arith.constant 0 : index
      %c0_89 = arith.constant 0 : index
      %c0_90 = arith.constant 0 : index
      %211 = vector.load %arg2[%c0_88, %c0_89, %c0_90] : memref<1x64x32xbf16, #tpu.memory_space<vmem>>, vector<1x64x32xbf16>
      %212 = vector.shape_cast %211 : vector<1x64x32xbf16> to vector<64x32xbf16>
      %213 = arith.extf %212 : vector<64x32xbf16> to vector<64x32xf32>
      %c0_91 = arith.constant 0 : index
      %c0_92 = arith.constant 0 : index
      %214 = vector.load %arg4[%c0_91, %c0_92] : memref<1x32xf32, #tpu.memory_space<vmem>>, vector<1x32xf32>
      %c0_93 = arith.constant 0 : index
      %c0_94 = arith.constant 0 : index
      %215 = vector.load %arg5[%c0_93, %c0_94] : memref<1x32xf32, #tpu.memory_space<vmem>>, vector<1x32xf32>
      %cst_95 = arith.constant dense<0.000000e+00> : vector<64xf32>
      %216 = vector.multi_reduction <add>, %213, %cst_95 [1] : vector<64x32xf32> to vector<64xf32>
      %217 = vector.shape_cast %216 : vector<64xf32> to vector<64x1xf32>
      %cst_96 = arith.constant 3.200000e+01 : f32
      %218 = vector.broadcast %cst_96 : f32 to vector<64x1xf32>
      %219 = arith.divf %217, %218 : vector<64x1xf32>
      %220 = vector.broadcast %219 : vector<64x1xf32> to vector<64x32xf32>
      %221 = arith.subf %213, %220 : vector<64x32xf32>
      %222 = arith.mulf %221, %221 : vector<64x32xf32>
      %cst_97 = arith.constant dense<0.000000e+00> : vector<64xf32>
      %223 = vector.multi_reduction <add>, %222, %cst_97 [1] : vector<64x32xf32> to vector<64xf32>
      %224 = vector.shape_cast %223 : vector<64xf32> to vector<64x1xf32>
      %cst_98 = arith.constant 3.200000e+01 : f32
      %225 = vector.broadcast %cst_98 : f32 to vector<64x1xf32>
      %226 = arith.divf %224, %225 : vector<64x1xf32>
      %cst_99 = arith.constant 9.99999974E-6 : f32
      %227 = vector.broadcast %cst_99 : f32 to vector<64x1xf32>
      %228 = arith.addf %226, %227 : vector<64x1xf32>
      %229 = math.rsqrt %228 : vector<64x1xf32>
      %230 = vector.broadcast %229 : vector<64x1xf32> to vector<64x32xf32>
      %231 = arith.mulf %221, %230 : vector<64x32xf32>
      %232 = vector.broadcast %214 : vector<1x32xf32> to vector<64x32xf32>
      %233 = arith.mulf %231, %232 : vector<64x32xf32>
      %234 = vector.broadcast %215 : vector<1x32xf32> to vector<64x32xf32>
      %235 = arith.addf %233, %234 : vector<64x32xf32>
      %c0_100 = arith.constant 0 : index
      %c0_101 = arith.constant 0 : index
      %236 = vector.load %arg21[%c0_100, %c0_101] : memref<64x32xf32, #tpu.memory_space<vmem>>, vector<64x32xf32>
      tpu.vector_store %arg21[%c0_100, %c0_101], %235 {strides = array<i32>} : memref<64x32xf32, #tpu.memory_space<vmem>>, vector<64x32xf32>,
    } else {
    }
    %c0 = arith.constant 0 : index
    %c0_1 = arith.constant 0 : index
    %3 = vector.load %arg21[%c0, %c0_1] : memref<64x32xf32, #tpu.memory_space<vmem>>, vector<64x32xf32>
    %c0_2 = arith.constant 0 : index
    %c0_3 = arith.constant 0 : index
    %c0_4 = arith.constant 0 : index
    %4 = vector.load %arg3[%c0_2, %c0_3, %c0_4] : memref<1x8x8xf32, #tpu.memory_space<vmem>>, vector<1x8x8xf32>
    %5 = vector.shape_cast %4 : vector<1x8x8xf32> to vector<8x8xf32>
    %6 = vector.shape_cast %5 : vector<8x8xf32> to vector<8x1x8xf32>
    %7 = arith.truncf %3 : vector<64x32xf32> to vector<64x32xbf16>
    %c0_5 = arith.constant 0 : index
    %c0_6 = arith.constant 0 : index
    %c0_7 = arith.constant 0 : index
    %8 = vector.load %arg6[%c0_5, %c0_6, %c0_7] : memref<1x32x96xbf16, #tpu.memory_space<vmem>>, vector<1x32x96xbf16>
    %9 = vector.shape_cast %8 : vector<1x32x96xbf16> to vector<32x96xbf16>
    %cst = arith.constant dense<0.000000e+00> : vector<64x96xf32>
    %10 = tpu.matmul %7, %9, %cst {dimension_numbers = #tpu.dot_dimension_numbers<[1], [0], [0], [1], [0, 0, 1, 1], [], []>} : vector<64x32xbf16>, vector<32x96xbf16>, vector<64x96xf32> -> vector<64x96xf32>
    %c0_8 = arith.constant 0 : index
    %c0_9 = arith.constant 0 : index
    %c0_10 = arith.constant 0 : index
    %11 = vector.load %arg7[%c0_8, %c0_9, %c0_10] : memref<1x1x96xf32, #tpu.memory_space<vmem>>, vector<1x1x96xf32>
    %12 = vector.shape_cast %11 : vector<1x1x96xf32> to vector<1x96xf32>
    %13 = vector.broadcast %12 : vector<1x96xf32> to vector<64x96xf32>
    %14 = arith.addf %10, %13 : vector<64x96xf32>
    %15 = arith.truncf %14 : vector<64x96xf32> to vector<64x96xbf16>
    %16 = vector.extract_strided_slice %15 {offsets = [0, 0], sizes = [64, 8], strides = [1, 1]} : vector<64x96xbf16> to vector<64x8xbf16>
    %17 = vector.shape_cast %16 : vector<64x8xbf16> to vector<8x8x8xbf16>
    %18 = vector.extract_strided_slice %15 {offsets = [0, 32], sizes = [64, 8], strides = [1, 1]} : vector<64x96xbf16> to vector<64x8xbf16>
    %19 = vector.shape_cast %18 : vector<64x8xbf16> to vector<8x8x8xbf16>
    %20 = vector.extract_strided_slice %15 {offsets = [0, 64], sizes = [64, 8], strides = [1, 1]} : vector<64x96xbf16> to vector<64x8xbf16>
    %21 = vector.shape_cast %20 : vector<64x8xbf16> to vector<8x8x8xbf16>
    "tpu.trace_start"() <{level = 10 : i32, message = "bqd,bkd->bqk"}> : () -> ()
    %cst_11 = arith.constant dense<0.000000e+00> : vector<8x8x8xf32>
    %22 = tpu.matmul %17, %19, %cst_11 {dimension_numbers = #tpu.dot_dimension_numbers<[2], [2], [1], [1], [0, 0, 0, 1, 1, 1], [0], [0]>} : vector<8x8x8xbf16>, vector<8x8x8xbf16>, vector<8x8x8xf32> -> vector<8x8x8xf32>
    "tpu.trace_stop"() : () -> ()
    %cst_12 = arith.constant 0.353553385 : f32
    %23 = vector.broadcast %cst_12 : f32 to vector<8x8x8xf32>
    %24 = arith.mulf %22, %23 : vector<8x8x8xf32>
    %25 = vector.broadcast %6 : vector<8x1x8xf32> to vector<8x8x8xf32>
    %26 = arith.addf %24, %25 : vector<8x8x8xf32>
    %cst_13 = arith.constant dense<0xFF800000> : vector<8x8xf32>
    %27 = vector.multi_reduction <maximumf>, %26, %cst_13 [2] : vector<8x8x8xf32> to vector<8x8xf32>
    %28 = vector.shape_cast %27 : vector<8x8xf32> to vector<8x8x1xf32>
    %29 = vector.broadcast %28 : vector<8x8x1xf32> to vector<8x8x8xf32>
    %30 = arith.subf %26, %29 : vector<8x8x8xf32>
    %31 = math.exp %30 : vector<8x8x8xf32>
    %cst_14 = arith.constant dense<0.000000e+00> : vector<8x8xf32>
    %32 = vector.multi_reduction <add>, %31, %cst_14 [2] : vector<8x8x8xf32> to vector<8x8xf32>
    %33 = vector.shape_cast %32 : vector<8x8xf32> to vector<8x8x1xf32>
    %34 = tpu.reciprocal %33 {approx = true} : vector<8x8x1xf32> -> vector<8x8x1xf32>
    %35 = vector.broadcast %34 : vector<8x8x1xf32> to vector<8x8x8xf32>
    %36 = arith.mulf %31, %35 : vector<8x8x8xf32>
    %37 = arith.truncf %36 : vector<8x8x8xf32> to vector<8x8x8xbf16>
    "tpu.trace_start"() <{level = 10 : i32, message = "bqk,bkd->bqd"}> : () -> ()
    %cst_15 = arith.constant dense<0.000000e+00> : vector<8x8x8xf32>
    %38 = tpu.matmul %37, %21, %cst_15 {dimension_numbers = #tpu.dot_dimension_numbers<[2], [1], [1], [2], [0, 0, 0, 1, 1, 2], [0], [0]>} : vector<8x8x8xbf16>, vector<8x8x8xbf16>, vector<8x8x8xf32> -> vector<8x8x8xf32>
    "tpu.trace_stop"() : () -> ()
    %39 = vector.shape_cast %38 : vector<8x8x8xf32> to vector<64x8xf32>
    %40 = arith.truncf %39 : vector<64x8xf32> to vector<64x8xbf16>
    %c0_16 = arith.constant 0 : index
    %c0_17 = arith.constant 0 : index
    %41 = vector.load %arg22[%c0_16, %c0_17] : memref<64x32xbf16, #tpu.memory_space<vmem>>, vector<64x8xbf16>
    tpu.vector_store %arg22[%c0_16, %c0_17], %40 {strides = array<i32>} : memref<64x32xbf16, #tpu.memory_space<vmem>>, vector<64x8xbf16>,
    %42 = vector.extract_strided_slice %15 {offsets = [0, 8], sizes = [64, 8], strides = [1, 1]} : vector<64x96xbf16> to vector<64x8xbf16>
    %43 = vector.shape_cast %42 : vector<64x8xbf16> to vector<8x8x8xbf16>
    %44 = vector.extract_strided_slice %15 {offsets = [0, 40], sizes = [64, 8], strides = [1, 1]} : vector<64x96xbf16> to vector<64x8xbf16>
    %45 = vector.shape_cast %44 : vector<64x8xbf16> to vector<8x8x8xbf16>
    %46 = vector.extract_strided_slice %15 {offsets = [0, 72], sizes = [64, 8], strides = [1, 1]} : vector<64x96xbf16> to vector<64x8xbf16>
    %47 = vector.shape_cast %46 : vector<64x8xbf16> to vector<8x8x8xbf16>
    "tpu.trace_start"() <{level = 10 : i32, message = "bqd,bkd->bqk"}> : () -> ()
    %cst_18 = arith.constant dense<0.000000e+00> : vector<8x8x8xf32>
    %48 = tpu.matmul %43, %45, %cst_18 {dimension_numbers = #tpu.dot_dimension_numbers<[2], [2], [1], [1], [0, 0, 0, 1, 1, 1], [0], [0]>} : vector<8x8x8xbf16>, vector<8x8x8xbf16>, vector<8x8x8xf32> -> vector<8x8x8xf32>
    "tpu.trace_stop"() : () -> ()
    %cst_19 = arith.constant 0.353553385 : f32
    %49 = vector.broadcast %cst_19 : f32 to vector<8x8x8xf32>
    %50 = arith.mulf %48, %49 : vector<8x8x8xf32>
    %51 = vector.broadcast %6 : vector<8x1x8xf32> to vector<8x8x8xf32>
    %52 = arith.addf %50, %51 : vector<8x8x8xf32>
    %cst_20 = arith.constant dense<0xFF800000> : vector<8x8xf32>
    %53 = vector.multi_reduction <maximumf>, %52, %cst_20 [2] : vector<8x8x8xf32> to vector<8x8xf32>
    %54 = vector.shape_cast %53 : vector<8x8xf32> to vector<8x8x1xf32>
    %55 = vector.broadcast %54 : vector<8x8x1xf32> to vector<8x8x8xf32>
    %56 = arith.subf %52, %55 : vector<8x8x8xf32>
    %57 = math.exp %56 : vector<8x8x8xf32>
    %cst_21 = arith.constant dense<0.000000e+00> : vector<8x8xf32>
    %58 = vector.multi_reduction <add>, %57, %cst_21 [2] : vector<8x8x8xf32> to vector<8x8xf32>
    %59 = vector.shape_cast %58 : vector<8x8xf32> to vector<8x8x1xf32>
    %60 = tpu.reciprocal %59 {approx = true} : vector<8x8x1xf32> -> vector<8x8x1xf32>
    %61 = vector.broadcast %60 : vector<8x8x1xf32> to vector<8x8x8xf32>
    %62 = arith.mulf %57, %61 : vector<8x8x8xf32>
    %63 = arith.truncf %62 : vector<8x8x8xf32> to vector<8x8x8xbf16>
    "tpu.trace_start"() <{level = 10 : i32, message = "bqk,bkd->bqd"}> : () -> ()
    %cst_22 = arith.constant dense<0.000000e+00> : vector<8x8x8xf32>
    %64 = tpu.matmul %63, %47, %cst_22 {dimension_numbers = #tpu.dot_dimension_numbers<[2], [1], [1], [2], [0, 0, 0, 1, 1, 2], [0], [0]>} : vector<8x8x8xbf16>, vector<8x8x8xbf16>, vector<8x8x8xf32> -> vector<8x8x8xf32>
    "tpu.trace_stop"() : () -> ()
    %65 = vector.shape_cast %64 : vector<8x8x8xf32> to vector<64x8xf32>
    %66 = arith.truncf %65 : vector<64x8xf32> to vector<64x8xbf16>
    %c0_23 = arith.constant 0 : index
    %c8 = arith.constant 8 : index
    %67 = vector.load %arg22[%c0_23, %c8] : memref<64x32xbf16, #tpu.memory_space<vmem>>, vector<64x8xbf16>
    tpu.vector_store %arg22[%c0_23, %c8], %66 {strides = array<i32>} : memref<64x32xbf16, #tpu.memory_space<vmem>>, vector<64x8xbf16>,
    %68 = vector.extract_strided_slice %15 {offsets = [0, 16], sizes = [64, 8], strides = [1, 1]} : vector<64x96xbf16> to vector<64x8xbf16>
    %69 = vector.shape_cast %68 : vector<64x8xbf16> to vector<8x8x8xbf16>
    %70 = vector.extract_strided_slice %15 {offsets = [0, 48], sizes = [64, 8], strides = [1, 1]} : vector<64x96xbf16> to vector<64x8xbf16>
    %71 = vector.shape_cast %70 : vector<64x8xbf16> to vector<8x8x8xbf16>
    %72 = vector.extract_strided_slice %15 {offsets = [0, 80], sizes = [64, 8], strides = [1, 1]} : vector<64x96xbf16> to vector<64x8xbf16>
    %73 = vector.shape_cast %72 : vector<64x8xbf16> to vector<8x8x8xbf16>
    "tpu.trace_start"() <{level = 10 : i32, message = "bqd,bkd->bqk"}> : () -> ()
    %cst_24 = arith.constant dense<0.000000e+00> : vector<8x8x8xf32>
    %74 = tpu.matmul %69, %71, %cst_24 {dimension_numbers = #tpu.dot_dimension_numbers<[2], [2], [1], [1], [0, 0, 0, 1, 1, 1], [0], [0]>} : vector<8x8x8xbf16>, vector<8x8x8xbf16>, vector<8x8x8xf32> -> vector<8x8x8xf32>
    "tpu.trace_stop"() : () -> ()
    %cst_25 = arith.constant 0.353553385 : f32
    %75 = vector.broadcast %cst_25 : f32 to vector<8x8x8xf32>
    %76 = arith.mulf %74, %75 : vector<8x8x8xf32>
    %77 = vector.broadcast %6 : vector<8x1x8xf32> to vector<8x8x8xf32>
    %78 = arith.addf %76, %77 : vector<8x8x8xf32>
    %cst_26 = arith.constant dense<0xFF800000> : vector<8x8xf32>
    %79 = vector.multi_reduction <maximumf>, %78, %cst_26 [2] : vector<8x8x8xf32> to vector<8x8xf32>
    %80 = vector.shape_cast %79 : vector<8x8xf32> to vector<8x8x1xf32>
    %81 = vector.broadcast %80 : vector<8x8x1xf32> to vector<8x8x8xf32>
    %82 = arith.subf %78, %81 : vector<8x8x8xf32>
    %83 = math.exp %82 : vector<8x8x8xf32>
    %cst_27 = arith.constant dense<0.000000e+00> : vector<8x8xf32>
    %84 = vector.multi_reduction <add>, %83, %cst_27 [2] : vector<8x8x8xf32> to vector<8x8xf32>
    %85 = vector.shape_cast %84 : vector<8x8xf32> to vector<8x8x1xf32>
    %86 = tpu.reciprocal %85 {approx = true} : vector<8x8x1xf32> -> vector<8x8x1xf32>
    %87 = vector.broadcast %86 : vector<8x8x1xf32> to vector<8x8x8xf32>
    %88 = arith.mulf %83, %87 : vector<8x8x8xf32>
    %89 = arith.truncf %88 : vector<8x8x8xf32> to vector<8x8x8xbf16>
    "tpu.trace_start"() <{level = 10 : i32, message = "bqk,bkd->bqd"}> : () -> ()
    %cst_28 = arith.constant dense<0.000000e+00> : vector<8x8x8xf32>
    %90 = tpu.matmul %89, %73, %cst_28 {dimension_numbers = #tpu.dot_dimension_numbers<[2], [1], [1], [2], [0, 0, 0, 1, 1, 2], [0], [0]>} : vector<8x8x8xbf16>, vector<8x8x8xbf16>, vector<8x8x8xf32> -> vector<8x8x8xf32>
    "tpu.trace_stop"() : () -> ()
    %91 = vector.shape_cast %90 : vector<8x8x8xf32> to vector<64x8xf32>
    %92 = arith.truncf %91 : vector<64x8xf32> to vector<64x8xbf16>
    %c0_29 = arith.constant 0 : index
    %c16 = arith.constant 16 : index
    %93 = vector.load %arg22[%c0_29, %c16] : memref<64x32xbf16, #tpu.memory_space<vmem>>, vector<64x8xbf16>
    tpu.vector_store %arg22[%c0_29, %c16], %92 {strides = array<i32>} : memref<64x32xbf16, #tpu.memory_space<vmem>>, vector<64x8xbf16>,
    %94 = vector.extract_strided_slice %15 {offsets = [0, 24], sizes = [64, 8], strides = [1, 1]} : vector<64x96xbf16> to vector<64x8xbf16>
    %95 = vector.shape_cast %94 : vector<64x8xbf16> to vector<8x8x8xbf16>
    %96 = vector.extract_strided_slice %15 {offsets = [0, 56], sizes = [64, 8], strides = [1, 1]} : vector<64x96xbf16> to vector<64x8xbf16>
    %97 = vector.shape_cast %96 : vector<64x8xbf16> to vector<8x8x8xbf16>
    %98 = vector.extract_strided_slice %15 {offsets = [0, 88], sizes = [64, 8], strides = [1, 1]} : vector<64x96xbf16> to vector<64x8xbf16>
    %99 = vector.shape_cast %98 : vector<64x8xbf16> to vector<8x8x8xbf16>
    "tpu.trace_start"() <{level = 10 : i32, message = "bqd,bkd->bqk"}> : () -> ()
    %cst_30 = arith.constant dense<0.000000e+00> : vector<8x8x8xf32>
    %100 = tpu.matmul %95, %97, %cst_30 {dimension_numbers = #tpu.dot_dimension_numbers<[2], [2], [1], [1], [0, 0, 0, 1, 1, 1], [0], [0]>} : vector<8x8x8xbf16>, vector<8x8x8xbf16>, vector<8x8x8xf32> -> vector<8x8x8xf32>
    "tpu.trace_stop"() : () -> ()
    %cst_31 = arith.constant 0.353553385 : f32
    %101 = vector.broadcast %cst_31 : f32 to vector<8x8x8xf32>
    %102 = arith.mulf %100, %101 : vector<8x8x8xf32>
    %103 = vector.broadcast %6 : vector<8x1x8xf32> to vector<8x8x8xf32>
    %104 = arith.addf %102, %103 : vector<8x8x8xf32>
    %cst_32 = arith.constant dense<0xFF800000> : vector<8x8xf32>
    %105 = vector.multi_reduction <maximumf>, %104, %cst_32 [2] : vector<8x8x8xf32> to vector<8x8xf32>
    %106 = vector.shape_cast %105 : vector<8x8xf32> to vector<8x8x1xf32>
    %107 = vector.broadcast %106 : vector<8x8x1xf32> to vector<8x8x8xf32>
    %108 = arith.subf %104, %107 : vector<8x8x8xf32>
    %109 = math.exp %108 : vector<8x8x8xf32>
    %cst_33 = arith.constant dense<0.000000e+00> : vector<8x8xf32>
    %110 = vector.multi_reduction <add>, %109, %cst_33 [2] : vector<8x8x8xf32> to vector<8x8xf32>
    %111 = vector.shape_cast %110 : vector<8x8xf32> to vector<8x8x1xf32>
    %112 = tpu.reciprocal %111 {approx = true} : vector<8x8x1xf32> -> vector<8x8x1xf32>
    %113 = vector.broadcast %112 : vector<8x8x1xf32> to vector<8x8x8xf32>
    %114 = arith.mulf %109, %113 : vector<8x8x8xf32>
    %115 = arith.truncf %114 : vector<8x8x8xf32> to vector<8x8x8xbf16>
    "tpu.trace_start"() <{level = 10 : i32, message = "bqk,bkd->bqd"}> : () -> ()
    %cst_34 = arith.constant dense<0.000000e+00> : vector<8x8x8xf32>
    %116 = tpu.matmul %115, %99, %cst_34 {dimension_numbers = #tpu.dot_dimension_numbers<[2], [1], [1], [2], [0, 0, 0, 1, 1, 2], [0], [0]>} : vector<8x8x8xbf16>, vector<8x8x8xbf16>, vector<8x8x8xf32> -> vector<8x8x8xf32>
    "tpu.trace_stop"() : () -> ()
    %117 = vector.shape_cast %116 : vector<8x8x8xf32> to vector<64x8xf32>
    %118 = arith.truncf %117 : vector<64x8xf32> to vector<64x8xbf16>
    %c0_35 = arith.constant 0 : index
    %c24 = arith.constant 24 : index
    %119 = vector.load %arg22[%c0_35, %c24] : memref<64x32xbf16, #tpu.memory_space<vmem>>, vector<64x8xbf16>
    tpu.vector_store %arg22[%c0_35, %c24], %118 {strides = array<i32>} : memref<64x32xbf16, #tpu.memory_space<vmem>>, vector<64x8xbf16>,
    %c0_36 = arith.constant 0 : index
    %c0_37 = arith.constant 0 : index
    %120 = vector.load %arg22[%c0_36, %c0_37] : memref<64x32xbf16, #tpu.memory_space<vmem>>, vector<64x32xbf16>
    %c0_38 = arith.constant 0 : index
    %c0_39 = arith.constant 0 : index
    %c0_40 = arith.constant 0 : index
    %121 = vector.load %arg8[%c0_38, %c0_39, %c0_40] : memref<1x32x32xbf16, #tpu.memory_space<vmem>>, vector<1x32x32xbf16>
    %122 = vector.shape_cast %121 : vector<1x32x32xbf16> to vector<32x32xbf16>
    %cst_41 = arith.constant dense<0.000000e+00> : vector<64x32xf32>
    %123 = tpu.matmul %120, %122, %cst_41 {dimension_numbers = #tpu.dot_dimension_numbers<[1], [0], [0], [1], [0, 0, 1, 1], [], []>} : vector<64x32xbf16>, vector<32x32xbf16>, vector<64x32xf32> -> vector<64x32xf32>
    %c0_42 = arith.constant 0 : index
    %c0_43 = arith.constant 0 : index
    %c0_44 = arith.constant 0 : index
    %124 = vector.load %arg9[%c0_42, %c0_43, %c0_44] : memref<1x1x32xf32, #tpu.memory_space<vmem>>, vector<1x1x32xf32>
    %125 = vector.shape_cast %124 : vector<1x1x32xf32> to vector<1x32xf32>
    %126 = vector.broadcast %125 : vector<1x32xf32> to vector<64x32xf32>
    %127 = arith.addf %123, %126 : vector<64x32xf32>
    %128 = arith.addf %3, %127 : vector<64x32xf32>
    %c0_45 = arith.constant 0 : index
    %c0_46 = arith.constant 0 : index
    %c0_47 = arith.constant 0 : index
    %129 = vector.load %arg10[%c0_45, %c0_46, %c0_47] : memref<1x1x32xf32, #tpu.memory_space<vmem>>, vector<1x1x32xf32>
    %130 = vector.shape_cast %129 : vector<1x1x32xf32> to vector<1x32xf32>
    %c0_48 = arith.constant 0 : index
    %c0_49 = arith.constant 0 : index
    %c0_50 = arith.constant 0 : index
    %131 = vector.load %arg11[%c0_48, %c0_49, %c0_50] : memref<1x1x32xf32, #tpu.memory_space<vmem>>, vector<1x1x32xf32>
    %132 = vector.shape_cast %131 : vector<1x1x32xf32> to vector<1x32xf32>
    %cst_51 = arith.constant dense<0.000000e+00> : vector<64xf32>
    %133 = vector.multi_reduction <add>, %128, %cst_51 [1] : vector<64x32xf32> to vector<64xf32>
    %134 = vector.shape_cast %133 : vector<64xf32> to vector<64x1xf32>
    %cst_52 = arith.constant 3.200000e+01 : f32
    %135 = vector.broadcast %cst_52 : f32 to vector<64x1xf32>
    %136 = arith.divf %134, %135 : vector<64x1xf32>
    %137 = vector.broadcast %136 : vector<64x1xf32> to vector<64x32xf32>
    %138 = arith.subf %128, %137 : vector<64x32xf32>
    %139 = arith.mulf %138, %138 : vector<64x32xf32>
    %cst_53 = arith.constant dense<0.000000e+00> : vector<64xf32>
    %140 = vector.multi_reduction <add>, %139, %cst_53 [1] : vector<64x32xf32> to vector<64xf32>
    %141 = vector.shape_cast %140 : vector<64xf32> to vector<64x1xf32>
    %cst_54 = arith.constant 3.200000e+01 : f32
    %142 = vector.broadcast %cst_54 : f32 to vector<64x1xf32>
    %143 = arith.divf %141, %142 : vector<64x1xf32>
    %cst_55 = arith.constant 9.99999974E-6 : f32
    %144 = vector.broadcast %cst_55 : f32 to vector<64x1xf32>
    %145 = arith.addf %143, %144 : vector<64x1xf32>
    %146 = math.rsqrt %145 : vector<64x1xf32>
    %147 = vector.broadcast %146 : vector<64x1xf32> to vector<64x32xf32>
    %148 = arith.mulf %138, %147 : vector<64x32xf32>
    %149 = vector.broadcast %130 : vector<1x32xf32> to vector<64x32xf32>
    %150 = arith.mulf %148, %149 : vector<64x32xf32>
    %151 = vector.broadcast %132 : vector<1x32xf32> to vector<64x32xf32>
    %152 = arith.addf %150, %151 : vector<64x32xf32>
    %153 = arith.truncf %152 : vector<64x32xf32> to vector<64x32xbf16>
    %c0_56 = arith.constant 0 : index
    %c0_57 = arith.constant 0 : index
    %c0_58 = arith.constant 0 : index
    %154 = vector.load %arg12[%c0_56, %c0_57, %c0_58] : memref<1x32x64xbf16, #tpu.memory_space<vmem>>, vector<1x32x64xbf16>
    %155 = vector.shape_cast %154 : vector<1x32x64xbf16> to vector<32x64xbf16>
    %cst_59 = arith.constant dense<0.000000e+00> : vector<64x64xf32>
    %156 = tpu.matmul %153, %155, %cst_59 {dimension_numbers = #tpu.dot_dimension_numbers<[1], [0], [0], [1], [0, 0, 1, 1], [], []>} : vector<64x32xbf16>, vector<32x64xbf16>, vector<64x64xf32> -> vector<64x64xf32>
    %c0_60 = arith.constant 0 : index
    %c0_61 = arith.constant 0 : index
    %c0_62 = arith.constant 0 : index
    %157 = vector.load %arg13[%c0_60, %c0_61, %c0_62] : memref<1x1x64xf32, #tpu.memory_space<vmem>>, vector<1x1x64xf32>
    %158 = vector.shape_cast %157 : vector<1x1x64xf32> to vector<1x64xf32>
    %159 = vector.broadcast %158 : vector<1x64xf32> to vector<64x64xf32>
    %160 = arith.addf %156, %159 : vector<64x64xf32>
    %cst_63 = arith.constant 5.000000e-01 : f32
    %161 = vector.broadcast %cst_63 : f32 to vector<64x64xf32>
    %162 = arith.mulf %161, %160 : vector<64x64xf32>
    %cst_64 = arith.constant 4.471500e-02 : f32
    %163 = vector.broadcast %cst_64 : f32 to vector<64x64xf32>
    %164 = arith.mulf %163, %160 : vector<64x64xf32>
    %165 = arith.mulf %164, %160 : vector<64x64xf32>
    %166 = arith.mulf %165, %160 : vector<64x64xf32>
    %167 = arith.addf %160, %166 : vector<64x64xf32>
    %cst_65 = arith.constant 0.797884583 : f32
    %168 = vector.broadcast %cst_65 : f32 to vector<64x64xf32>
    %169 = arith.mulf %168, %167 : vector<64x64xf32>
    %170 = math.tanh %169 : vector<64x64xf32>
    %cst_66 = arith.constant 1.000000e+00 : f32
    %171 = vector.broadcast %cst_66 : f32 to vector<64x64xf32>
    %172 = arith.addf %171, %170 : vector<64x64xf32>
    %173 = arith.mulf %162, %172 : vector<64x64xf32>
    %174 = arith.truncf %173 : vector<64x64xf32> to vector<64x64xbf16>
    %c0_67 = arith.constant 0 : index
    %c0_68 = arith.constant 0 : index
    %c0_69 = arith.constant 0 : index
    %175 = vector.load %arg14[%c0_67, %c0_68, %c0_69] : memref<1x64x32xbf16, #tpu.memory_space<vmem>>, vector<1x64x32xbf16>
    %176 = vector.shape_cast %175 : vector<1x64x32xbf16> to vector<64x32xbf16>
    %cst_70 = arith.constant dense<0.000000e+00> : vector<64x32xf32>
    %177 = tpu.matmul %174, %176, %cst_70 {dimension_numbers = #tpu.dot_dimension_numbers<[1], [0], [0], [1], [0, 0, 1, 1], [], []>} : vector<64x64xbf16>, vector<64x32xbf16>, vector<64x32xf32> -> vector<64x32xf32>
    %c0_71 = arith.constant 0 : index
    %c0_72 = arith.constant 0 : index
    %c0_73 = arith.constant 0 : index
    %178 = vector.load %arg15[%c0_71, %c0_72, %c0_73] : memref<1x1x32xf32, #tpu.memory_space<vmem>>, vector<1x1x32xf32>
    %179 = vector.shape_cast %178 : vector<1x1x32xf32> to vector<1x32xf32>
    %180 = vector.broadcast %179 : vector<1x32xf32> to vector<64x32xf32>
    %181 = arith.addf %177, %180 : vector<64x32xf32>
    %182 = arith.addf %152, %181 : vector<64x32xf32>
    %c0_74 = arith.constant 0 : index
    %c0_75 = arith.constant 0 : index
    %c0_76 = arith.constant 0 : index
    %183 = vector.load %arg16[%c0_74, %c0_75, %c0_76] : memref<1x1x32xf32, #tpu.memory_space<vmem>>, vector<1x1x32xf32>
    %184 = vector.shape_cast %183 : vector<1x1x32xf32> to vector<1x32xf32>
    %c0_77 = arith.constant 0 : index
    %c0_78 = arith.constant 0 : index
    %c0_79 = arith.constant 0 : index
    %185 = vector.load %arg17[%c0_77, %c0_78, %c0_79] : memref<1x1x32xf32, #tpu.memory_space<vmem>>, vector<1x1x32xf32>
    %186 = vector.shape_cast %185 : vector<1x1x32xf32> to vector<1x32xf32>
    %cst_80 = arith.constant dense<0.000000e+00> : vector<64xf32>
    %187 = vector.multi_reduction <add>, %182, %cst_80 [1] : vector<64x32xf32> to vector<64xf32>
    %188 = vector.shape_cast %187 : vector<64xf32> to vector<64x1xf32>
    %cst_81 = arith.constant 3.200000e+01 : f32
    %189 = vector.broadcast %cst_81 : f32 to vector<64x1xf32>
    %190 = arith.divf %188, %189 : vector<64x1xf32>
    %191 = vector.broadcast %190 : vector<64x1xf32> to vector<64x32xf32>
    %192 = arith.subf %182, %191 : vector<64x32xf32>
    %193 = arith.mulf %192, %192 : vector<64x32xf32>
    %cst_82 = arith.constant dense<0.000000e+00> : vector<64xf32>
    %194 = vector.multi_reduction <add>, %193, %cst_82 [1] : vector<64x32xf32> to vector<64xf32>
    %195 = vector.shape_cast %194 : vector<64xf32> to vector<64x1xf32>
    %cst_83 = arith.constant 3.200000e+01 : f32
    %196 = vector.broadcast %cst_83 : f32 to vector<64x1xf32>
    %197 = arith.divf %195, %196 : vector<64x1xf32>
    %cst_84 = arith.constant 9.99999974E-6 : f32
    %198 = vector.broadcast %cst_84 : f32 to vector<64x1xf32>
    %199 = arith.addf %197, %198 : vector<64x1xf32>
    %200 = math.rsqrt %199 : vector<64x1xf32>
    %201 = vector.broadcast %200 : vector<64x1xf32> to vector<64x32xf32>
    %202 = arith.mulf %192, %201 : vector<64x32xf32>
    %203 = vector.broadcast %184 : vector<1x32xf32> to vector<64x32xf32>
    %204 = arith.mulf %202, %203 : vector<64x32xf32>
    %205 = vector.broadcast %186 : vector<1x32xf32> to vector<64x32xf32>
    %206 = arith.addf %204, %205 : vector<64x32xf32>
    %c0_85 = arith.constant 0 : index
    %c0_86 = arith.constant 0 : index
    %207 = vector.load %arg21[%c0_85, %c0_86] : memref<64x32xf32, #tpu.memory_space<vmem>>, vector<64x32xf32>
    tpu.vector_store %arg21[%c0_85, %c0_86], %206 {strides = array<i32>} : memref<64x32xf32, #tpu.memory_space<vmem>>, vector<64x32xf32>,
    %c1_i32 = arith.constant 1 : i32
    %208 = arith.cmpi eq, %arg1, %c1_i32 : i32
    %209 = arith.extui %208 : i1 to i32
    %c0_i32_87 = arith.constant 0 : i32
    %210 = arith.cmpi ne, %209, %c0_i32_87 : i32
    scf.if %210 {
      %211 = vector.shape_cast %206 : vector<64x32xf32> to vector<8x8x32xf32>
      %212 = vector.extract_strided_slice %211 {offsets = [0, 0, 0], sizes = [8, 1, 32], strides = [1, 1, 1]} : vector<8x8x32xf32> to vector<8x1x32xf32>
      %213 = vector.shape_cast %212 : vector<8x1x32xf32> to vector<8x32xf32>
      %c0_88 = arith.constant 0 : index
      %c0_89 = arith.constant 0 : index
      %214 = vector.load %arg18[%c0_88, %c0_89] : memref<1x32xf32, #tpu.memory_space<vmem>>, vector<1x32xf32>
      %215 = vector.broadcast %214 : vector<1x32xf32> to vector<8x32xf32>
      %216 = arith.mulf %213, %215 : vector<8x32xf32>
      %cst_90 = arith.constant dense<0.000000e+00> : vector<8xf32>
      %217 = vector.multi_reduction <add>, %216, %cst_90 [1] : vector<8x32xf32> to vector<8xf32>
      %218 = vector.shape_cast %217 : vector<8xf32> to vector<8x1xf32>
      %c0_91 = arith.constant 0 : index
      %c0_92 = arith.constant 0 : index
      %219 = vector.load %arg19[%c0_91, %c0_92] : memref<1x1xf32, #tpu.memory_space<vmem>>, vector<1x1xf32>
      %220 = vector.broadcast %219 : vector<1x1xf32> to vector<8x1xf32>
      %221 = arith.addf %218, %220 : vector<8x1xf32>
      %222 = arith.negf %221 : vector<8x1xf32>
      %223 = math.exp %222 : vector<8x1xf32>
      %cst_93 = arith.constant 1.000000e+00 : f32
      %224 = vector.broadcast %cst_93 : f32 to vector<8x1xf32>
      %225 = arith.addf %224, %223 : vector<8x1xf32>
      %226 = arith.divf %224, %225 : vector<8x1xf32>
      %227 = tpu.iota {dimensions = array<i32: 1>} : vector<8x128xi32>
      %c0_i32_94 = arith.constant 0 : i32
      %228 = vector.broadcast %c0_i32_94 : i32 to vector<8x128xi32>
      %229 = arith.cmpi eq, %227, %228 : vector<8x128xi32>
      %c1_i32_95 = arith.constant 1 : i32
      %230 = vector.broadcast %c1_i32_95 : i32 to vector<8x128xi32>
      %231 = arith.cmpi eq, %227, %230 : vector<8x128xi32>
      %cst_96 = arith.constant 0.000000e+00 : f32
      %232 = vector.shape_cast %221 : vector<8x1xf32> to vector<8x1xf32>
      %233 = vector.broadcast %232 : vector<8x1xf32> to vector<8x128xf32>
      %234 = vector.broadcast %cst_96 : f32 to vector<8x128xf32>
      %235 = arith.select %231, %233, %234 : vector<8x128xi1>, vector<8x128xf32>
      %236 = vector.shape_cast %226 : vector<8x1xf32> to vector<8x1xf32>
      %237 = vector.broadcast %236 : vector<8x1xf32> to vector<8x128xf32>
      %238 = arith.select %229, %237, %235 : vector<8x128xi1>, vector<8x128xf32>
      %c0_97 = arith.constant 0 : index
      %c0_98 = arith.constant 0 : index
      %c0_99 = arith.constant 0 : index
      %239 = vector.load %arg20[%c0_97, %c0_98, %c0_99] : memref<1x8x128xf32, #tpu.memory_space<vmem>>, vector<1x8x128xf32>
      %240 = vector.shape_cast %239 : vector<1x8x128xf32> to vector<8x128xf32>
      %241 = vector.shape_cast %238 : vector<8x128xf32> to vector<1x8x128xf32>
      tpu.vector_store %arg20[%c0_97, %c0_98, %c0_99], %241 {strides = array<i32>} : memref<1x8x128xf32, #tpu.memory_space<vmem>>, vector<1x8x128xf32>,
    } else {
    }
    return
  }
  func.func @transform_0(%arg0: i32, %arg1: i32) -> (i32, i32, i32) {
    %c0_i32 = arith.constant 0 : i32
    %c0_i32_0 = arith.constant 0 : i32
    %c0_i32_1 = arith.constant 0 : i32
    return %arg0, %c0_i32, %c0_i32_0 : i32, i32, i32
  }
  func.func @transform_1(%arg0: i32, %arg1: i32) -> (i32, i32, i32) {
    %c0_i32 = arith.constant 0 : i32
    %c0_i32_0 = arith.constant 0 : i32
    %c0_i32_1 = arith.constant 0 : i32
    return %arg0, %c0_i32, %c0_i32_0 : i32, i32, i32
  }
  func.func @transform_2(%arg0: i32, %arg1: i32) -> (i32, i32) {
    %c0_i32 = arith.constant 0 : i32
    %c0_i32_0 = arith.constant 0 : i32
    %c0_i32_1 = arith.constant 0 : i32
    return %c0_i32, %c0_i32_0 : i32, i32
  }
  func.func @transform_3(%arg0: i32, %arg1: i32) -> (i32, i32) {
    %c0_i32 = arith.constant 0 : i32
    %c0_i32_0 = arith.constant 0 : i32
    %c0_i32_1 = arith.constant 0 : i32
    return %c0_i32, %c0_i32_0 : i32, i32
  }
  func.func @transform_4(%arg0: i32, %arg1: i32) -> (i32, i32, i32) {
    %c0_i32 = arith.constant 0 : i32
    %c0_i32_0 = arith.constant 0 : i32
    %c0_i32_1 = arith.constant 0 : i32
    return %arg1, %c0_i32, %c0_i32_0 : i32, i32, i32
  }
  func.func @transform_5(%arg0: i32, %arg1: i32) -> (i32, i32, i32) {
    %c0_i32 = arith.constant 0 : i32
    %c0_i32_0 = arith.constant 0 : i32
    %c0_i32_1 = arith.constant 0 : i32
    return %arg1, %c0_i32, %c0_i32_0 : i32, i32, i32
  }
  func.func @transform_6(%arg0: i32, %arg1: i32) -> (i32, i32, i32) {
    %c0_i32 = arith.constant 0 : i32
    %c0_i32_0 = arith.constant 0 : i32
    %c0_i32_1 = arith.constant 0 : i32
    return %arg1, %c0_i32, %c0_i32_0 : i32, i32, i32
  }
  func.func @transform_7(%arg0: i32, %arg1: i32) -> (i32, i32, i32) {
    %c0_i32 = arith.constant 0 : i32
    %c0_i32_0 = arith.constant 0 : i32
    %c0_i32_1 = arith.constant 0 : i32
    return %arg1, %c0_i32, %c0_i32_0 : i32, i32, i32
  }
  func.func @transform_8(%arg0: i32, %arg1: i32) -> (i32, i32, i32) {
    %c0_i32 = arith.constant 0 : i32
    %c0_i32_0 = arith.constant 0 : i32
    %c0_i32_1 = arith.constant 0 : i32
    return %arg1, %c0_i32, %c0_i32_0 : i32, i32, i32
  }
  func.func @transform_9(%arg0: i32, %arg1: i32) -> (i32, i32, i32) {
    %c0_i32 = arith.constant 0 : i32
    %c0_i32_0 = arith.constant 0 : i32
    %c0_i32_1 = arith.constant 0 : i32
    return %arg1, %c0_i32, %c0_i32_0 : i32, i32, i32
  }
  func.func @transform_10(%arg0: i32, %arg1: i32) -> (i32, i32, i32) {
    %c0_i32 = arith.constant 0 : i32
    %c0_i32_0 = arith.constant 0 : i32
    %c0_i32_1 = arith.constant 0 : i32
    return %arg1, %c0_i32, %c0_i32_0 : i32, i32, i32
  }
  func.func @transform_11(%arg0: i32, %arg1: i32) -> (i32, i32, i32) {
    %c0_i32 = arith.constant 0 : i32
    %c0_i32_0 = arith.constant 0 : i32
    %c0_i32_1 = arith.constant 0 : i32
    return %arg1, %c0_i32, %c0_i32_0 : i32, i32, i32
  }
  func.func @transform_12(%arg0: i32, %arg1: i32) -> (i32, i32, i32) {
    %c0_i32 = arith.constant 0 : i32
    %c0_i32_0 = arith.constant 0 : i32
    %c0_i32_1 = arith.constant 0 : i32
    return %arg1, %c0_i32, %c0_i32_0 : i32, i32, i32
  }
  func.func @transform_13(%arg0: i32, %arg1: i32) -> (i32, i32, i32) {
    %c0_i32 = arith.constant 0 : i32
    %c0_i32_0 = arith.constant 0 : i32
    %c0_i32_1 = arith.constant 0 : i32
    return %arg1, %c0_i32, %c0_i32_0 : i32, i32, i32
  }
  func.func @transform_14(%arg0: i32, %arg1: i32) -> (i32, i32, i32) {
    %c0_i32 = arith.constant 0 : i32
    %c0_i32_0 = arith.constant 0 : i32
    %c0_i32_1 = arith.constant 0 : i32
    return %arg1, %c0_i32, %c0_i32_0 : i32, i32, i32
  }
  func.func @transform_15(%arg0: i32, %arg1: i32) -> (i32, i32, i32) {
    %c0_i32 = arith.constant 0 : i32
    %c0_i32_0 = arith.constant 0 : i32
    %c0_i32_1 = arith.constant 0 : i32
    return %arg1, %c0_i32, %c0_i32_0 : i32, i32, i32
  }
  func.func @transform_16(%arg0: i32, %arg1: i32) -> (i32, i32) {
    %c0_i32 = arith.constant 0 : i32
    %c0_i32_0 = arith.constant 0 : i32
    %c0_i32_1 = arith.constant 0 : i32
    return %c0_i32, %c0_i32_0 : i32, i32
  }
  func.func @transform_17(%arg0: i32, %arg1: i32) -> (i32, i32) {
    %c0_i32 = arith.constant 0 : i32
    %c0_i32_0 = arith.constant 0 : i32
    %c0_i32_1 = arith.constant 0 : i32
    return %c0_i32, %c0_i32_0 : i32, i32
  }
  func.func @transform_18(%arg0: i32, %arg1: i32) -> (i32, i32, i32) {
    %c0_i32 = arith.constant 0 : i32
    %c0_i32_0 = arith.constant 0 : i32
    %c0_i32_1 = arith.constant 0 : i32
    return %arg0, %c0_i32, %c0_i32_0 : i32, i32, i32
  }
}

</mosaic_0001>

<llo_original>
// kernel: tpu_custom_call.1
$region0: #{tpu_custom_call.1}
  #allocation0 [shape = 'u32[]', space=smem, size = 0x4, offset = 0x4, fixed_abs, tag = 'smem constant byte address 0x4 - core index']
  #allocation1 [shape = 'u32[144,128]{1,0:T(1,128)}', space=vmem, size = 0x12000, scoped, tag = 'internal scratch']
  #allocation2 [shape = 'f32[64,32]{1,0:T(8,128)}', space=vmem, size = 0x8000, scoped, tag = 'scratch operand']
  #allocation3 [shape = 'bf16[64,32]{1,0:T(8,128)(2,1)}', space=vmem, size = 0x4000, scoped, tag = 'scratch operand']
  #allocation4 [shape = 'f32[1,1]{1,0:T(1,128)S(1)}', space=vmem, size = 0x200, scoped, tag = 'scoped memory for tpu_custom_call.1']
  %s0 = inlined_call_operand.vmem [shape: bf16[1,64,32], index: 0, kind: input, shape index: {}]
  %s1 = inlined_call_operand.vmem [shape: f32[1,8,8], index: 1, kind: input, shape index: {}]
  %s2 = inlined_call_operand.vmem [shape: f32[1,32], index: 2, kind: input, shape index: {}]
  %s3 = inlined_call_operand.vmem [shape: f32[1,32], index: 3, kind: input, shape index: {}]
  %s4 = inlined_call_operand.vmem [shape: bf16[2,32,96], index: 4, kind: input, shape index: {}]
  %s5 = inlined_call_operand.vmem [shape: f32[2,1,96], index: 5, kind: input, shape index: {}]
  %s6 = inlined_call_operand.vmem [shape: bf16[2,32,32], index: 6, kind: input, shape index: {}]
  %s7 = inlined_call_operand.vmem [shape: f32[2,1,32], index: 7, kind: input, shape index: {}]
  %s8 = inlined_call_operand.vmem [shape: f32[2,1,32], index: 8, kind: input, shape index: {}]
  %s9 = inlined_call_operand.vmem [shape: f32[2,1,32], index: 9, kind: input, shape index: {}]
  %s10 = inlined_call_operand.vmem [shape: bf16[2,32,64], index: 10, kind: input, shape index: {}]
  %s11 = inlined_call_operand.vmem [shape: f32[2,1,64], index: 11, kind: input, shape index: {}]
  %s12 = inlined_call_operand.vmem [shape: bf16[2,64,32], index: 12, kind: input, shape index: {}]
  %s13 = inlined_call_operand.vmem [shape: f32[2,1,32], index: 13, kind: input, shape index: {}]
  %s14 = inlined_call_operand.vmem [shape: f32[2,1,32], index: 14, kind: input, shape index: {}]
  %s15 = inlined_call_operand.vmem [shape: f32[2,1,32], index: 15, kind: input, shape index: {}]
  %s16 = inlined_call_operand.vmem [shape: f32[1,32], index: 16, kind: input, shape index: {}]
  %s17 = inlined_call_operand.<no memory space> [shape: f32[1,1], index: 17, kind: input, shape index: {}]
  %s18 = inlined_call_operand.hbm [shape: f32[1,8,128], index: 18, kind: output, shape index: {}]
  %s19 = sld [smem:[#allocation0]]
  $region113: #{tpu_custom_call.1} parent=0
    _
  %s21 = ssub.s32 1, %s19
  %s22 = scalar_select 0, %s21, %s19
  %v23 = vstv %s17
  %24 = vst [vmem:[#allocation4] sm:$0x1] %v23
  $region1: #{tpu_custom_call.1} parent=0
    #allocation5 [shape = 'u8[4096]{0}', space=vmem, size = 0x1000, scoped, tag = 'output window, operand 0, single buffered']
    #allocation6 [shape = 's32[2]{0}', space=sflag, size = 0x8, scoped, tag = 'scoped memory for tpu_custom_call.1']
    %25 = vsyncpa [#allocation6], 0
    loop: start=0, step=1, limit=4
    $region2: #{tpu_custom_call.1} parent=1 // loop_pre_header
      _
    $region3: #{tpu_custom_call.1} parent=1 // loop_header
      %s27 = sphi 0, %s31
      %p28 = scmp.ge.s32.totalorder %s27, 4
      %s34 = sphi 0, %s46
      %s35 = sphi 0, %s42
      %s36 = sphi 0, %s34
      %s37 = sphi 0, %s35
      %s38 = sphi 0, %s36
      %s39 = sphi 0, %s37
      %s49 = sphi 0, %s51
      %s52 = sphi 0, %s49
      %s53 = sphi 0, %s52
      %s69 = sphi 0, %s53
      %s75 = sphi 0, %s77
      %s78 = sphi 0, %s75
      %s79 = sphi 0, %s78
      %s95 = sphi 0, %s79
      %s99 = sphi 0, %s99
      %s101 = sphi 0, %s99
      %s102 = sphi 0, %s101
      %s116 = sphi 0, %s102
      %s120 = sphi 0, %s120
      %s122 = sphi 0, %s120
      %s123 = sphi 0, %s122
      %s137 = sphi 0, %s123
      %s143 = sphi 0, %s145
      %s146 = sphi 0, %s143
      %s147 = sphi 0, %s146
      %s163 = sphi 0, %s147
      %s169 = sphi 0, %s171
      %s172 = sphi 0, %s169
      %s173 = sphi 0, %s172
      %s189 = sphi 0, %s173
      %s195 = sphi 0, %s197
      %s198 = sphi 0, %s195
      %s199 = sphi 0, %s198
      %s215 = sphi 0, %s199
      %s221 = sphi 0, %s223
      %s224 = sphi 0, %s221
      %s225 = sphi 0, %s224
      %s241 = sphi 0, %s225
      %s247 = sphi 0, %s249
      %s250 = sphi 0, %s247
      %s251 = sphi 0, %s250
      %s267 = sphi 0, %s251
      %s273 = sphi 0, %s275
      %s276 = sphi 0, %s273
      %s277 = sphi 0, %s276
      %s293 = sphi 0, %s277
      %s299 = sphi 0, %s301
      %s302 = sphi 0, %s299
      %s303 = sphi 0, %s302
      %s319 = sphi 0, %s303
      %s325 = sphi 0, %s327
      %s328 = sphi 0, %s325
      %s329 = sphi 0, %s328
      %s345 = sphi 0, %s329
      %s351 = sphi 0, %s353
      %s354 = sphi 0, %s351
      %s355 = sphi 0, %s354
      %s371 = sphi 0, %s355
      %s377 = sphi 0, %s379
      %s380 = sphi 0, %s377
      %s381 = sphi 0, %s380
      %s397 = sphi 0, %s381
      %s403 = sphi 0, %s405
      %s406 = sphi 0, %s403
      %s407 = sphi 0, %s406
      %s423 = sphi 0, %s407
      %s429 = sphi 0, %s431
      %s432 = sphi 0, %s429
      %s433 = sphi 0, %s432
      %s449 = sphi 0, %s433
      %s453 = sphi 0, %s453
      %s455 = sphi 0, %s453
      %s456 = sphi 0, %s455
      %s470 = sphi 0, %s456
      %s474 = sphi 0, %s474
      %s476 = sphi 0, %s474
      %s477 = sphi 0, %s476
      %s491 = sphi 0, %s477
      %s497 = sphi 0, %s499
      %s500 = sphi 0, %s497
      %s501 = sphi 0, %s500
      %s517 = sphi 0, %s501
    $region4: #{tpu_custom_call.1} parent=1 // loop_header_branch
      %30 = sbr.rel (%p28) target = $region8
    $region5: #{tpu_custom_call.1} parent=1 // loop_body
      %s32 = ssub.s32 %s27, 1
      %s33 = ssub.s32 %s27, 2
      %s40 = sadd.s32 1, %s35
      %p41 = scmp.ge.s32.totalorder %s40, 2
      %s42 = scalar_select %p41, 0, %s40
      %s43 = sadd.s32 1, %s34
      %s44 = scalar_select %p41, %s43, %s34
      %p45 = scmp.ge.s32.totalorder %s44, 1
      %s46 = scalar_select %p45, 0, %s44
      %s47 = ssub.s32 %s34, %s46
      %p48 = scmp.eq.s32.totalorder %s47, 0
      %s50 = sadd.s32 %s49, 1
      %s51 = scalar_select %p48, %s49, %s50
      %p54 = pneg %p48
      %p55 = scmp.eq.s32.totalorder %s27, 1
      %p56 = por %p54, %p55
      %p57 = scmp.ne.s32.totalorder %s49, %s52
      %p58 = scmp.eq.s32.totalorder %s27, 0
      %p59 = por %p57, %p58
      %p60 = scmp.ne.s32.totalorder %s49, %s52
      %p61 = scmp.eq.s32.totalorder %s32, 1
      %p62 = por %p60, %p61
      %p63 = scmp.ne.s32.totalorder %s52, %s53
      %p64 = scmp.eq.s32.totalorder %s32, 0
      %p65 = por %p63, %p64
      %p66 = scmp.ne.s32.totalorder %s52, %s53
      %p67 = scmp.eq.s32.totalorder %s33, 1
      %p68 = por %p66, %p67
      %p70 = scmp.ne.s32.totalorder %s53, %s69
      %p71 = scmp.eq.s32.totalorder %s33, 0
      %p72 = por %p70, %p71
      %s73 = ssub.s32 %s34, %s46
      %p74 = scmp.eq.s32.totalorder %s73, 0
      %s76 = sadd.s32 %s75, 1
      %s77 = scalar_select %p74, %s75, %s76
      %p80 = pneg %p74
      %p81 = scmp.eq.s32.totalorder %s27, 1
      %p82 = por %p80, %p81
      %p83 = scmp.ne.s32.totalorder %s75, %s78
      %p84 = scmp.eq.s32.totalorder %s27, 0
      %p85 = por %p83, %p84
      %p86 = scmp.ne.s32.totalorder %s75, %s78
      %p87 = scmp.eq.s32.totalorder %s32, 1
      %p88 = por %p86, %p87
      %p89 = scmp.ne.s32.totalorder %s78, %s79
      %p90 = scmp.eq.s32.totalorder %s32, 0
      %p91 = por %p89, %p90
      %p92 = scmp.ne.s32.totalorder %s78, %s79
      %p93 = scmp.eq.s32.totalorder %s33, 1
      %p94 = por %p92, %p93
      %p96 = scmp.ne.s32.totalorder %s79, %s95
      %p97 = scmp.eq.s32.totalorder %s33, 0
      %p98 = por %p96, %p97
      %s100 = sadd.s32 %s99, 1
      %p103 = scmp.eq.s32.totalorder %s27, 1
      %p104 = scmp.ne.s32.totalorder %s99, %s101
      %p105 = scmp.eq.s32.totalorder %s27, 0
      %p106 = por %p104, %p105
      %p107 = scmp.ne.s32.totalorder %s99, %s101
      %p108 = scmp.eq.s32.totalorder %s32, 1
      %p109 = por %p107, %p108
      %p110 = scmp.ne.s32.totalorder %s101, %s102
      %p111 = scmp.eq.s32.totalorder %s32, 0
      %p112 = por %p110, %p111
      %p113 = scmp.ne.s32.totalorder %s101, %s102
      %p114 = scmp.eq.s32.totalorder %s33, 1
      %p115 = por %p113, %p114
      %p117 = scmp.ne.s32.totalorder %s102, %s116
      %p118 = scmp.eq.s32.totalorder %s33, 0
      %p119 = por %p117, %p118
      %s121 = sadd.s32 %s120, 1
      %p124 = scmp.eq.s32.totalorder %s27, 1
      %p125 = scmp.ne.s32.totalorder %s120, %s122
      %p126 = scmp.eq.s32.totalorder %s27, 0
      %p127 = por %p125, %p126
      %p128 = scmp.ne.s32.totalorder %s120, %s122
      %p129 = scmp.eq.s32.totalorder %s32, 1
      %p130 = por %p128, %p129
      %p131 = scmp.ne.s32.totalorder %s122, %s123
      %p132 = scmp.eq.s32.totalorder %s32, 0
      %p133 = por %p131, %p132
      %p134 = scmp.ne.s32.totalorder %s122, %s123
      %p135 = scmp.eq.s32.totalorder %s33, 1
      %p136 = por %p134, %p135
      %p138 = scmp.ne.s32.totalorder %s123, %s137
      %p139 = scmp.eq.s32.totalorder %s33, 0
      %p140 = por %p138, %p139
      %s141 = ssub.s32 %s35, %s42
      %p142 = scmp.eq.s32.totalorder %s141, 0
      %s144 = sadd.s32 %s143, 1
      %s145 = scalar_select %p142, %s143, %s144
      %p148 = pneg %p142
      %p149 = scmp.eq.s32.totalorder %s27, 1
      %p150 = por %p148, %p149
      %p151 = scmp.ne.s32.totalorder %s143, %s146
      %p152 = scmp.eq.s32.totalorder %s27, 0
      %p153 = por %p151, %p152
      %p154 = scmp.ne.s32.totalorder %s143, %s146
      %p155 = scmp.eq.s32.totalorder %s32, 1
      %p156 = por %p154, %p155
      %p157 = scmp.ne.s32.totalorder %s146, %s147
      %p158 = scmp.eq.s32.totalorder %s32, 0
      %p159 = por %p157, %p158
      %p160 = scmp.ne.s32.totalorder %s146, %s147
      %p161 = scmp.eq.s32.totalorder %s33, 1
      %p162 = por %p160, %p161
      %p164 = scmp.ne.s32.totalorder %s147, %s163
      %p165 = scmp.eq.s32.totalorder %s33, 0
      %p166 = por %p164, %p165
      %s167 = ssub.s32 %s35, %s42
      %p168 = scmp.eq.s32.totalorder %s167, 0
      %s170 = sadd.s32 %s169, 1
      %s171 = scalar_select %p168, %s169, %s170
      %p174 = pneg %p168
      %p175 = scmp.eq.s32.totalorder %s27, 1
      %p176 = por %p174, %p175
      %p177 = scmp.ne.s32.totalorder %s169, %s172
      %p178 = scmp.eq.s32.totalorder %s27, 0
      %p179 = por %p177, %p178
      %p180 = scmp.ne.s32.totalorder %s169, %s172
      %p181 = scmp.eq.s32.totalorder %s32, 1
      %p182 = por %p180, %p181
      %p183 = scmp.ne.s32.totalorder %s172, %s173
      %p184 = scmp.eq.s32.totalorder %s32, 0
      %p185 = por %p183, %p184
      %p186 = scmp.ne.s32.totalorder %s172, %s173
      %p187 = scmp.eq.s32.totalorder %s33, 1
      %p188 = por %p186, %p187
      %p190 = scmp.ne.s32.totalorder %s173, %s189
      %p191 = scmp.eq.s32.totalorder %s33, 0
      %p192 = por %p190, %p191
      %s193 = ssub.s32 %s35, %s42
      %p194 = scmp.eq.s32.totalorder %s193, 0
      %s196 = sadd.s32 %s195, 1
      %s197 = scalar_select %p194, %s195, %s196
      %p200 = pneg %p194
      %p201 = scmp.eq.s32.totalorder %s27, 1
      %p202 = por %p200, %p201
      %p203 = scmp.ne.s32.totalorder %s195, %s198
      %p204 = scmp.eq.s32.totalorder %s27, 0
      %p205 = por %p203, %p204
      %p206 = scmp.ne.s32.totalorder %s195, %s198
      %p207 = scmp.eq.s32.totalorder %s32, 1
      %p208 = por %p206, %p207
      %p209 = scmp.ne.s32.totalorder %s198, %s199
      %p210 = scmp.eq.s32.totalorder %s32, 0
      %p211 = por %p209, %p210
      %p212 = scmp.ne.s32.totalorder %s198, %s199
      %p213 = scmp.eq.s32.totalorder %s33, 1
      %p214 = por %p212, %p213
      %p216 = scmp.ne.s32.totalorder %s199, %s215
      %p217 = scmp.eq.s32.totalorder %s33, 0
      %p218 = por %p216, %p217
      %s219 = ssub.s32 %s35, %s42
      %p220 = scmp.eq.s32.totalorder %s219, 0
      %s222 = sadd.s32 %s221, 1
      %s223 = scalar_select %p220, %s221, %s222
      %p226 = pneg %p220
      %p227 = scmp.eq.s32.totalorder %s27, 1
      %p228 = por %p226, %p227
      %p229 = scmp.ne.s32.totalorder %s221, %s224
      %p230 = scmp.eq.s32.totalorder %s27, 0
      %p231 = por %p229, %p230
      %p232 = scmp.ne.s32.totalorder %s221, %s224
      %p233 = scmp.eq.s32.totalorder %s32, 1
      %p234 = por %p232, %p233
      %p235 = scmp.ne.s32.totalorder %s224, %s225
      %p236 = scmp.eq.s32.totalorder %s32, 0
      %p237 = por %p235, %p236
      %p238 = scmp.ne.s32.totalorder %s224, %s225
      %p239 = scmp.eq.s32.totalorder %s33, 1
      %p240 = por %p238, %p239
      %p242 = scmp.ne.s32.totalorder %s225, %s241
      %p243 = scmp.eq.s32.totalorder %s33, 0
      %p244 = por %p242, %p243
      %s245 = ssub.s32 %s35, %s42
      %p246 = scmp.eq.s32.totalorder %s245, 0
      %s248 = sadd.s32 %s247, 1
      %s249 = scalar_select %p246, %s247, %s248
      %p252 = pneg %p246
      %p253 = scmp.eq.s32.totalorder %s27, 1
      %p254 = por %p252, %p253
      %p255 = scmp.ne.s32.totalorder %s247, %s250
      %p256 = scmp.eq.s32.totalorder %s27, 0
      %p257 = por %p255, %p256
      %p258 = scmp.ne.s32.totalorder %s247, %s250
      %p259 = scmp.eq.s32.totalorder %s32, 1
      %p260 = por %p258, %p259
      %p261 = scmp.ne.s32.totalorder %s250, %s251
      %p262 = scmp.eq.s32.totalorder %s32, 0
      %p263 = por %p261, %p262
      %p264 = scmp.ne.s32.totalorder %s250, %s251
      %p265 = scmp.eq.s32.totalorder %s33, 1
      %p266 = por %p264, %p265
      %p268 = scmp.ne.s32.totalorder %s251, %s267
      %p269 = scmp.eq.s32.totalorder %s33, 0
      %p270 = por %p268, %p269
      %s271 = ssub.s32 %s35, %s42
      %p272 = scmp.eq.s32.totalorder %s271, 0
      %s274 = sadd.s32 %s273, 1
      %s275 = scalar_select %p272, %s273, %s274
      %p278 = pneg %p272
      %p279 = scmp.eq.s32.totalorder %s27, 1
      %p280 = por %p278, %p279
      %p281 = scmp.ne.s32.totalorder %s273, %s276
      %p282 = scmp.eq.s32.totalorder %s27, 0
      %p283 = por %p281, %p282
      %p284 = scmp.ne.s32.totalorder %s273, %s276
      %p285 = scmp.eq.s32.totalorder %s32, 1
      %p286 = por %p284, %p285
      %p287 = scmp.ne.s32.totalorder %s276, %s277
      %p288 = scmp.eq.s32.totalorder %s32, 0
      %p289 = por %p287, %p288
      %p290 = scmp.ne.s32.totalorder %s276, %s277
      %p291 = scmp.eq.s32.totalorder %s33, 1
      %p292 = por %p290, %p291
      %p294 = scmp.ne.s32.totalorder %s277, %s293
      %p295 = scmp.eq.s32.totalorder %s33, 0
      %p296 = por %p294, %p295
      %s297 = ssub.s32 %s35, %s42
      %p298 = scmp.eq.s32.totalorder %s297, 0
      %s300 = sadd.s32 %s299, 1
      %s301 = scalar_select %p298, %s299, %s300
      %p304 = pneg %p298
      %p305 = scmp.eq.s32.totalorder %s27, 1
      %p306 = por %p304, %p305
      %p307 = scmp.ne.s32.totalorder %s299, %s302
      %p308 = scmp.eq.s32.totalorder %s27, 0
      %p309 = por %p307, %p308
      %p310 = scmp.ne.s32.totalorder %s299, %s302
      %p311 = scmp.eq.s32.totalorder %s32, 1
      %p312 = por %p310, %p311
      %p313 = scmp.ne.s32.totalorder %s302, %s303
      %p314 = scmp.eq.s32.totalorder %s32, 0
      %p315 = por %p313, %p314
      %p316 = scmp.ne.s32.totalorder %s302, %s303
      %p317 = scmp.eq.s32.totalorder %s33, 1
      %p318 = por %p316, %p317
      %p320 = scmp.ne.s32.totalorder %s303, %s319
      %p321 = scmp.eq.s32.totalorder %s33, 0
      %p322 = por %p320, %p321
      %s323 = ssub.s32 %s35, %s42
      %p324 = scmp.eq.s32.totalorder %s323, 0
      %s326 = sadd.s32 %s325, 1
      %s327 = scalar_select %p324, %s325, %s326
      %p330 = pneg %p324
      %p331 = scmp.eq.s32.totalorder %s27, 1
      %p332 = por %p330, %p331
      %p333 = scmp.ne.s32.totalorder %s325, %s328
      %p334 = scmp.eq.s32.totalorder %s27, 0
      %p335 = por %p333, %p334
      %p336 = scmp.ne.s32.totalorder %s325, %s328
      %p337 = scmp.eq.s32.totalorder %s32, 1
      %p338 = por %p336, %p337
      %p339 = scmp.ne.s32.totalorder %s328, %s329
      %p340 = scmp.eq.s32.totalorder %s32, 0
      %p341 = por %p339, %p340
      %p342 = scmp.ne.s32.totalorder %s328, %s329
      %p343 = scmp.eq.s32.totalorder %s33, 1
      %p344 = por %p342, %p343
      %p346 = scmp.ne.s32.totalorder %s329, %s345
      %p347 = scmp.eq.s32.totalorder %s33, 0
      %p348 = por %p346, %p347
      %s349 = ssub.s32 %s35, %s42
      %p350 = scmp.eq.s32.totalorder %s349, 0
      %s352 = sadd.s32 %s351, 1
      %s353 = scalar_select %p350, %s351, %s352
      %p356 = pneg %p350
      %p357 = scmp.eq.s32.totalorder %s27, 1
      %p358 = por %p356, %p357
      %p359 = scmp.ne.s32.totalorder %s351, %s354
      %p360 = scmp.eq.s32.totalorder %s27, 0
      %p361 = por %p359, %p360
      %p362 = scmp.ne.s32.totalorder %s351, %s354
      %p363 = scmp.eq.s32.totalorder %s32, 1
      %p364 = por %p362, %p363
      %p365 = scmp.ne.s32.totalorder %s354, %s355
      %p366 = scmp.eq.s32.totalorder %s32, 0
      %p367 = por %p365, %p366
      %p368 = scmp.ne.s32.totalorder %s354, %s355
      %p369 = scmp.eq.s32.totalorder %s33, 1
      %p370 = por %p368, %p369
      %p372 = scmp.ne.s32.totalorder %s355, %s371
      %p373 = scmp.eq.s32.totalorder %s33, 0
      %p374 = por %p372, %p373
      %s375 = ssub.s32 %s35, %s42
      %p376 = scmp.eq.s32.totalorder %s375, 0
      %s378 = sadd.s32 %s377, 1
      %s379 = scalar_select %p376, %s377, %s378
      %p382 = pneg %p376
      %p383 = scmp.eq.s32.totalorder %s27, 1
      %p384 = por %p382, %p383
      %p385 = scmp.ne.s32.totalorder %s377, %s380
      %p386 = scmp.eq.s32.totalorder %s27, 0
      %p387 = por %p385, %p386
      %p388 = scmp.ne.s32.totalorder %s377, %s380
      %p389 = scmp.eq.s32.totalorder %s32, 1
      %p390 = por %p388, %p389
      %p391 = scmp.ne.s32.totalorder %s380, %s381
      %p392 = scmp.eq.s32.totalorder %s32, 0
      %p393 = por %p391, %p392
      %p394 = scmp.ne.s32.totalorder %s380, %s381
      %p395 = scmp.eq.s32.totalorder %s33, 1
      %p396 = por %p394, %p395
      %p398 = scmp.ne.s32.totalorder %s381, %s397
      %p399 = scmp.eq.s32.totalorder %s33, 0
      %p400 = por %p398, %p399
      %s401 = ssub.s32 %s35, %s42
      %p402 = scmp.eq.s32.totalorder %s401, 0
      %s404 = sadd.s32 %s403, 1
      %s405 = scalar_select %p402, %s403, %s404
      %p408 = pneg %p402
      %p409 = scmp.eq.s32.totalorder %s27, 1
      %p410 = por %p408, %p409
      %p411 = scmp.ne.s32.totalorder %s403, %s406
      %p412 = scmp.eq.s32.totalorder %s27, 0
      %p413 = por %p411, %p412
      %p414 = scmp.ne.s32.totalorder %s403, %s406
      %p415 = scmp.eq.s32.totalorder %s32, 1
      %p416 = por %p414, %p415
      %p417 = scmp.ne.s32.totalorder %s406, %s407
      %p418 = scmp.eq.s32.totalorder %s32, 0
      %p419 = por %p417, %p418
      %p420 = scmp.ne.s32.totalorder %s406, %s407
      %p421 = scmp.eq.s32.totalorder %s33, 1
      %p422 = por %p420, %p421
      %p424 = scmp.ne.s32.totalorder %s407, %s423
      %p425 = scmp.eq.s32.totalorder %s33, 0
      %p426 = por %p424, %p425
      %s427 = ssub.s32 %s35, %s42
      %p428 = scmp.eq.s32.totalorder %s427, 0
      %s430 = sadd.s32 %s429, 1
      %s431 = scalar_select %p428, %s429, %s430
      %p434 = pneg %p428
      %p435 = scmp.eq.s32.totalorder %s27, 1
      %p436 = por %p434, %p435
      %p437 = scmp.ne.s32.totalorder %s429, %s432
      %p438 = scmp.eq.s32.totalorder %s27, 0
      %p439 = por %p437, %p438
      %p440 = scmp.ne.s32.totalorder %s429, %s432
      %p441 = scmp.eq.s32.totalorder %s32, 1
      %p442 = por %p440, %p441
      %p443 = scmp.ne.s32.totalorder %s432, %s433
      %p444 = scmp.eq.s32.totalorder %s32, 0
      %p445 = por %p443, %p444
      %p446 = scmp.ne.s32.totalorder %s432, %s433
      %p447 = scmp.eq.s32.totalorder %s33, 1
      %p448 = por %p446, %p447
      %p450 = scmp.ne.s32.totalorder %s433, %s449
      %p451 = scmp.eq.s32.totalorder %s33, 0
      %p452 = por %p450, %p451
      %s454 = sadd.s32 %s453, 1
      %p457 = scmp.eq.s32.totalorder %s27, 1
      %p458 = scmp.ne.s32.totalorder %s453, %s455
      %p459 = scmp.eq.s32.totalorder %s27, 0
      %p460 = por %p458, %p459
      %p461 = scmp.ne.s32.totalorder %s453, %s455
      %p462 = scmp.eq.s32.totalorder %s32, 1
      %p463 = por %p461, %p462
      %p464 = scmp.ne.s32.totalorder %s455, %s456
      %p465 = scmp.eq.s32.totalorder %s32, 0
      %p466 = por %p464, %p465
      %p467 = scmp.ne.s32.totalorder %s455, %s456
      %p468 = scmp.eq.s32.totalorder %s33, 1
      %p469 = por %p467, %p468
      %p471 = scmp.ne.s32.totalorder %s456, %s470
      %p472 = scmp.eq.s32.totalorder %s33, 0
      %p473 = por %p471, %p472
      %s475 = sadd.s32 %s474, 1
      %p478 = scmp.eq.s32.totalorder %s27, 1
      %p479 = scmp.ne.s32.totalorder %s474, %s476
      %p480 = scmp.eq.s32.totalorder %s27, 0
      %p481 = por %p479, %p480
      %p482 = scmp.ne.s32.totalorder %s474, %s476
      %p483 = scmp.eq.s32.totalorder %s32, 1
      %p484 = por %p482, %p483
      %p485 = scmp.ne.s32.totalorder %s476, %s477
      %p486 = scmp.eq.s32.totalorder %s32, 0
      %p487 = por %p485, %p486
      %p488 = scmp.ne.s32.totalorder %s476, %s477
      %p489 = scmp.eq.s32.totalorder %s33, 1
      %p490 = por %p488, %p489
      %p492 = scmp.ne.s32.totalorder %s477, %s491
      %p493 = scmp.eq.s32.totalorder %s33, 0
      %p494 = por %p492, %p493
      %s495 = ssub.s32 %s34, %s46
      %p496 = scmp.eq.s32.totalorder %s495, 0
      %s498 = sadd.s32 %s497, 1
      %s499 = scalar_select %p496, %s497, %s498
      %p502 = pneg %p496
      %p503 = scmp.eq.s32.totalorder %s27, 1
      %p504 = por %p502, %p503
      %p505 = scmp.ne.s32.totalorder %s497, %s500
      %p506 = scmp.eq.s32.totalorder %s27, 0
      %p507 = por %p505, %p506
      %p508 = scmp.ne.s32.totalorder %s497, %s500
      %p509 = scmp.eq.s32.totalorder %s32, 1
      %p510 = por %p508, %p509
      %p511 = scmp.ne.s32.totalorder %s500, %s501
      %p512 = scmp.eq.s32.totalorder %s32, 0
      %p513 = por %p511, %p512
      %p514 = scmp.ne.s32.totalorder %s500, %s501
      %p515 = scmp.eq.s32.totalorder %s33, 1
      %p516 = por %p514, %p515
      %p518 = scmp.ne.s32.totalorder %s501, %s517
      %p519 = scmp.eq.s32.totalorder %s33, 0
      %p520 = por %p518, %p519
      %p521 = scmp.le.s32.totalorder 1, %s27
      %p522 = scmp.lt.s32.totalorder %s27, 3
      %p523 = pnand %p521, %p522
      %p524 = pneg %p523
      // Predicated region
      $region9: #{tpu_custom_call.1} parent=5 // pred_check
        _
      $region10: #{tpu_custom_call.1} parent=5 // pred_check_branch
        %526 = sbr.rel (%p523) target = $region12
      $region11: #{tpu_custom_call.1} parent=5 // pred_region
        %s527 = ssub.s32 %s27, 1
        // Predicated region
        $region13: #{tpu_custom_call.1} parent=11 // pred_check
          %p528 = pneg %p65
        $region14: #{tpu_custom_call.1} parent=11 // pred_check_branch
          %530 = sbr.rel (%p528) target = $region16
        $region15: #{tpu_custom_call.1} parent=11 // pred_region
          %p531 = scmp.lt.s32.totalorder %s36, 0
          %s532 = scalar_select %p531, %s36, 0
          %s533 = smul.addr %s532, 8
          %s534 = smul.addr %s533, 4
          %s535 = scalar_lea.vmem %s0, %s534
        $region16: #{tpu_custom_call.1} parent=11 // pred_fallthru
          _
        // Predicated region
        $region17: #{tpu_custom_call.1} parent=11 // pred_check
          %p536 = pneg %p91
        $region18: #{tpu_custom_call.1} parent=11 // pred_check_branch
          %538 = sbr.rel (%p536) target = $region20
        $region19: #{tpu_custom_call.1} parent=11 // pred_region
          %p539 = scmp.lt.s32.totalorder %s36, 0
          %s540 = scalar_select %p539, %s36, 0
          %s541 = smul.addr %s540, 8
          %s542 = scalar_lea.vmem %s1, %s541
        $region20: #{tpu_custom_call.1} parent=11 // pred_fallthru
          _
        // Predicated region
        $region21: #{tpu_custom_call.1} parent=11 // pred_check
          %p543 = pneg %p112
        $region22: #{tpu_custom_call.1} parent=11 // pred_check_branch
          %545 = sbr.rel (%p543) target = $region24
        $region23: #{tpu_custom_call.1} parent=11 // pred_region
          _
        $region24: #{tpu_custom_call.1} parent=11 // pred_fallthru
          _
        // Predicated region
        $region25: #{tpu_custom_call.1} parent=11 // pred_check
          %p546 = pneg %p133
        $region26: #{tpu_custom_call.1} parent=11 // pred_check_branch
          %548 = sbr.rel (%p546) target = $region28
        $region27: #{tpu_custom_call.1} parent=11 // pred_region
          _
        $region28: #{tpu_custom_call.1} parent=11 // pred_fallthru
          _
        // Predicated region
        $region29: #{tpu_custom_call.1} parent=11 // pred_check
          %p549 = pneg %p466
        $region30: #{tpu_custom_call.1} parent=11 // pred_check_branch
          %551 = sbr.rel (%p549) target = $region32
        $region31: #{tpu_custom_call.1} parent=11 // pred_region
          _
        $region32: #{tpu_custom_call.1} parent=11 // pred_fallthru
          _
        // Predicated region
        $region33: #{tpu_custom_call.1} parent=11 // pred_check
          %p552 = pneg %p487
        $region34: #{tpu_custom_call.1} parent=11 // pred_check_branch
          %554 = sbr.rel (%p552) target = $region36
        $region35: #{tpu_custom_call.1} parent=11 // pred_region
          _
        $region36: #{tpu_custom_call.1} parent=11 // pred_fallthru
          _
      $region12: #{tpu_custom_call.1} parent=5 // pred_fallthru
        _
      %p555 = scmp.lt.s32.totalorder %s27, 2
      // Predicated region
      $region37: #{tpu_custom_call.1} parent=5 // pred_check
        %p556 = pneg %p555
      $region38: #{tpu_custom_call.1} parent=5 // pred_check_branch
        %558 = sbr.rel (%p556) target = $region40
      $region39: #{tpu_custom_call.1} parent=5 // pred_region
        // Predicated region
        $region41: #{tpu_custom_call.1} parent=39 // pred_check
          %p559 = pneg %p153
        $region42: #{tpu_custom_call.1} parent=39 // pred_check_branch
          %561 = sbr.rel (%p559) target = $region44
        $region43: #{tpu_custom_call.1} parent=39 // pred_region
          %p562 = scmp.lt.s32.totalorder %s35, 1
          %s563 = scalar_select %p562, %s35, 1
          %s564 = smul.addr %s563, 4
          %s565 = smul.addr %s564, 4
          %s566 = scalar_lea.vmem %s4, %s565
        $region44: #{tpu_custom_call.1} parent=39 // pred_fallthru
          _
        // Predicated region
        $region45: #{tpu_custom_call.1} parent=39 // pred_check
          %p567 = pneg %p179
        $region46: #{tpu_custom_call.1} parent=39 // pred_check_branch
          %569 = sbr.rel (%p567) target = $region48
        $region47: #{tpu_custom_call.1} parent=39 // pred_region
          %p570 = scmp.lt.s32.totalorder %s35, 1
          %s571 = scalar_select %p570, %s35, 1
          %s572 = scalar_lea.vmem %s5, %s571
        $region48: #{tpu_custom_call.1} parent=39 // pred_fallthru
          _
        // Predicated region
        $region49: #{tpu_custom_call.1} parent=39 // pred_check
          %p573 = pneg %p205
        $region50: #{tpu_custom_call.1} parent=39 // pred_check_branch
          %575 = sbr.rel (%p573) target = $region52
        $region51: #{tpu_custom_call.1} parent=39 // pred_region
          %p576 = scmp.lt.s32.totalorder %s35, 1
          %s577 = scalar_select %p576, %s35, 1
          %s578 = smul.addr %s577, 4
          %s579 = smul.addr %s578, 4
          %s580 = scalar_lea.vmem %s6, %s579
        $region52: #{tpu_custom_call.1} parent=39 // pred_fallthru
          _
        // Predicated region
        $region53: #{tpu_custom_call.1} parent=39 // pred_check
          %p581 = pneg %p231
        $region54: #{tpu_custom_call.1} parent=39 // pred_check_branch
          %583 = sbr.rel (%p581) target = $region56
        $region55: #{tpu_custom_call.1} parent=39 // pred_region
          %p584 = scmp.lt.s32.totalorder %s35, 1
          %s585 = scalar_select %p584, %s35, 1
          %s586 = scalar_lea.vmem %s7, %s585
        $region56: #{tpu_custom_call.1} parent=39 // pred_fallthru
          _
        // Predicated region
        $region57: #{tpu_custom_call.1} parent=39 // pred_check
          %p587 = pneg %p257
        $region58: #{tpu_custom_call.1} parent=39 // pred_check_branch
          %589 = sbr.rel (%p587) target = $region60
        $region59: #{tpu_custom_call.1} parent=39 // pred_region
          %p590 = scmp.lt.s32.totalorder %s35, 1
          %s591 = scalar_select %p590, %s35, 1
          %s592 = scalar_lea.vmem %s8, %s591
        $region60: #{tpu_custom_call.1} parent=39 // pred_fallthru
          _
        // Predicated region
        $region61: #{tpu_custom_call.1} parent=39 // pred_check
          %p593 = pneg %p283
        $region62: #{tpu_custom_call.1} parent=39 // pred_check_branch
          %595 = sbr.rel (%p593) target = $region64
        $region63: #{tpu_custom_call.1} parent=39 // pred_region
          %p596 = scmp.lt.s32.totalorder %s35, 1
          %s597 = scalar_select %p596, %s35, 1
          %s598 = scalar_lea.vmem %s9, %s597
        $region64: #{tpu_custom_call.1} parent=39 // pred_fallthru
          _
        // Predicated region
        $region65: #{tpu_custom_call.1} parent=39 // pred_check
          %p599 = pneg %p309
        $region66: #{tpu_custom_call.1} parent=39 // pred_check_branch
          %601 = sbr.rel (%p599) target = $region68
        $region67: #{tpu_custom_call.1} parent=39 // pred_region
          %p602 = scmp.lt.s32.totalorder %s35, 1
          %s603 = scalar_select %p602, %s35, 1
          %s604 = smul.addr %s603, 4
          %s605 = smul.addr %s604, 4
          %s606 = scalar_lea.vmem %s10, %s605
        $region68: #{tpu_custom_call.1} parent=39 // pred_fallthru
          _
        // Predicated region
        $region69: #{tpu_custom_call.1} parent=39 // pred_check
          %p607 = pneg %p335
        $region70: #{tpu_custom_call.1} parent=39 // pred_check_branch
          %609 = sbr.rel (%p607) target = $region72
        $region71: #{tpu_custom_call.1} parent=39 // pred_region
          %p610 = scmp.lt.s32.totalorder %s35, 1
          %s611 = scalar_select %p610, %s35, 1
          %s612 = scalar_lea.vmem %s11, %s611
        $region72: #{tpu_custom_call.1} parent=39 // pred_fallthru
          _
        // Predicated region
        $region73: #{tpu_custom_call.1} parent=39 // pred_check
          %p613 = pneg %p361
        $region74: #{tpu_custom_call.1} parent=39 // pred_check_branch
          %615 = sbr.rel (%p613) target = $region76
        $region75: #{tpu_custom_call.1} parent=39 // pred_region
          %p616 = scmp.lt.s32.totalorder %s35, 1
          %s617 = scalar_select %p616, %s35, 1
          %s618 = smul.addr %s617, 8
          %s619 = smul.addr %s618, 4
          %s620 = scalar_lea.vmem %s12, %s619
        $region76: #{tpu_custom_call.1} parent=39 // pred_fallthru
          _
        // Predicated region
        $region77: #{tpu_custom_call.1} parent=39 // pred_check
          %p621 = pneg %p387
        $region78: #{tpu_custom_call.1} parent=39 // pred_check_branch
          %623 = sbr.rel (%p621) target = $region80
        $region79: #{tpu_custom_call.1} parent=39 // pred_region
          %p624 = scmp.lt.s32.totalorder %s35, 1
          %s625 = scalar_select %p624, %s35, 1
          %s626 = scalar_lea.vmem %s13, %s625
        $region80: #{tpu_custom_call.1} parent=39 // pred_fallthru
          _
        // Predicated region
        $region81: #{tpu_custom_call.1} parent=39 // pred_check
          %p627 = pneg %p413
        $region82: #{tpu_custom_call.1} parent=39 // pred_check_branch
          %629 = sbr.rel (%p627) target = $region84
        $region83: #{tpu_custom_call.1} parent=39 // pred_region
          %p630 = scmp.lt.s32.totalorder %s35, 1
          %s631 = scalar_select %p630, %s35, 1
          %s632 = scalar_lea.vmem %s14, %s631
        $region84: #{tpu_custom_call.1} parent=39 // pred_fallthru
          _
        // Predicated region
        $region85: #{tpu_custom_call.1} parent=39 // pred_check
          %p633 = pneg %p439
        $region86: #{tpu_custom_call.1} parent=39 // pred_check_branch
          %635 = sbr.rel (%p633) target = $region88
        $region87: #{tpu_custom_call.1} parent=39 // pred_region
          %p636 = scmp.lt.s32.totalorder %s35, 1
          %s637 = scalar_select %p636, %s35, 1
          %s638 = scalar_lea.vmem %s15, %s637
        $region88: #{tpu_custom_call.1} parent=39 // pred_fallthru
          _
      $region40: #{tpu_custom_call.1} parent=5 // pred_fallthru
        _
      %p639 = scmp.le.s32.totalorder 1, %s27
      %p640 = scmp.lt.s32.totalorder %s27, 3
      %p641 = pnand %p639, %p640
      %p642 = pneg %p641
      // Predicated region
      $region89: #{tpu_custom_call.1} parent=5 // pred_check
        _
      $region90: #{tpu_custom_call.1} parent=5 // pred_check_branch
        %644 = sbr.rel (%p641) target = $region92
      $region91: #{tpu_custom_call.1} parent=5 // pred_region
        %s645 = ssub.s32 %s27, 1
        %p646 = scmp.lt.s32.totalorder %s36, 0
        %s647 = scalar_select %p646, %s36, 0
        %s648 = smul.addr %s647, 8
        %s649 = smul.addr %s648, 4
        %s650 = scalar_lea.vmem %s0, %s649
        %p651 = pneg %p65
        %p652 = pneg %p62
        %p653 = scmp.lt.s32.totalorder %s36, 0
        %s654 = scalar_select %p653, %s36, 0
        %s655 = smul.addr %s654, 8
        %s656 = scalar_lea.vmem %s1, %s655
        %p657 = pneg %p91
        %p658 = pneg %p88
        %p659 = pneg %p112
        %p660 = pneg %p109
        %p661 = pneg %p133
        %p662 = pneg %p130
        %p663 = scmp.lt.s32.totalorder %s37, 1
        %s664 = scalar_select %p663, %s37, 1
        %s665 = smul.addr %s664, 4
        %s666 = smul.addr %s665, 4
        %s667 = scalar_lea.vmem %s4, %s666
        %p668 = pneg %p159
        %p669 = pneg %p156
        %p670 = scmp.lt.s32.totalorder %s37, 1
        %s671 = scalar_select %p670, %s37, 1
        %s672 = scalar_lea.vmem %s5, %s671
        %p673 = pneg %p185
        %p674 = pneg %p182
        %p675 = scmp.lt.s32.totalorder %s37, 1
        %s676 = scalar_select %p675, %s37, 1
        %s677 = smul.addr %s676, 4
        %s678 = smul.addr %s677, 4
        %s679 = scalar_lea.vmem %s6, %s678
        %p680 = pneg %p211
        %p681 = pneg %p208
        %p682 = scmp.lt.s32.totalorder %s37, 1
        %s683 = scalar_select %p682, %s37, 1
        %s684 = scalar_lea.vmem %s7, %s683
        %p685 = pneg %p237
        %p686 = pneg %p234
        %p687 = scmp.lt.s32.totalorder %s37, 1
        %s688 = scalar_select %p687, %s37, 1
        %s689 = scalar_lea.vmem %s8, %s688
        %p690 = pneg %p263
        %p691 = pneg %p260
        %p692 = scmp.lt.s32.totalorder %s37, 1
        %s693 = scalar_select %p692, %s37, 1
        %s694 = scalar_lea.vmem %s9, %s693
        %p695 = pneg %p289
        %p696 = pneg %p286
        %p697 = scmp.lt.s32.totalorder %s37, 1
        %s698 = scalar_select %p697, %s37, 1
        %s699 = smul.addr %s698, 4
        %s700 = smul.addr %s699, 4
        %s701 = scalar_lea.vmem %s10, %s700
        %p702 = pneg %p315
        %p703 = pneg %p312
        %p704 = scmp.lt.s32.totalorder %s37, 1
        %s705 = scalar_select %p704, %s37, 1
        %s706 = scalar_lea.vmem %s11, %s705
        %p707 = pneg %p341
        %p708 = pneg %p338
        %p709 = scmp.lt.s32.totalorder %s37, 1
        %s710 = scalar_select %p709, %s37, 1
        %s711 = smul.addr %s710, 8
        %s712 = smul.addr %s711, 4
        %s713 = scalar_lea.vmem %s12, %s712
        %p714 = pneg %p367
        %p715 = pneg %p364
        %p716 = scmp.lt.s32.totalorder %s37, 1
        %s717 = scalar_select %p716, %s37, 1
        %s718 = scalar_lea.vmem %s13, %s717
        %p719 = pneg %p393
        %p720 = pneg %p390
        %p721 = scmp.lt.s32.totalorder %s37, 1
        %s722 = scalar_select %p721, %s37, 1
        %s723 = scalar_lea.vmem %s14, %s722
        %p724 = pneg %p419
        %p725 = pneg %p416
        %p726 = scmp.lt.s32.totalorder %s37, 1
        %s727 = scalar_select %p726, %s37, 1
        %s728 = scalar_lea.vmem %s15, %s727
        %p729 = pneg %p445
        %p730 = pneg %p442
        %p731 = pneg %p466
        %p732 = pneg %p463
        %p733 = pneg %p487
        %p734 = pneg %p484
        %p735 = pneg %p513
        %p736 = pneg %p510
        %p737 = scmp.lt.s32.totalorder %s36, 0
        %s738 = scalar_select %p737, %s36, 0
        %s739 = smul.addr %s738, 8
        %s740 = smul.addr %s739, 4
        %s741 = scalar_lea.vmem %s0, %s740
        %p742 = scmp.lt.s32.totalorder %s36, 0
        %s743 = scalar_select %p742, %s36, 0
        %s744 = smul.addr %s743, 8
        %s745 = scalar_lea.vmem %s1, %s744
        %p746 = scmp.lt.s32.totalorder %s37, 1
        %s747 = scalar_select %p746, %s37, 1
        %s748 = smul.addr %s747, 4
        %s749 = smul.addr %s748, 4
        %s750 = scalar_lea.vmem %s4, %s749
        %p751 = scmp.lt.s32.totalorder %s37, 1
        %s752 = scalar_select %p751, %s37, 1
        %s753 = scalar_lea.vmem %s5, %s752
        %p754 = scmp.lt.s32.totalorder %s37, 1
        %s755 = scalar_select %p754, %s37, 1
        %s756 = smul.addr %s755, 4
        %s757 = smul.addr %s756, 4
        %s758 = scalar_lea.vmem %s6, %s757
        %p759 = scmp.lt.s32.totalorder %s37, 1
        %s760 = scalar_select %p759, %s37, 1
        %s761 = scalar_lea.vmem %s7, %s760
        %p762 = scmp.lt.s32.totalorder %s37, 1
        %s763 = scalar_select %p762, %s37, 1
        %s764 = scalar_lea.vmem %s8, %s763
        %p765 = scmp.lt.s32.totalorder %s37, 1
        %s766 = scalar_select %p765, %s37, 1
        %s767 = scalar_lea.vmem %s9, %s766
        %p768 = scmp.lt.s32.totalorder %s37, 1
        %s769 = scalar_select %p768, %s37, 1
        %s770 = smul.addr %s769, 4
        %s771 = smul.addr %s770, 4
        %s772 = scalar_lea.vmem %s10, %s771
        %p773 = scmp.lt.s32.totalorder %s37, 1
        %s774 = scalar_select %p773, %s37, 1
        %s775 = scalar_lea.vmem %s11, %s774
        %p776 = scmp.lt.s32.totalorder %s37, 1
        %s777 = scalar_select %p776, %s37, 1
        %s778 = smul.addr %s777, 8
        %s779 = smul.addr %s778, 4
        %s780 = scalar_lea.vmem %s12, %s779
        %p781 = scmp.lt.s32.totalorder %s37, 1
        %s782 = scalar_select %p781, %s37, 1
        %s783 = scalar_lea.vmem %s13, %s782
        %p784 = scmp.lt.s32.totalorder %s37, 1
        %s785 = scalar_select %p784, %s37, 1
        %s786 = scalar_lea.vmem %s14, %s785
        %p787 = scmp.lt.s32.totalorder %s37, 1
        %s788 = scalar_select %p787, %s37, 1
        %s789 = scalar_lea.vmem %s15, %s788
        %p791 = scmp.eq.s32.totalorder %s37, 0
        // Predicated region
        $region93: #{tpu_custom_call.1} parent=91 // pred_check
          %p792 = pneg %p791
        $region94: #{tpu_custom_call.1} parent=91 // pred_check_branch
          %794 = sbr.rel (%p792) target = $region96
        $region95: #{tpu_custom_call.1} parent=91 // pred_region
          %v795 = vld [vmem:[%s741] sm:$0xf]
          %v796 = vld [vmem:[%s741 + $0x4] sm:$0xf]
          %v797 = vld [vmem:[%s741 + $0x8] sm:$0xf]
          %v798 = vld [vmem:[%s741 + $0xc] sm:$0xf]
          %v799 = vld [vmem:[%s741 + $0x10] sm:$0xf]
          %v800 = vld [vmem:[%s741 + $0x14] sm:$0xf]
          %v801 = vld [vmem:[%s741 + $0x18] sm:$0xf]
          %v802 = vld [vmem:[%s741 + $0x1c] sm:$0xf]
          %v803 = vunpack.c.l.bf16 %v795
          %v804 = vunpack.c.l.bf16 %v796
          %v805 = vunpack.c.l.bf16 %v797
          %v806 = vunpack.c.l.bf16 %v798
          %v807 = vunpack.c.l.bf16 %v799
          %v808 = vunpack.c.l.bf16 %v800
          %v809 = vunpack.c.l.bf16 %v801
          %v810 = vunpack.c.l.bf16 %v802
          %v811 = vld [vmem:[%s2] sm:$0x1]
          %v812 = vld [vmem:[%s3] sm:$0x1]
          %vm813 = vcmask 261120
          %v814 = vsel %vm813, %v803, 0.0
          %815 = vadd.xlane.f32.xlu0 %v814
          %v816 = vpop.xlane.xlu0 %815
          %v817 = vsel %vm813, %v804, 0.0
          %818 = vadd.xlane.f32.xlu0 %v817
          %v819 = vpop.xlane.xlu0 %818
          %v820 = vsel %vm813, %v805, 0.0
          %821 = vadd.xlane.f32.xlu0 %v820
          %v822 = vpop.xlane.xlu0 %821
          %v823 = vsel %vm813, %v806, 0.0
          %824 = vadd.xlane.f32.xlu0 %v823
          %v825 = vpop.xlane.xlu0 %824
          %v826 = vsel %vm813, %v807, 0.0
          %827 = vadd.xlane.f32.xlu0 %v826
          %v828 = vpop.xlane.xlu0 %827
          %v829 = vsel %vm813, %v808, 0.0
          %830 = vadd.xlane.f32.xlu0 %v829
          %v831 = vpop.xlane.xlu0 %830
          %v832 = vsel %vm813, %v809, 0.0
          %833 = vadd.xlane.f32.xlu0 %v832
          %v834 = vpop.xlane.xlu0 %833
          %v835 = vsel %vm813, %v810, 0.0
          %836 = vadd.xlane.f32.xlu0 %v835
          %v837 = vpop.xlane.xlu0 %836
          %v838 = vrcp.pop 32.0
          %v839 = vmul.f32 %v816, %v838
          %v840 = vmul.f32 %v819, %v838
          %v841 = vmul.f32 %v822, %v838
          %v842 = vmul.f32 %v825, %v838
          %v843 = vmul.f32 %v828, %v838
          %v844 = vmul.f32 %v831, %v838
          %v845 = vmul.f32 %v834, %v838
          %v846 = vmul.f32 %v837, %v838
          %v847 = vsub.f32 %v803, %v839
          %v848 = vsub.f32 %v804, %v840
          %v849 = vsub.f32 %v805, %v841
          %v850 = vsub.f32 %v806, %v842
          %v851 = vsub.f32 %v807, %v843
          %v852 = vsub.f32 %v808, %v844
          %v853 = vsub.f32 %v809, %v845
          %v854 = vsub.f32 %v810, %v846
          %v855 = vmul.f32 %v847, %v847
          %v856 = vmul.f32 %v848, %v848
          %v857 = vmul.f32 %v849, %v849
          %v858 = vmul.f32 %v850, %v850
          %v859 = vmul.f32 %v851, %v851
          %v860 = vmul.f32 %v852, %v852
          %v861 = vmul.f32 %v853, %v853
          %v862 = vmul.f32 %v854, %v854
          %v863 = vsel %vm813, %v855, 0.0
          %864 = vadd.xlane.f32.xlu0 %v863
          %v865 = vpop.xlane.xlu0 %864
          %v866 = vsel %vm813, %v856, 0.0
          %867 = vadd.xlane.f32.xlu0 %v866
          %v868 = vpop.xlane.xlu0 %867
          %v869 = vsel %vm813, %v857, 0.0
          %870 = vadd.xlane.f32.xlu0 %v869
          %v871 = vpop.xlane.xlu0 %870
          %v872 = vsel %vm813, %v858, 0.0
          %873 = vadd.xlane.f32.xlu0 %v872
          %v874 = vpop.xlane.xlu0 %873
          %v875 = vsel %vm813, %v859, 0.0
          %876 = vadd.xlane.f32.xlu0 %v875
          %v877 = vpop.xlane.xlu0 %876
          %v878 = vsel %vm813, %v860, 0.0
          %879 = vadd.xlane.f32.xlu0 %v878
          %v880 = vpop.xlane.xlu0 %879
          %v881 = vsel %vm813, %v861, 0.0
          %882 = vadd.xlane.f32.xlu0 %v881
          %v883 = vpop.xlane.xlu0 %882
          %v884 = vsel %vm813, %v862, 0.0
          %885 = vadd.xlane.f32.xlu0 %v884
          %v886 = vpop.xlane.xlu0 %885
          %v887 = vmul.f32 %v865, %v838
          %v888 = vmul.f32 %v868, %v838
          %v889 = vmul.f32 %v871, %v838
          %v890 = vmul.f32 %v874, %v838
          %v891 = vmul.f32 %v877, %v838
          %v892 = vmul.f32 %v880, %v838
          %v893 = vmul.f32 %v883, %v838
          %v894 = vmul.f32 %v886, %v838
          %v895 = vadd.f32 %v887, 1e-05
          %v896 = vadd.f32 %v888, 1e-05
          %v897 = vadd.f32 %v889, 1e-05
          %v898 = vadd.f32 %v890, 1e-05
          %v899 = vadd.f32 %v891, 1e-05
          %v900 = vadd.f32 %v892, 1e-05
          %v901 = vadd.f32 %v893, 1e-05
          %v902 = vadd.f32 %v894, 1e-05
          %v903 = vrsqrt.pop %v895
          %v904 = vrsqrt.pop %v896
          %v905 = vrsqrt.pop %v897
          %v906 = vrsqrt.pop %v898
          %v907 = vrsqrt.pop %v899
          %v908 = vrsqrt.pop %v900
          %v909 = vrsqrt.pop %v901
          %v910 = vrsqrt.pop %v902
          %v911 = vmul.f32 %v847, %v903
          %v912 = vmul.f32 %v848, %v904
          %v913 = vmul.f32 %v849, %v905
          %v914 = vmul.f32 %v850, %v906
          %v915 = vmul.f32 %v851, %v907
          %v916 = vmul.f32 %v852, %v908
          %v917 = vmul.f32 %v853, %v909
          %v918 = vmul.f32 %v854, %v910
          %v920 = vlaneseq
          %v921 = vshrl.u32 %v920, 7
          %v922 = vsub.s32 0, %v921
          %v923 = vrot.slane %v811, %v922
          %v925 = vmul.f32 %v911, %v923
          %v926 = vmul.f32 %v912, %v923
          %v927 = vmul.f32 %v913, %v923
          %v928 = vmul.f32 %v914, %v923
          %v929 = vmul.f32 %v915, %v923
          %v930 = vmul.f32 %v916, %v923
          %v931 = vmul.f32 %v917, %v923
          %v932 = vmul.f32 %v918, %v923
          %v934 = vlaneseq
          %v935 = vshrl.u32 %v934, 7
          %v936 = vsub.s32 0, %v935
          %v937 = vrot.slane %v812, %v936
          %v939 = vadd.f32 %v925, %v937
          %v940 = vadd.f32 %v926, %v937
          %v941 = vadd.f32 %v927, %v937
          %v942 = vadd.f32 %v928, %v937
          %v943 = vadd.f32 %v929, %v937
          %v944 = vadd.f32 %v930, %v937
          %v945 = vadd.f32 %v931, %v937
          %v946 = vadd.f32 %v932, %v937
          %947 = vst.msk [vmem:[#allocation2] sm:$0xff] %vm813, %v939
          %948 = vst.msk [vmem:[#allocation2 + $0x8] sm:$0xff] %vm813, %v940
          %949 = vst.msk [vmem:[#allocation2 + $0x10] sm:$0xff] %vm813, %v941
          %950 = vst.msk [vmem:[#allocation2 + $0x18] sm:$0xff] %vm813, %v942
          %951 = vst.msk [vmem:[#allocation2 + $0x20] sm:$0xff] %vm813, %v943
          %952 = vst.msk [vmem:[#allocation2 + $0x28] sm:$0xff] %vm813, %v944
          %953 = vst.msk [vmem:[#allocation2 + $0x30] sm:$0xff] %vm813, %v945
          %954 = vst.msk [vmem:[#allocation2 + $0x38] sm:$0xff] %vm813, %v946
        $region96: #{tpu_custom_call.1} parent=91 // pred_fallthru
          _
        %v955 = vld [vmem:[#allocation2] sm:$0xff]
        %v956 = vld [vmem:[#allocation2 + $0x8] sm:$0xff]
        %v957 = vld [vmem:[#allocation2 + $0x10] sm:$0xff]
        %v958 = vld [vmem:[#allocation2 + $0x18] sm:$0xff]
        %v959 = vld [vmem:[#allocation2 + $0x20] sm:$0xff]
        %v960 = vld [vmem:[#allocation2 + $0x28] sm:$0xff]
        %v961 = vld [vmem:[#allocation2 + $0x30] sm:$0xff]
        %v962 = vld [vmem:[#allocation2 + $0x38] sm:$0xff]
        %v963 = vld [vmem:[%s745] sm:$0xff]
        %v965 = vcombine.high %v963, %v963
        %v967 = vunpack.c.l.s4 1966171168
        %v968 = vunpack.c.0.s8 %v967
        %v969 = vlaneseq
        %v970 = vshrl.u32 %v969, 7
        %v971 = vsub.s32 %v968, %v970
        %v972 = vrot.slane %v963, %v971
        %v974 = vunpack.c.l.s4 1966171168
        %v975 = vunpack.c.0.s8 %v974
        %v976 = vlaneseq
        %v977 = vshrl.u32 %v976, 7
        %v978 = vsub.s32 %v975, %v977
        %v979 = vrot.slane %v965, %v978
        %v980 = vcombine.high %v972, %v972
        %v981 = vcombine.high %v979, %v979
        %v983 = vunpack.c.l.s4 1966171168
        %v984 = vunpack.c.0.s8 %v983
        %v985 = vlaneseq
        %v986 = vshrl.u32 %v985, 7
        %v987 = vsub.s32 %v984, %v986
        %v988 = vrot.slane %v972, %v987
        %v990 = vunpack.c.l.s4 1966171168
        %v991 = vunpack.c.0.s8 %v990
        %v992 = vlaneseq
        %v993 = vshrl.u32 %v992, 7
        %v994 = vsub.s32 %v991, %v993
        %v995 = vrot.slane %v979, %v994
        %v997 = vunpack.c.l.s4 1966171168
        %v998 = vunpack.c.0.s8 %v997
        %v999 = vlaneseq
        %v1000 = vshrl.u32 %v999, 7
        %v1001 = vsub.s32 %v998, %v1000
        %v1002 = vrot.slane %v980, %v1001
        %v1004 = vunpack.c.l.s4 1966171168
        %v1005 = vunpack.c.0.s8 %v1004
        %v1006 = vlaneseq
        %v1007 = vshrl.u32 %v1006, 7
        %v1008 = vsub.s32 %v1005, %v1007
        %v1009 = vrot.slane %v981, %v1008
        %v1010 = vcombine.high %v988, %v988
        %v1011 = vcombine.high %v995, %v995
        %v1012 = vcombine.high %v1002, %v1002
        %v1013 = vcombine.high %v1009, %v1009
        %v1014 = vpack.c.bf16 %v956, %v955
        %v1015 = vpack.c.bf16 %v958, %v957
        %v1016 = vpack.c.bf16 %v960, %v959
        %v1017 = vpack.c.bf16 %v962, %v961
        %v1018 = vld [vmem:[%s750] sm:$0xf]
        %v1019 = vld [vmem:[%s750 + $0x4] sm:$0xf]
        %v1020 = vld [vmem:[%s750 + $0x8] sm:$0xf]
        %v1021 = vld [vmem:[%s750 + $0xc] sm:$0xf]
        %v1022 = vld [vmem:[%s753] sm:$0x1]
        %v1024 = vlaneseq
        %v1025 = vshrl.u32 %v1024, 7
        %v1026 = vsub.s32 0, %v1025
        %v1027 = vrot.slane %v1022, %v1026
        %v1033 = vunpack.c.l.b16 %v1018
        %v1034 = vunpack.c.l.b16 %v1019
        %v1035 = vunpack.c.l.b16 %v1020
        %v1036 = vunpack.c.l.b16 %v1021
        %v1037 = vpack.c.b16 %v1034, %v1033
        %v1038 = vpack.c.b16 %v1036, %v1035
        %vm1041 = vcmask 261120
        %v1043 = vsel %vm1041, %v1014, 0
        %v1046 = vsel %vm1041, %v1015, 0
        %v1049 = vsel %vm1041, %v1016, 0
        %v1052 = vsel %vm1041, %v1017, 0
        %1054 = vmatprep.subr.bf16.mxu0 0
        %1055 = vmatpush1.bf16.msra.mxu0 0
        %1056 = vmatprep.subr.bf16.mxu0 0
        %1057 = vmatpush1.bf16.msra.mxu0 0
        %1058 = vmatprep.subr.bf16.mxu0 0
        %1059 = vmatpush1.bf16.msra.mxu0 0
        %1060 = vmatprep.subr.bf16.mxu0 0
        %1061 = vmatpush1.bf16.msra.mxu0 0
        %1062 = vmatprep.subr.bf16.mxu0 0
        %1063 = vmatpush1.bf16.msra.mxu0 0
        %1064 = vmatprep.subr.bf16.mxu0 0
        %1065 = vmatpush1.bf16.msra.mxu0 0
        %1066 = vmatprep.subr.bf16.mxu0 0
        %1067 = vmatpush1.bf16.msra.mxu0 %v1038
        %1068 = vmatprep.subr.bf16.mxu0 0
        %1069 = vmatpush1.bf16.msra.mxu0 %v1037
        %1070 = vmatprep.subr.bf16.mxu0 0
        %1071 = vmatpush2.bf16.msra.mxu0 0
        %1072 = vmatprep.subr.bf16.mxu0 0
        %1073 = vmatpush2.bf16.msra.mxu0 0
        %1074 = vmatprep.subr.bf16.mxu0 0
        %1075 = vmatpush2.bf16.msra.mxu0 0
        %1076 = vmatprep.subr.bf16.mxu0 0
        %1077 = vmatpush2.bf16.msra.mxu0 0
        %1078 = vmatprep.subr.bf16.mxu0 0
        %1079 = vmatpush2.bf16.msra.mxu0 0
        %1080 = vmatprep.subr.bf16.mxu0 0
        %1081 = vmatpush2.bf16.msra.mxu0 0
        %1082 = vmatprep.subr.bf16.mxu0 0
        %1083 = vmatpush2.bf16.msra.mxu0 0
        %1084 = vmatprep.subr.bf16.mxu0 0
        %1085 = vmatpush2.bf16.msra.mxu0 0
        %1086 = vmatprep.mubr.bf16.mxu0 0
        %1087 = vmatmul.mubr.bf16.gmra.mxu0 %v1043
        %v1088 = vpop.f32.mrf.mxu0
        %v1089 = vadd.f32 %v1027, %v1088
        %v1090 = vpop.f32.mrf.mxu0
        %v1091 = vpop.f32.mrf.mxu0
        %v1092 = vadd.f32 %v1027, %v1091
        %v1093 = vpop.f32.mrf.mxu0
        %1094 = vmatprep.mubr.bf16.mxu0 0
        %1095 = vmatmul.mubr.bf16.gmra.mxu0 %v1046
        %v1096 = vpop.f32.mrf.mxu0
        %v1097 = vadd.f32 %v1027, %v1096
        %v1098 = vpop.f32.mrf.mxu0
        %v1099 = vpop.f32.mrf.mxu0
        %v1100 = vadd.f32 %v1027, %v1099
        %v1101 = vpop.f32.mrf.mxu0
        %1102 = vmatprep.mubr.bf16.mxu0 0
        %1103 = vmatmul.mubr.bf16.gmra.mxu0 %v1049
        %v1104 = vpop.f32.mrf.mxu0
        %v1105 = vadd.f32 %v1027, %v1104
        %v1106 = vpop.f32.mrf.mxu0
        %v1107 = vpop.f32.mrf.mxu0
        %v1108 = vadd.f32 %v1027, %v1107
        %v1109 = vpop.f32.mrf.mxu0
        %1110 = vmatprep.mubr.bf16.mxu0 0
        %1111 = vmatmul.mubr.bf16.gmra.mxu0 %v1052
        %v1112 = vpop.f32.mrf.mxu0
        %v1113 = vadd.f32 %v1027, %v1112
        %v1114 = vpop.f32.mrf.mxu0
        %v1115 = vpop.f32.mrf.mxu0
        %v1116 = vadd.f32 %v1027, %v1115
        %v1117 = vpop.f32.mrf.mxu0
        %1118 = vdwg.mxu0
        %v1119 = vpack.c.bf16 %v1092, %v1089
        %v1120 = vpack.c.bf16 %v1100, %v1097
        %v1121 = vpack.c.bf16 %v1108, %v1105
        %v1122 = vpack.c.bf16 %v1116, %v1113
        %v1127 = vunpack.c.l.b16 %v1119
        %v1128 = vunpack.c.h.b16 %v1119
        %v1129 = vunpack.c.l.b16 %v1120
        %v1130 = vunpack.c.h.b16 %v1120
        %v1131 = vunpack.c.l.b16 %v1121
        %v1132 = vunpack.c.h.b16 %v1121
        %v1133 = vunpack.c.l.b16 %v1122
        %v1134 = vunpack.c.h.b16 %v1122
        %v1135 = vpack.c.b16 %v1127, %v1127
        %v1136 = vpack.c.b16 %v1128, %v1128
        %v1137 = vpack.c.b16 %v1129, %v1129
        %v1138 = vpack.c.b16 %v1130, %v1130
        %v1139 = vpack.c.b16 %v1131, %v1131
        %v1140 = vpack.c.b16 %v1132, %v1132
        %v1141 = vpack.c.b16 %v1133, %v1133
        %v1142 = vpack.c.b16 %v1134, %v1134
        %1143 = vrot.lane.b32.xlu0 %v1135, 96
        %v1144 = vpop.permute.xlu0 %1143
        %vm1145 = vcmask 64512
        %v1147 = vsel %vm1145, %v1135, 0
        %v1150 = vsel %vm1145, %v1144, 0
        %1152 = vmatprep.subr.bf16.mxu0 0
        %1153 = vmatpush1.bf16.xpose.msra.mxu0 0
        %1154 = vmatprep.subr.bf16.mxu0 0
        %1155 = vmatpush1.bf16.xpose.msra.mxu0 0
        %1156 = vmatprep.subr.bf16.mxu0 0
        %1157 = vmatpush1.bf16.xpose.msra.mxu0 0
        %1158 = vmatprep.subr.bf16.mxu0 0
        %1159 = vmatpush1.bf16.xpose.msra.mxu0 0
        %1160 = vmatprep.subr.bf16.mxu0 0
        %1161 = vmatpush1.bf16.xpose.msra.mxu0 0
        %1162 = vmatprep.subr.bf16.mxu0 0
        %1163 = vmatpush1.bf16.xpose.msra.mxu0 0
        %1164 = vmatprep.subr.bf16.mxu0 0
        %1165 = vmatpush1.bf16.xpose.msra.mxu0 0
        %1166 = vmatprep.subr.bf16.mxu0 0
        %1167 = vmatpush1.bf16.xpose.msra.mxu0 %v1150
        %1168 = vmatprep.subr.bf16.mxu0 0
        %1169 = vmatpush2.bf16.xpose.msra.mxu0 0
        %1170 = vmatprep.subr.bf16.mxu0 0
        %1171 = vmatpush2.bf16.xpose.msra.mxu0 0
        %1172 = vmatprep.subr.bf16.mxu0 0
        %1173 = vmatpush2.bf16.xpose.msra.mxu0 0
        %1174 = vmatprep.subr.bf16.mxu0 0
        %1175 = vmatpush2.bf16.xpose.msra.mxu0 0
        %1176 = vmatprep.subr.bf16.mxu0 0
        %1177 = vmatpush2.bf16.xpose.msra.mxu0 0
        %1178 = vmatprep.subr.bf16.mxu0 0
        %1179 = vmatpush2.bf16.xpose.msra.mxu0 0
        %1180 = vmatprep.subr.bf16.mxu0 0
        %1181 = vmatpush2.bf16.xpose.msra.mxu0 0
        %1182 = vmatprep.subr.bf16.mxu0 0
        %1183 = vmatpush2.bf16.xpose.msra.mxu0 0
        %1184 = vmatprep.mubr.bf16.mxu0 0
        %1185 = vmatmul.mubr.bf16.gmra.mxu0 %v1147
        %v1186 = vpop.f32.mrf.mxu0
        %v1187 = vadd.f32 0.0, %v1186
        %v1188 = vpop.f32.mrf.mxu0
        %v1189 = vpop.f32.mrf.mxu0
        %v1190 = vpop.f32.mrf.mxu0
        %1191 = vdwg.mxu0
        %1192 = vrot.lane.b32.xlu0 %v1136, 96
        %v1193 = vpop.permute.xlu0 %1192
        %v1195 = vsel %vm1145, %v1136, 0
        %v1198 = vsel %vm1145, %v1193, 0
        %1200 = vmatprep.subr.bf16.mxu0 0
        %1201 = vmatpush1.bf16.xpose.msra.mxu0 0
        %1202 = vmatprep.subr.bf16.mxu0 0
        %1203 = vmatpush1.bf16.xpose.msra.mxu0 0
        %1204 = vmatprep.subr.bf16.mxu0 0
        %1205 = vmatpush1.bf16.xpose.msra.mxu0 0
        %1206 = vmatprep.subr.bf16.mxu0 0
        %1207 = vmatpush1.bf16.xpose.msra.mxu0 0
        %1208 = vmatprep.subr.bf16.mxu0 0
        %1209 = vmatpush1.bf16.xpose.msra.mxu0 0
        %1210 = vmatprep.subr.bf16.mxu0 0
        %1211 = vmatpush1.bf16.xpose.msra.mxu0 0
        %1212 = vmatprep.subr.bf16.mxu0 0
        %1213 = vmatpush1.bf16.xpose.msra.mxu0 0
        %1214 = vmatprep.subr.bf16.mxu0 0
        %1215 = vmatpush1.bf16.xpose.msra.mxu0 %v1198
        %1216 = vmatprep.subr.bf16.mxu0 0
        %1217 = vmatpush2.bf16.xpose.msra.mxu0 0
        %1218 = vmatprep.subr.bf16.mxu0 0
        %1219 = vmatpush2.bf16.xpose.msra.mxu0 0
        %1220 = vmatprep.subr.bf16.mxu0 0
        %1221 = vmatpush2.bf16.xpose.msra.mxu0 0
        %1222 = vmatprep.subr.bf16.mxu0 0
        %1223 = vmatpush2.bf16.xpose.msra.mxu0 0
        %1224 = vmatprep.subr.bf16.mxu0 0
        %1225 = vmatpush2.bf16.xpose.msra.mxu0 0
        %1226 = vmatprep.subr.bf16.mxu0 0
        %1227 = vmatpush2.bf16.xpose.msra.mxu0 0
        %1228 = vmatprep.subr.bf16.mxu0 0
        %1229 = vmatpush2.bf16.xpose.msra.mxu0 0
        %1230 = vmatprep.subr.bf16.mxu0 0
        %1231 = vmatpush2.bf16.xpose.msra.mxu0 0
        %1232 = vmatprep.mubr.bf16.mxu0 0
        %1233 = vmatmul.mubr.bf16.gmra.mxu0 %v1195
        %v1234 = vpop.f32.mrf.mxu0
        %v1235 = vadd.f32 0.0, %v1234
        %v1236 = vpop.f32.mrf.mxu0
        %v1237 = vpop.f32.mrf.mxu0
        %v1238 = vpop.f32.mrf.mxu0
        %1239 = vdwg.mxu0
        %1240 = vrot.lane.b32.xlu0 %v1137, 96
        %v1241 = vpop.permute.xlu0 %1240
        %v1243 = vsel %vm1145, %v1137, 0
        %v1246 = vsel %vm1145, %v1241, 0
        %1248 = vmatprep.subr.bf16.mxu0 0
        %1249 = vmatpush1.bf16.xpose.msra.mxu0 0
        %1250 = vmatprep.subr.bf16.mxu0 0
        %1251 = vmatpush1.bf16.xpose.msra.mxu0 0
        %1252 = vmatprep.subr.bf16.mxu0 0
        %1253 = vmatpush1.bf16.xpose.msra.mxu0 0
        %1254 = vmatprep.subr.bf16.mxu0 0
        %1255 = vmatpush1.bf16.xpose.msra.mxu0 0
        %1256 = vmatprep.subr.bf16.mxu0 0
        %1257 = vmatpush1.bf16.xpose.msra.mxu0 0
        %1258 = vmatprep.subr.bf16.mxu0 0
        %1259 = vmatpush1.bf16.xpose.msra.mxu0 0
        %1260 = vmatprep.subr.bf16.mxu0 0
        %1261 = vmatpush1.bf16.xpose.msra.mxu0 0
        %1262 = vmatprep.subr.bf16.mxu0 0
        %1263 = vmatpush1.bf16.xpose.msra.mxu0 %v1246
        %1264 = vmatprep.subr.bf16.mxu0 0
        %1265 = vmatpush2.bf16.xpose.msra.mxu0 0
        %1266 = vmatprep.subr.bf16.mxu0 0
        %1267 = vmatpush2.bf16.xpose.msra.mxu0 0
        %1268 = vmatprep.subr.bf16.mxu0 0
        %1269 = vmatpush2.bf16.xpose.msra.mxu0 0
        %1270 = vmatprep.subr.bf16.mxu0 0
        %1271 = vmatpush2.bf16.xpose.msra.mxu0 0
        %1272 = vmatprep.subr.bf16.mxu0 0
        %1273 = vmatpush2.bf16.xpose.msra.mxu0 0
        %1274 = vmatprep.subr.bf16.mxu0 0
        %1275 = vmatpush2.bf16.xpose.msra.mxu0 0
        %1276 = vmatprep.subr.bf16.mxu0 0
        %1277 = vmatpush2.bf16.xpose.msra.mxu0 0
        %1278 = vmatprep.subr.bf16.mxu0 0
        %1279 = vmatpush2.bf16.xpose.msra.mxu0 0
        %1280 = vmatprep.mubr.bf16.mxu0 0
        %1281 = vmatmul.mubr.bf16.gmra.mxu0 %v1243
        %v1282 = vpop.f32.mrf.mxu0
        %v1283 = vadd.f32 0.0, %v1282
        %v1284 = vpop.f32.mrf.mxu0
        %v1285 = vpop.f32.mrf.mxu0
        %v1286 = vpop.f32.mrf.mxu0
        %1287 = vdwg.mxu0
        %1288 = vrot.lane.b32.xlu0 %v1138, 96
        %v1289 = vpop.permute.xlu0 %1288
        %v1291 = vsel %vm1145, %v1138, 0
        %v1294 = vsel %vm1145, %v1289, 0
        %1296 = vmatprep.subr.bf16.mxu0 0
        %1297 = vmatpush1.bf16.xpose.msra.mxu0 0
        %1298 = vmatprep.subr.bf16.mxu0 0
        %1299 = vmatpush1.bf16.xpose.msra.mxu0 0
        %1300 = vmatprep.subr.bf16.mxu0 0
        %1301 = vmatpush1.bf16.xpose.msra.mxu0 0
        %1302 = vmatprep.subr.bf16.mxu0 0
        %1303 = vmatpush1.bf16.xpose.msra.mxu0 0
        %1304 = vmatprep.subr.bf16.mxu0 0
        %1305 = vmatpush1.bf16.xpose.msra.mxu0 0
        %1306 = vmatprep.subr.bf16.mxu0 0
        %1307 = vmatpush1.bf16.xpose.msra.mxu0 0
        %1308 = vmatprep.subr.bf16.mxu0 0
        %1309 = vmatpush1.bf16.xpose.msra.mxu0 0
        %1310 = vmatprep.subr.bf16.mxu0 0
        %1311 = vmatpush1.bf16.xpose.msra.mxu0 %v1294
        %1312 = vmatprep.subr.bf16.mxu0 0
        %1313 = vmatpush2.bf16.xpose.msra.mxu0 0
        %1314 = vmatprep.subr.bf16.mxu0 0
        %1315 = vmatpush2.bf16.xpose.msra.mxu0 0
        %1316 = vmatprep.subr.bf16.mxu0 0
        %1317 = vmatpush2.bf16.xpose.msra.mxu0 0
        %1318 = vmatprep.subr.bf16.mxu0 0
        %1319 = vmatpush2.bf16.xpose.msra.mxu0 0
        %1320 = vmatprep.subr.bf16.mxu0 0
        %1321 = vmatpush2.bf16.xpose.msra.mxu0 0
        %1322 = vmatprep.subr.bf16.mxu0 0
        %1323 = vmatpush2.bf16.xpose.msra.mxu0 0
        %1324 = vmatprep.subr.bf16.mxu0 0
        %1325 = vmatpush2.bf16.xpose.msra.mxu0 0
        %1326 = vmatprep.subr.bf16.mxu0 0
        %1327 = vmatpush2.bf16.xpose.msra.mxu0 0
        %1328 = vmatprep.mubr.bf16.mxu0 0
        %1329 = vmatmul.mubr.bf16.gmra.mxu0 %v1291
        %v1330 = vpop.f32.mrf.mxu0
        %v1331 = vadd.f32 0.0, %v1330
        %v1332 = vpop.f32.mrf.mxu0
        %v1333 = vpop.f32.mrf.mxu0
        %v1334 = vpop.f32.mrf.mxu0
        %1335 = vdwg.mxu0
        %1336 = vrot.lane.b32.xlu0 %v1139, 96
        %v1337 = vpop.permute.xlu0 %1336
        %v1339 = vsel %vm1145, %v1139, 0
        %v1342 = vsel %vm1145, %v1337, 0
        %1344 = vmatprep.subr.bf16.mxu0 0
        %1345 = vmatpush1.bf16.xpose.msra.mxu0 0
        %1346 = vmatprep.subr.bf16.mxu0 0
        %1347 = vmatpush1.bf16.xpose.msra.mxu0 0
        %1348 = vmatprep.subr.bf16.mxu0 0
        %1349 = vmatpush1.bf16.xpose.msra.mxu0 0
        %1350 = vmatprep.subr.bf16.mxu0 0
        %1351 = vmatpush1.bf16.xpose.msra.mxu0 0
        %1352 = vmatprep.subr.bf16.mxu0 0
        %1353 = vmatpush1.bf16.xpose.msra.mxu0 0
        %1354 = vmatprep.subr.bf16.mxu0 0
        %1355 = vmatpush1.bf16.xpose.msra.mxu0 0
        %1356 = vmatprep.subr.bf16.mxu0 0
        %1357 = vmatpush1.bf16.xpose.msra.mxu0 0
        %1358 = vmatprep.subr.bf16.mxu0 0
        %1359 = vmatpush1.bf16.xpose.msra.mxu0 %v1342
        %1360 = vmatprep.subr.bf16.mxu0 0
        %1361 = vmatpush2.bf16.xpose.msra.mxu0 0
        %1362 = vmatprep.subr.bf16.mxu0 0
        %1363 = vmatpush2.bf16.xpose.msra.mxu0 0
        %1364 = vmatprep.subr.bf16.mxu0 0
        %1365 = vmatpush2.bf16.xpose.msra.mxu0 0
        %1366 = vmatprep.subr.bf16.mxu0 0
        %1367 = vmatpush2.bf16.xpose.msra.mxu0 0
        %1368 = vmatprep.subr.bf16.mxu0 0
        %1369 = vmatpush2.bf16.xpose.msra.mxu0 0
        %1370 = vmatprep.subr.bf16.mxu0 0
        %1371 = vmatpush2.bf16.xpose.msra.mxu0 0
        %1372 = vmatprep.subr.bf16.mxu0 0
        %1373 = vmatpush2.bf16.xpose.msra.mxu0 0
        %1374 = vmatprep.subr.bf16.mxu0 0
        %1375 = vmatpush2.bf16.xpose.msra.mxu0 0
        %1376 = vmatprep.mubr.bf16.mxu0 0
        %1377 = vmatmul.mubr.bf16.gmra.mxu0 %v1339
        %v1378 = vpop.f32.mrf.mxu0
        %v1379 = vadd.f32 0.0, %v1378
        %v1380 = vpop.f32.mrf.mxu0
        %v1381 = vpop.f32.mrf.mxu0
        %v1382 = vpop.f32.mrf.mxu0
        %1383 = vdwg.mxu0
        %1384 = vrot.lane.b32.xlu0 %v1140, 96
        %v1385 = vpop.permute.xlu0 %1384
        %v1387 = vsel %vm1145, %v1140, 0
        %v1390 = vsel %vm1145, %v1385, 0
        %1392 = vmatprep.subr.bf16.mxu0 0
        %1393 = vmatpush1.bf16.xpose.msra.mxu0 0
        %1394 = vmatprep.subr.bf16.mxu0 0
        %1395 = vmatpush1.bf16.xpose.msra.mxu0 0
        %1396 = vmatprep.subr.bf16.mxu0 0
        %1397 = vmatpush1.bf16.xpose.msra.mxu0 0
        %1398 = vmatprep.subr.bf16.mxu0 0
        %1399 = vmatpush1.bf16.xpose.msra.mxu0 0
        %1400 = vmatprep.subr.bf16.mxu0 0
        %1401 = vmatpush1.bf16.xpose.msra.mxu0 0
        %1402 = vmatprep.subr.bf16.mxu0 0
        %1403 = vmatpush1.bf16.xpose.msra.mxu0 0
        %1404 = vmatprep.subr.bf16.mxu0 0
        %1405 = vmatpush1.bf16.xpose.msra.mxu0 0
        %1406 = vmatprep.subr.bf16.mxu0 0
        %1407 = vmatpush1.bf16.xpose.msra.mxu0 %v1390
        %1408 = vmatprep.subr.bf16.mxu0 0
        %1409 = vmatpush2.bf16.xpose.msra.mxu0 0
        %1410 = vmatprep.subr.bf16.mxu0 0
        %1411 = vmatpush2.bf16.xpose.msra.mxu0 0
        %1412 = vmatprep.subr.bf16.mxu0 0
        %1413 = vmatpush2.bf16.xpose.msra.mxu0 0
        %1414 = vmatprep.subr.bf16.mxu0 0
        %1415 = vmatpush2.bf16.xpose.msra.mxu0 0
        %1416 = vmatprep.subr.bf16.mxu0 0
        %1417 = vmatpush2.bf16.xpose.msra.mxu0 0
        %1418 = vmatprep.subr.bf16.mxu0 0
        %1419 = vmatpush2.bf16.xpose.msra.mxu0 0
        %1420 = vmatprep.subr.bf16.mxu0 0
        %1421 = vmatpush2.bf16.xpose.msra.mxu0 0
        %1422 = vmatprep.subr.bf16.mxu0 0
        %1423 = vmatpush2.bf16.xpose.msra.mxu0 0
        %1424 = vmatprep.mubr.bf16.mxu0 0
        %1425 = vmatmul.mubr.bf16.gmra.mxu0 %v1387
        %v1426 = vpop.f32.mrf.mxu0
        %v1427 = vadd.f32 0.0, %v1426
        %v1428 = vpop.f32.mrf.mxu0
        %v1429 = vpop.f32.mrf.mxu0
        %v1430 = vpop.f32.mrf.mxu0
        %1431 = vdwg.mxu0
        %1432 = vrot.lane.b32.xlu0 %v1141, 96
        %v1433 = vpop.permute.xlu0 %1432
        %v1435 = vsel %vm1145, %v1141, 0
        %v1438 = vsel %vm1145, %v1433, 0
        %1440 = vmatprep.subr.bf16.mxu0 0
        %1441 = vmatpush1.bf16.xpose.msra.mxu0 0
        %1442 = vmatprep.subr.bf16.mxu0 0
        %1443 = vmatpush1.bf16.xpose.msra.mxu0 0
        %1444 = vmatprep.subr.bf16.mxu0 0
        %1445 = vmatpush1.bf16.xpose.msra.mxu0 0
        %1446 = vmatprep.subr.bf16.mxu0 0
        %1447 = vmatpush1.bf16.xpose.msra.mxu0 0
        %1448 = vmatprep.subr.bf16.mxu0 0
        %1449 = vmatpush1.bf16.xpose.msra.mxu0 0
        %1450 = vmatprep.subr.bf16.mxu0 0
        %1451 = vmatpush1.bf16.xpose.msra.mxu0 0
        %1452 = vmatprep.subr.bf16.mxu0 0
        %1453 = vmatpush1.bf16.xpose.msra.mxu0 0
        %1454 = vmatprep.subr.bf16.mxu0 0
        %1455 = vmatpush1.bf16.xpose.msra.mxu0 %v1438
        %1456 = vmatprep.subr.bf16.mxu0 0
        %1457 = vmatpush2.bf16.xpose.msra.mxu0 0
        %1458 = vmatprep.subr.bf16.mxu0 0
        %1459 = vmatpush2.bf16.xpose.msra.mxu0 0
        %1460 = vmatprep.subr.bf16.mxu0 0
        %1461 = vmatpush2.bf16.xpose.msra.mxu0 0
        %1462 = vmatprep.subr.bf16.mxu0 0
        %1463 = vmatpush2.bf16.xpose.msra.mxu0 0
        %1464 = vmatprep.subr.bf16.mxu0 0
        %1465 = vmatpush2.bf16.xpose.msra.mxu0 0
        %1466 = vmatprep.subr.bf16.mxu0 0
        %1467 = vmatpush2.bf16.xpose.msra.mxu0 0
        %1468 = vmatprep.subr.bf16.mxu0 0
        %1469 = vmatpush2.bf16.xpose.msra.mxu0 0
        %1470 = vmatprep.subr.bf16.mxu0 0
        %1471 = vmatpush2.bf16.xpose.msra.mxu0 0
        %1472 = vmatprep.mubr.bf16.mxu0 0
        %1473 = vmatmul.mubr.bf16.gmra.mxu0 %v1435
        %v1474 = vpop.f32.mrf.mxu0
        %v1475 = vadd.f32 0.0, %v1474
        %v1476 = vpop.f32.mrf.mxu0
        %v1477 = vpop.f32.mrf.mxu0
        %v1478 = vpop.f32.mrf.mxu0
        %1479 = vdwg.mxu0
        %1480 = vrot.lane.b32.xlu0 %v1142, 96
        %v1481 = vpop.permute.xlu0 %1480
        %v1483 = vsel %vm1145, %v1142, 0
        %v1486 = vsel %vm1145, %v1481, 0
        %1488 = vmatprep.subr.bf16.mxu0 0
        %1489 = vmatpush1.bf16.xpose.msra.mxu0 0
        %1490 = vmatprep.subr.bf16.mxu0 0
        %1491 = vmatpush1.bf16.xpose.msra.mxu0 0
        %1492 = vmatprep.subr.bf16.mxu0 0
        %1493 = vmatpush1.bf16.xpose.msra.mxu0 0
        %1494 = vmatprep.subr.bf16.mxu0 0
        %1495 = vmatpush1.bf16.xpose.msra.mxu0 0
        %1496 = vmatprep.subr.bf16.mxu0 0
        %1497 = vmatpush1.bf16.xpose.msra.mxu0 0
        %1498 = vmatprep.subr.bf16.mxu0 0
        %1499 = vmatpush1.bf16.xpose.msra.mxu0 0
        %1500 = vmatprep.subr.bf16.mxu0 0
        %1501 = vmatpush1.bf16.xpose.msra.mxu0 0
        %1502 = vmatprep.subr.bf16.mxu0 0
        %1503 = vmatpush1.bf16.xpose.msra.mxu0 %v1486
        %1504 = vmatprep.subr.bf16.mxu0 0
        %1505 = vmatpush2.bf16.xpose.msra.mxu0 0
        %1506 = vmatprep.subr.bf16.mxu0 0
        %1507 = vmatpush2.bf16.xpose.msra.mxu0 0
        %1508 = vmatprep.subr.bf16.mxu0 0
        %1509 = vmatpush2.bf16.xpose.msra.mxu0 0
        %1510 = vmatprep.subr.bf16.mxu0 0
        %1511 = vmatpush2.bf16.xpose.msra.mxu0 0
        %1512 = vmatprep.subr.bf16.mxu0 0
        %1513 = vmatpush2.bf16.xpose.msra.mxu0 0
        %1514 = vmatprep.subr.bf16.mxu0 0
        %1515 = vmatpush2.bf16.xpose.msra.mxu0 0
        %1516 = vmatprep.subr.bf16.mxu0 0
        %1517 = vmatpush2.bf16.xpose.msra.mxu0 0
        %1518 = vmatprep.subr.bf16.mxu0 0
        %1519 = vmatpush2.bf16.xpose.msra.mxu0 0
        %1520 = vmatprep.mubr.bf16.mxu0 0
        %1521 = vmatmul.mubr.bf16.gmra.mxu0 %v1483
        %v1522 = vpop.f32.mrf.mxu0
        %v1523 = vadd.f32 0.0, %v1522
        %v1524 = vpop.f32.mrf.mxu0
        %v1525 = vpop.f32.mrf.mxu0
        %v1526 = vpop.f32.mrf.mxu0
        %1527 = vdwg.mxu0
        %v1528 = vmul.f32 %v1187, 0.35355338
        %v1529 = vmul.f32 %v1235, 0.35355338
        %v1530 = vmul.f32 %v1283, 0.35355338
        %v1531 = vmul.f32 %v1331, 0.35355338
        %v1532 = vmul.f32 %v1379, 0.35355338
        %v1533 = vmul.f32 %v1427, 0.35355338
        %v1534 = vmul.f32 %v1475, 0.35355338
        %v1535 = vmul.f32 %v1523, 0.35355338
        %v1536 = vlaneseq
        %v1537 = vshrl.u32 %v1536, 7
        %v1538 = vsub.s32 0, %v1537
        %v1539 = vrot.slane %v988, %v1538
        %v1540 = vlaneseq
        %v1541 = vshrl.u32 %v1540, 7
        %v1542 = vsub.s32 0, %v1541
        %v1543 = vrot.slane %v1002, %v1542
        %v1544 = vlaneseq
        %v1545 = vshrl.u32 %v1544, 7
        %v1546 = vsub.s32 0, %v1545
        %v1547 = vrot.slane %v1010, %v1546
        %v1548 = vlaneseq
        %v1549 = vshrl.u32 %v1548, 7
        %v1550 = vsub.s32 0, %v1549
        %v1551 = vrot.slane %v1012, %v1550
        %v1552 = vlaneseq
        %v1553 = vshrl.u32 %v1552, 7
        %v1554 = vsub.s32 0, %v1553
        %v1555 = vrot.slane %v995, %v1554
        %v1556 = vlaneseq
        %v1557 = vshrl.u32 %v1556, 7
        %v1558 = vsub.s32 0, %v1557
        %v1559 = vrot.slane %v1009, %v1558
        %v1560 = vlaneseq
        %v1561 = vshrl.u32 %v1560, 7
        %v1562 = vsub.s32 0, %v1561
        %v1563 = vrot.slane %v1011, %v1562
        %v1564 = vlaneseq
        %v1565 = vshrl.u32 %v1564, 7
        %v1566 = vsub.s32 0, %v1565
        %v1567 = vrot.slane %v1013, %v1566
        %v1576 = vadd.f32 %v1528, %v1539
        %v1577 = vadd.f32 %v1529, %v1543
        %v1578 = vadd.f32 %v1530, %v1547
        %v1579 = vadd.f32 %v1531, %v1551
        %v1580 = vadd.f32 %v1532, %v1555
        %v1581 = vadd.f32 %v1533, %v1559
        %v1582 = vadd.f32 %v1534, %v1563
        %v1583 = vadd.f32 %v1535, %v1567
        %v1584 = vsel %vm1145, %v1576, -inf
        %1585 = vmax.xlane.f32.xlu0 %v1584
        %v1586 = vpop.xlane.xlu0 %1585
        %v1587 = vsel %vm1145, %v1577, -inf
        %1588 = vmax.xlane.f32.xlu0 %v1587
        %v1589 = vpop.xlane.xlu0 %1588
        %v1590 = vsel %vm1145, %v1578, -inf
        %1591 = vmax.xlane.f32.xlu0 %v1590
        %v1592 = vpop.xlane.xlu0 %1591
        %v1593 = vsel %vm1145, %v1579, -inf
        %1594 = vmax.xlane.f32.xlu0 %v1593
        %v1595 = vpop.xlane.xlu0 %1594
        %v1596 = vsel %vm1145, %v1580, -inf
        %1597 = vmax.xlane.f32.xlu0 %v1596
        %v1598 = vpop.xlane.xlu0 %1597
        %v1599 = vsel %vm1145, %v1581, -inf
        %1600 = vmax.xlane.f32.xlu0 %v1599
        %v1601 = vpop.xlane.xlu0 %1600
        %v1602 = vsel %vm1145, %v1582, -inf
        %1603 = vmax.xlane.f32.xlu0 %v1602
        %v1604 = vpop.xlane.xlu0 %1603
        %v1605 = vsel %vm1145, %v1583, -inf
        %1606 = vmax.xlane.f32.xlu0 %v1605
        %v1607 = vpop.xlane.xlu0 %1606
        %v1608 = vsub.f32 %v1576, %v1586
        %v1609 = vsub.f32 %v1577, %v1589
        %v1610 = vsub.f32 %v1578, %v1592
        %v1611 = vsub.f32 %v1579, %v1595
        %v1612 = vsub.f32 %v1580, %v1598
        %v1613 = vsub.f32 %v1581, %v1601
        %v1614 = vsub.f32 %v1582, %v1604
        %v1615 = vsub.f32 %v1583, %v1607
        %v1616 = vmul.f32 %v1608, 1.442695
        %v1617 = vpow.pop %v1616
        %v1618 = vmul.f32 %v1609, 1.442695
        %v1619 = vpow.pop %v1618
        %v1620 = vmul.f32 %v1610, 1.442695
        %v1621 = vpow.pop %v1620
        %v1622 = vmul.f32 %v1611, 1.442695
        %v1623 = vpow.pop %v1622
        %v1624 = vmul.f32 %v1612, 1.442695
        %v1625 = vpow.pop %v1624
        %v1626 = vmul.f32 %v1613, 1.442695
        %v1627 = vpow.pop %v1626
        %v1628 = vmul.f32 %v1614, 1.442695
        %v1629 = vpow.pop %v1628
        %v1630 = vmul.f32 %v1615, 1.442695
        %v1631 = vpow.pop %v1630
        %v1632 = vsel %vm1145, %v1617, 0.0
        %1633 = vadd.xlane.f32.xlu0 %v1632
        %v1634 = vpop.xlane.xlu0 %1633
        %v1635 = vsel %vm1145, %v1619, 0.0
        %1636 = vadd.xlane.f32.xlu0 %v1635
        %v1637 = vpop.xlane.xlu0 %1636
        %v1638 = vsel %vm1145, %v1621, 0.0
        %1639 = vadd.xlane.f32.xlu0 %v1638
        %v1640 = vpop.xlane.xlu0 %1639
        %v1641 = vsel %vm1145, %v1623, 0.0
        %1642 = vadd.xlane.f32.xlu0 %v1641
        %v1643 = vpop.xlane.xlu0 %1642
        %v1644 = vsel %vm1145, %v1625, 0.0
        %1645 = vadd.xlane.f32.xlu0 %v1644
        %v1646 = vpop.xlane.xlu0 %1645
        %v1647 = vsel %vm1145, %v1627, 0.0
        %1648 = vadd.xlane.f32.xlu0 %v1647
        %v1649 = vpop.xlane.xlu0 %1648
        %v1650 = vsel %vm1145, %v1629, 0.0
        %1651 = vadd.xlane.f32.xlu0 %v1650
        %v1652 = vpop.xlane.xlu0 %1651
        %v1653 = vsel %vm1145, %v1631, 0.0
        %1654 = vadd.xlane.f32.xlu0 %v1653
        %v1655 = vpop.xlane.xlu0 %1654
        %v1656 = vrcp.pop %v1634
        %v1657 = vrcp.pop %v1637
        %v1658 = vrcp.pop %v1640
        %v1659 = vrcp.pop %v1643
        %v1660 = vrcp.pop %v1646
        %v1661 = vrcp.pop %v1649
        %v1662 = vrcp.pop %v1652
        %v1663 = vrcp.pop %v1655
        %v1664 = vmul.f32 %v1617, %v1656
        %v1665 = vmul.f32 %v1619, %v1657
        %v1666 = vmul.f32 %v1621, %v1658
        %v1667 = vmul.f32 %v1623, %v1659
        %v1668 = vmul.f32 %v1625, %v1660
        %v1669 = vmul.f32 %v1627, %v1661
        %v1670 = vmul.f32 %v1629, %v1662
        %v1671 = vmul.f32 %v1631, %v1663
        %v1672 = vpack.c.bf16 %v1664, %v1664
        %v1673 = vpack.c.bf16 %v1665, %v1665
        %v1674 = vpack.c.bf16 %v1666, %v1666
        %v1675 = vpack.c.bf16 %v1667, %v1667
        %v1676 = vpack.c.bf16 %v1668, %v1668
        %v1677 = vpack.c.bf16 %v1669, %v1669
        %v1678 = vpack.c.bf16 %v1670, %v1670
        %v1679 = vpack.c.bf16 %v1671, %v1671
        %1680 = vrot.lane.b32.xlu0 %v1135, 64
        %v1681 = vpop.permute.xlu0 %1680
        %v1683 = vsel %vm1145, %v1672, 0
        %vm1685 = vcmask 1043456
        %v1687 = vsel %vm1685, %v1681, 0
        %1689 = vmatprep.subr.bf16.mxu0 0
        %1690 = vmatpush1.bf16.msra.mxu0 0
        %1691 = vmatprep.subr.bf16.mxu0 0
        %1692 = vmatpush1.bf16.msra.mxu0 0
        %1693 = vmatprep.subr.bf16.mxu0 0
        %1694 = vmatpush1.bf16.msra.mxu0 0
        %1695 = vmatprep.subr.bf16.mxu0 0
        %1696 = vmatpush1.bf16.msra.mxu0 0
        %1697 = vmatprep.subr.bf16.mxu0 0
        %1698 = vmatpush1.bf16.msra.mxu0 0
        %1699 = vmatprep.subr.bf16.mxu0 0
        %1700 = vmatpush1.bf16.msra.mxu0 0
        %1701 = vmatprep.subr.bf16.mxu0 0
        %1702 = vmatpush1.bf16.msra.mxu0 0
        %1703 = vmatprep.subr.bf16.mxu0 0
        %1704 = vmatpush1.bf16.msra.mxu0 %v1687
        %1705 = vmatprep.subr.bf16.mxu0 0
        %1706 = vmatpush2.bf16.msra.mxu0 0
        %1707 = vmatprep.subr.bf16.mxu0 0
        %1708 = vmatpush2.bf16.msra.mxu0 0
        %1709 = vmatprep.subr.bf16.mxu0 0
        %1710 = vmatpush2.bf16.msra.mxu0 0
        %1711 = vmatprep.subr.bf16.mxu0 0
        %1712 = vmatpush2.bf16.msra.mxu0 0
        %1713 = vmatprep.subr.bf16.mxu0 0
        %1714 = vmatpush2.bf16.msra.mxu0 0
        %1715 = vmatprep.subr.bf16.mxu0 0
        %1716 = vmatpush2.bf16.msra.mxu0 0
        %1717 = vmatprep.subr.bf16.mxu0 0
        %1718 = vmatpush2.bf16.msra.mxu0 0
        %1719 = vmatprep.subr.bf16.mxu0 0
        %1720 = vmatpush2.bf16.msra.mxu0 0
        %1721 = vmatprep.mubr.bf16.mxu0 0
        %1722 = vmatmul.mubr.bf16.gmra.mxu0 %v1683
        %v1723 = vpop.f32.mrf.mxu0
        %v1724 = vadd.f32 0.0, %v1723
        %v1725 = vpop.f32.mrf.mxu0
        %v1726 = vpop.f32.mrf.mxu0
        %v1727 = vpop.f32.mrf.mxu0
        %1728 = vdwg.mxu0
        %1729 = vrot.lane.b32.xlu0 %v1136, 64
        %v1730 = vpop.permute.xlu0 %1729
        %v1732 = vsel %vm1145, %v1673, 0
        %v1735 = vsel %vm1685, %v1730, 0
        %1737 = vmatprep.subr.bf16.mxu0 0
        %1738 = vmatpush1.bf16.msra.mxu0 0
        %1739 = vmatprep.subr.bf16.mxu0 0
        %1740 = vmatpush1.bf16.msra.mxu0 0
        %1741 = vmatprep.subr.bf16.mxu0 0
        %1742 = vmatpush1.bf16.msra.mxu0 0
        %1743 = vmatprep.subr.bf16.mxu0 0
        %1744 = vmatpush1.bf16.msra.mxu0 0
        %1745 = vmatprep.subr.bf16.mxu0 0
        %1746 = vmatpush1.bf16.msra.mxu0 0
        %1747 = vmatprep.subr.bf16.mxu0 0
        %1748 = vmatpush1.bf16.msra.mxu0 0
        %1749 = vmatprep.subr.bf16.mxu0 0
        %1750 = vmatpush1.bf16.msra.mxu0 0
        %1751 = vmatprep.subr.bf16.mxu0 0
        %1752 = vmatpush1.bf16.msra.mxu0 %v1735
        %1753 = vmatprep.subr.bf16.mxu0 0
        %1754 = vmatpush2.bf16.msra.mxu0 0
        %1755 = vmatprep.subr.bf16.mxu0 0
        %1756 = vmatpush2.bf16.msra.mxu0 0
        %1757 = vmatprep.subr.bf16.mxu0 0
        %1758 = vmatpush2.bf16.msra.mxu0 0
        %1759 = vmatprep.subr.bf16.mxu0 0
        %1760 = vmatpush2.bf16.msra.mxu0 0
        %1761 = vmatprep.subr.bf16.mxu0 0
        %1762 = vmatpush2.bf16.msra.mxu0 0
        %1763 = vmatprep.subr.bf16.mxu0 0
        %1764 = vmatpush2.bf16.msra.mxu0 0
        %1765 = vmatprep.subr.bf16.mxu0 0
        %1766 = vmatpush2.bf16.msra.mxu0 0
        %1767 = vmatprep.subr.bf16.mxu0 0
        %1768 = vmatpush2.bf16.msra.mxu0 0
        %1769 = vmatprep.mubr.bf16.mxu0 0
        %1770 = vmatmul.mubr.bf16.gmra.mxu0 %v1732
        %v1771 = vpop.f32.mrf.mxu0
        %v1772 = vadd.f32 0.0, %v1771
        %v1773 = vpop.f32.mrf.mxu0
        %v1774 = vpop.f32.mrf.mxu0
        %v1775 = vpop.f32.mrf.mxu0
        %1776 = vdwg.mxu0
        %1777 = vrot.lane.b32.xlu0 %v1137, 64
        %v1778 = vpop.permute.xlu0 %1777
        %v1780 = vsel %vm1145, %v1674, 0
        %v1783 = vsel %vm1685, %v1778, 0
        %1785 = vmatprep.subr.bf16.mxu0 0
        %1786 = vmatpush1.bf16.msra.mxu0 0
        %1787 = vmatprep.subr.bf16.mxu0 0
        %1788 = vmatpush1.bf16.msra.mxu0 0
        %1789 = vmatprep.subr.bf16.mxu0 0
        %1790 = vmatpush1.bf16.msra.mxu0 0
        %1791 = vmatprep.subr.bf16.mxu0 0
        %1792 = vmatpush1.bf16.msra.mxu0 0
        %1793 = vmatprep.subr.bf16.mxu0 0
        %1794 = vmatpush1.bf16.msra.mxu0 0
        %1795 = vmatprep.subr.bf16.mxu0 0
        %1796 = vmatpush1.bf16.msra.mxu0 0
        %1797 = vmatprep.subr.bf16.mxu0 0
        %1798 = vmatpush1.bf16.msra.mxu0 0
        %1799 = vmatprep.subr.bf16.mxu0 0
        %1800 = vmatpush1.bf16.msra.mxu0 %v1783
        %1801 = vmatprep.subr.bf16.mxu0 0
        %1802 = vmatpush2.bf16.msra.mxu0 0
        %1803 = vmatprep.subr.bf16.mxu0 0
        %1804 = vmatpush2.bf16.msra.mxu0 0
        %1805 = vmatprep.subr.bf16.mxu0 0
        %1806 = vmatpush2.bf16.msra.mxu0 0
        %1807 = vmatprep.subr.bf16.mxu0 0
        %1808 = vmatpush2.bf16.msra.mxu0 0
        %1809 = vmatprep.subr.bf16.mxu0 0
        %1810 = vmatpush2.bf16.msra.mxu0 0
        %1811 = vmatprep.subr.bf16.mxu0 0
        %1812 = vmatpush2.bf16.msra.mxu0 0
        %1813 = vmatprep.subr.bf16.mxu0 0
        %1814 = vmatpush2.bf16.msra.mxu0 0
        %1815 = vmatprep.subr.bf16.mxu0 0
        %1816 = vmatpush2.bf16.msra.mxu0 0
        %1817 = vmatprep.mubr.bf16.mxu0 0
        %1818 = vmatmul.mubr.bf16.gmra.mxu0 %v1780
        %v1819 = vpop.f32.mrf.mxu0
        %v1820 = vadd.f32 0.0, %v1819
        %v1821 = vpop.f32.mrf.mxu0
        %v1822 = vpop.f32.mrf.mxu0
        %v1823 = vpop.f32.mrf.mxu0
        %1824 = vdwg.mxu0
        %1825 = vrot.lane.b32.xlu0 %v1138, 64
        %v1826 = vpop.permute.xlu0 %1825
        %v1828 = vsel %vm1145, %v1675, 0
        %v1831 = vsel %vm1685, %v1826, 0
        %1833 = vmatprep.subr.bf16.mxu0 0
        %1834 = vmatpush1.bf16.msra.mxu0 0
        %1835 = vmatprep.subr.bf16.mxu0 0
        %1836 = vmatpush1.bf16.msra.mxu0 0
        %1837 = vmatprep.subr.bf16.mxu0 0
        %1838 = vmatpush1.bf16.msra.mxu0 0
        %1839 = vmatprep.subr.bf16.mxu0 0
        %1840 = vmatpush1.bf16.msra.mxu0 0
        %1841 = vmatprep.subr.bf16.mxu0 0
        %1842 = vmatpush1.bf16.msra.mxu0 0
        %1843 = vmatprep.subr.bf16.mxu0 0
        %1844 = vmatpush1.bf16.msra.mxu0 0
        %1845 = vmatprep.subr.bf16.mxu0 0
        %1846 = vmatpush1.bf16.msra.mxu0 0
        %1847 = vmatprep.subr.bf16.mxu0 0
        %1848 = vmatpush1.bf16.msra.mxu0 %v1831
        %1849 = vmatprep.subr.bf16.mxu0 0
        %1850 = vmatpush2.bf16.msra.mxu0 0
        %1851 = vmatprep.subr.bf16.mxu0 0
        %1852 = vmatpush2.bf16.msra.mxu0 0
        %1853 = vmatprep.subr.bf16.mxu0 0
        %1854 = vmatpush2.bf16.msra.mxu0 0
        %1855 = vmatprep.subr.bf16.mxu0 0
        %1856 = vmatpush2.bf16.msra.mxu0 0
        %1857 = vmatprep.subr.bf16.mxu0 0
        %1858 = vmatpush2.bf16.msra.mxu0 0
        %1859 = vmatprep.subr.bf16.mxu0 0
        %1860 = vmatpush2.bf16.msra.mxu0 0
        %1861 = vmatprep.subr.bf16.mxu0 0
        %1862 = vmatpush2.bf16.msra.mxu0 0
        %1863 = vmatprep.subr.bf16.mxu0 0
        %1864 = vmatpush2.bf16.msra.mxu0 0
        %1865 = vmatprep.mubr.bf16.mxu0 0
        %1866 = vmatmul.mubr.bf16.gmra.mxu0 %v1828
        %v1867 = vpop.f32.mrf.mxu0
        %v1868 = vadd.f32 0.0, %v1867
        %v1869 = vpop.f32.mrf.mxu0
        %v1870 = vpop.f32.mrf.mxu0
        %v1871 = vpop.f32.mrf.mxu0
        %1872 = vdwg.mxu0
        %1873 = vrot.lane.b32.xlu0 %v1139, 64
        %v1874 = vpop.permute.xlu0 %1873
        %v1876 = vsel %vm1145, %v1676, 0
        %v1879 = vsel %vm1685, %v1874, 0
        %1881 = vmatprep.subr.bf16.mxu0 0
        %1882 = vmatpush1.bf16.msra.mxu0 0
        %1883 = vmatprep.subr.bf16.mxu0 0
        %1884 = vmatpush1.bf16.msra.mxu0 0
        %1885 = vmatprep.subr.bf16.mxu0 0
        %1886 = vmatpush1.bf16.msra.mxu0 0
        %1887 = vmatprep.subr.bf16.mxu0 0
        %1888 = vmatpush1.bf16.msra.mxu0 0
        %1889 = vmatprep.subr.bf16.mxu0 0
        %1890 = vmatpush1.bf16.msra.mxu0 0
        %1891 = vmatprep.subr.bf16.mxu0 0
        %1892 = vmatpush1.bf16.msra.mxu0 0
        %1893 = vmatprep.subr.bf16.mxu0 0
        %1894 = vmatpush1.bf16.msra.mxu0 0
        %1895 = vmatprep.subr.bf16.mxu0 0
        %1896 = vmatpush1.bf16.msra.mxu0 %v1879
        %1897 = vmatprep.subr.bf16.mxu0 0
        %1898 = vmatpush2.bf16.msra.mxu0 0
        %1899 = vmatprep.subr.bf16.mxu0 0
        %1900 = vmatpush2.bf16.msra.mxu0 0
        %1901 = vmatprep.subr.bf16.mxu0 0
        %1902 = vmatpush2.bf16.msra.mxu0 0
        %1903 = vmatprep.subr.bf16.mxu0 0
        %1904 = vmatpush2.bf16.msra.mxu0 0
        %1905 = vmatprep.subr.bf16.mxu0 0
        %1906 = vmatpush2.bf16.msra.mxu0 0
        %1907 = vmatprep.subr.bf16.mxu0 0
        %1908 = vmatpush2.bf16.msra.mxu0 0
        %1909 = vmatprep.subr.bf16.mxu0 0
        %1910 = vmatpush2.bf16.msra.mxu0 0
        %1911 = vmatprep.subr.bf16.mxu0 0
        %1912 = vmatpush2.bf16.msra.mxu0 0
        %1913 = vmatprep.mubr.bf16.mxu0 0
        %1914 = vmatmul.mubr.bf16.gmra.mxu0 %v1876
        %v1915 = vpop.f32.mrf.mxu0
        %v1916 = vadd.f32 0.0, %v1915
        %v1917 = vpop.f32.mrf.mxu0
        %v1918 = vpop.f32.mrf.mxu0
        %v1919 = vpop.f32.mrf.mxu0
        %1920 = vdwg.mxu0
        %1921 = vrot.lane.b32.xlu0 %v1140, 64
        %v1922 = vpop.permute.xlu0 %1921
        %v1924 = vsel %vm1145, %v1677, 0
        %v1927 = vsel %vm1685, %v1922, 0
        %1929 = vmatprep.subr.bf16.mxu0 0
        %1930 = vmatpush1.bf16.msra.mxu0 0
        %1931 = vmatprep.subr.bf16.mxu0 0
        %1932 = vmatpush1.bf16.msra.mxu0 0
        %1933 = vmatprep.subr.bf16.mxu0 0
        %1934 = vmatpush1.bf16.msra.mxu0 0
        %1935 = vmatprep.subr.bf16.mxu0 0
        %1936 = vmatpush1.bf16.msra.mxu0 0
        %1937 = vmatprep.subr.bf16.mxu0 0
        %1938 = vmatpush1.bf16.msra.mxu0 0
        %1939 = vmatprep.subr.bf16.mxu0 0
        %1940 = vmatpush1.bf16.msra.mxu0 0
        %1941 = vmatprep.subr.bf16.mxu0 0
        %1942 = vmatpush1.bf16.msra.mxu0 0
        %1943 = vmatprep.subr.bf16.mxu0 0
        %1944 = vmatpush1.bf16.msra.mxu0 %v1927
        %1945 = vmatprep.subr.bf16.mxu0 0
        %1946 = vmatpush2.bf16.msra.mxu0 0
        %1947 = vmatprep.subr.bf16.mxu0 0
        %1948 = vmatpush2.bf16.msra.mxu0 0
        %1949 = vmatprep.subr.bf16.mxu0 0
        %1950 = vmatpush2.bf16.msra.mxu0 0
        %1951 = vmatprep.subr.bf16.mxu0 0
        %1952 = vmatpush2.bf16.msra.mxu0 0
        %1953 = vmatprep.subr.bf16.mxu0 0
        %1954 = vmatpush2.bf16.msra.mxu0 0
        %1955 = vmatprep.subr.bf16.mxu0 0
        %1956 = vmatpush2.bf16.msra.mxu0 0
        %1957 = vmatprep.subr.bf16.mxu0 0
        %1958 = vmatpush2.bf16.msra.mxu0 0
        %1959 = vmatprep.subr.bf16.mxu0 0
        %1960 = vmatpush2.bf16.msra.mxu0 0
        %1961 = vmatprep.mubr.bf16.mxu0 0
        %1962 = vmatmul.mubr.bf16.gmra.mxu0 %v1924
        %v1963 = vpop.f32.mrf.mxu0
        %v1964 = vadd.f32 0.0, %v1963
        %v1965 = vpop.f32.mrf.mxu0
        %v1966 = vpop.f32.mrf.mxu0
        %v1967 = vpop.f32.mrf.mxu0
        %1968 = vdwg.mxu0
        %1969 = vrot.lane.b32.xlu0 %v1141, 64
        %v1970 = vpop.permute.xlu0 %1969
        %v1972 = vsel %vm1145, %v1678, 0
        %v1975 = vsel %vm1685, %v1970, 0
        %1977 = vmatprep.subr.bf16.mxu0 0
        %1978 = vmatpush1.bf16.msra.mxu0 0
        %1979 = vmatprep.subr.bf16.mxu0 0
        %1980 = vmatpush1.bf16.msra.mxu0 0
        %1981 = vmatprep.subr.bf16.mxu0 0
        %1982 = vmatpush1.bf16.msra.mxu0 0
        %1983 = vmatprep.subr.bf16.mxu0 0
        %1984 = vmatpush1.bf16.msra.mxu0 0
        %1985 = vmatprep.subr.bf16.mxu0 0
        %1986 = vmatpush1.bf16.msra.mxu0 0
        %1987 = vmatprep.subr.bf16.mxu0 0
        %1988 = vmatpush1.bf16.msra.mxu0 0
        %1989 = vmatprep.subr.bf16.mxu0 0
        %1990 = vmatpush1.bf16.msra.mxu0 0
        %1991 = vmatprep.subr.bf16.mxu0 0
        %1992 = vmatpush1.bf16.msra.mxu0 %v1975
        %1993 = vmatprep.subr.bf16.mxu0 0
        %1994 = vmatpush2.bf16.msra.mxu0 0
        %1995 = vmatprep.subr.bf16.mxu0 0
        %1996 = vmatpush2.bf16.msra.mxu0 0
        %1997 = vmatprep.subr.bf16.mxu0 0
        %1998 = vmatpush2.bf16.msra.mxu0 0
        %1999 = vmatprep.subr.bf16.mxu0 0
        %2000 = vmatpush2.bf16.msra.mxu0 0
        %2001 = vmatprep.subr.bf16.mxu0 0
        %2002 = vmatpush2.bf16.msra.mxu0 0
        %2003 = vmatprep.subr.bf16.mxu0 0
        %2004 = vmatpush2.bf16.msra.mxu0 0
        %2005 = vmatprep.subr.bf16.mxu0 0
        %2006 = vmatpush2.bf16.msra.mxu0 0
        %2007 = vmatprep.subr.bf16.mxu0 0
        %2008 = vmatpush2.bf16.msra.mxu0 0
        %2009 = vmatprep.mubr.bf16.mxu0 0
        %2010 = vmatmul.mubr.bf16.gmra.mxu0 %v1972
        %v2011 = vpop.f32.mrf.mxu0
        %v2012 = vadd.f32 0.0, %v2011
        %v2013 = vpop.f32.mrf.mxu0
        %v2014 = vpop.f32.mrf.mxu0
        %v2015 = vpop.f32.mrf.mxu0
        %2016 = vdwg.mxu0
        %2017 = vrot.lane.b32.xlu0 %v1142, 64
        %v2018 = vpop.permute.xlu0 %2017
        %v2020 = vsel %vm1145, %v1679, 0
        %v2023 = vsel %vm1685, %v2018, 0
        %2025 = vmatprep.subr.bf16.mxu0 0
        %2026 = vmatpush1.bf16.msra.mxu0 0
        %2027 = vmatprep.subr.bf16.mxu0 0
        %2028 = vmatpush1.bf16.msra.mxu0 0
        %2029 = vmatprep.subr.bf16.mxu0 0
        %2030 = vmatpush1.bf16.msra.mxu0 0
        %2031 = vmatprep.subr.bf16.mxu0 0
        %2032 = vmatpush1.bf16.msra.mxu0 0
        %2033 = vmatprep.subr.bf16.mxu0 0
        %2034 = vmatpush1.bf16.msra.mxu0 0
        %2035 = vmatprep.subr.bf16.mxu0 0
        %2036 = vmatpush1.bf16.msra.mxu0 0
        %2037 = vmatprep.subr.bf16.mxu0 0
        %2038 = vmatpush1.bf16.msra.mxu0 0
        %2039 = vmatprep.subr.bf16.mxu0 0
        %2040 = vmatpush1.bf16.msra.mxu0 %v2023
        %2041 = vmatprep.subr.bf16.mxu0 0
        %2042 = vmatpush2.bf16.msra.mxu0 0
        %2043 = vmatprep.subr.bf16.mxu0 0
        %2044 = vmatpush2.bf16.msra.mxu0 0
        %2045 = vmatprep.subr.bf16.mxu0 0
        %2046 = vmatpush2.bf16.msra.mxu0 0
        %2047 = vmatprep.subr.bf16.mxu0 0
        %2048 = vmatpush2.bf16.msra.mxu0 0
        %2049 = vmatprep.subr.bf16.mxu0 0
        %2050 = vmatpush2.bf16.msra.mxu0 0
        %2051 = vmatprep.subr.bf16.mxu0 0
        %2052 = vmatpush2.bf16.msra.mxu0 0
        %2053 = vmatprep.subr.bf16.mxu0 0
        %2054 = vmatpush2.bf16.msra.mxu0 0
        %2055 = vmatprep.subr.bf16.mxu0 0
        %2056 = vmatpush2.bf16.msra.mxu0 0
        %2057 = vmatprep.mubr.bf16.mxu0 0
        %2058 = vmatmul.mubr.bf16.gmra.mxu0 %v2020
        %v2059 = vpop.f32.mrf.mxu0
        %v2060 = vadd.f32 0.0, %v2059
        %v2061 = vpop.f32.mrf.mxu0
        %v2062 = vpop.f32.mrf.mxu0
        %v2063 = vpop.f32.mrf.mxu0
        %2064 = vdwg.mxu0
        %v2065 = vpack.c.bf16 %v1772, %v1724
        %v2066 = vpack.c.bf16 %v1868, %v1820
        %v2067 = vpack.c.bf16 %v1964, %v1916
        %v2068 = vpack.c.bf16 %v2060, %v2012
        %v2073 = vunpack.c.l.b16 %v2065
        %v2074 = vunpack.c.h.b16 %v2065
        %v2075 = vunpack.c.l.b16 %v2066
        %v2076 = vunpack.c.h.b16 %v2066
        %v2077 = vunpack.c.l.b16 %v2067
        %v2078 = vunpack.c.h.b16 %v2067
        %v2079 = vunpack.c.l.b16 %v2068
        %v2080 = vunpack.c.h.b16 %v2068
        %v2081 = vpack.c.b16 %v2073, %v2073
        %v2082 = vpack.c.b16 %v2074, %v2074
        %v2083 = vpack.c.b16 %v2075, %v2075
        %v2084 = vpack.c.b16 %v2076, %v2076
        %v2085 = vpack.c.b16 %v2077, %v2077
        %v2086 = vpack.c.b16 %v2078, %v2078
        %v2087 = vpack.c.b16 %v2079, %v2079
        %v2088 = vpack.c.b16 %v2080, %v2080
        %vm2097 = vcmask 60416
        %2098 = vst.msk [vmem:[#allocation3] sm:$0xf] %vm2097, %v2081
        %2099 = vst.msk [vmem:[#allocation3 + $0x4] sm:$0xf] %vm2097, %v2082
        %2100 = vst.msk [vmem:[#allocation3 + $0x8] sm:$0xf] %vm2097, %v2083
        %2101 = vst.msk [vmem:[#allocation3 + $0xc] sm:$0xf] %vm2097, %v2084
        %2102 = vst.msk [vmem:[#allocation3 + $0x10] sm:$0xf] %vm2097, %v2085
        %2103 = vst.msk [vmem:[#allocation3 + $0x14] sm:$0xf] %vm2097, %v2086
        %2104 = vst.msk [vmem:[#allocation3 + $0x18] sm:$0xf] %vm2097, %v2087
        %2105 = vst.msk [vmem:[#allocation3 + $0x1c] sm:$0xf] %vm2097, %v2088
        %2106 = vrot.lane.b32.xlu0 %v1135, 120
        %v2107 = vpop.permute.xlu0 %2106
        %2108 = vrot.lane.b32.xlu0 %v1135, 88
        %v2109 = vpop.permute.xlu0 %2108
        %v2111 = vsel %vm1145, %v2107, 0
        %v2114 = vsel %vm1145, %v2109, 0
        %2116 = vmatprep.subr.bf16.mxu0 0
        %2117 = vmatpush1.bf16.xpose.msra.mxu0 0
        %2118 = vmatprep.subr.bf16.mxu0 0
        %2119 = vmatpush1.bf16.xpose.msra.mxu0 0
        %2120 = vmatprep.subr.bf16.mxu0 0
        %2121 = vmatpush1.bf16.xpose.msra.mxu0 0
        %2122 = vmatprep.subr.bf16.mxu0 0
        %2123 = vmatpush1.bf16.xpose.msra.mxu0 0
        %2124 = vmatprep.subr.bf16.mxu0 0
        %2125 = vmatpush1.bf16.xpose.msra.mxu0 0
        %2126 = vmatprep.subr.bf16.mxu0 0
        %2127 = vmatpush1.bf16.xpose.msra.mxu0 0
        %2128 = vmatprep.subr.bf16.mxu0 0
        %2129 = vmatpush1.bf16.xpose.msra.mxu0 0
        %2130 = vmatprep.subr.bf16.mxu0 0
        %2131 = vmatpush1.bf16.xpose.msra.mxu0 %v2114
        %2132 = vmatprep.subr.bf16.mxu0 0
        %2133 = vmatpush2.bf16.xpose.msra.mxu0 0
        %2134 = vmatprep.subr.bf16.mxu0 0
        %2135 = vmatpush2.bf16.xpose.msra.mxu0 0
        %2136 = vmatprep.subr.bf16.mxu0 0
        %2137 = vmatpush2.bf16.xpose.msra.mxu0 0
        %2138 = vmatprep.subr.bf16.mxu0 0
        %2139 = vmatpush2.bf16.xpose.msra.mxu0 0
        %2140 = vmatprep.subr.bf16.mxu0 0
        %2141 = vmatpush2.bf16.xpose.msra.mxu0 0
        %2142 = vmatprep.subr.bf16.mxu0 0
        %2143 = vmatpush2.bf16.xpose.msra.mxu0 0
        %2144 = vmatprep.subr.bf16.mxu0 0
        %2145 = vmatpush2.bf16.xpose.msra.mxu0 0
        %2146 = vmatprep.subr.bf16.mxu0 0
        %2147 = vmatpush2.bf16.xpose.msra.mxu0 0
        %2148 = vmatprep.mubr.bf16.mxu0 0
        %2149 = vmatmul.mubr.bf16.gmra.mxu0 %v2111
        %v2150 = vpop.f32.mrf.mxu0
        %v2151 = vadd.f32 0.0, %v2150
        %v2152 = vpop.f32.mrf.mxu0
        %v2153 = vpop.f32.mrf.mxu0
        %v2154 = vpop.f32.mrf.mxu0
        %2155 = vdwg.mxu0
        %2156 = vrot.lane.b32.xlu0 %v1136, 120
        %v2157 = vpop.permute.xlu0 %2156
        %2158 = vrot.lane.b32.xlu0 %v1136, 88
        %v2159 = vpop.permute.xlu0 %2158
        %v2161 = vsel %vm1145, %v2157, 0
        %v2164 = vsel %vm1145, %v2159, 0
        %2166 = vmatprep.subr.bf16.mxu0 0
        %2167 = vmatpush1.bf16.xpose.msra.mxu0 0
        %2168 = vmatprep.subr.bf16.mxu0 0
        %2169 = vmatpush1.bf16.xpose.msra.mxu0 0
        %2170 = vmatprep.subr.bf16.mxu0 0
        %2171 = vmatpush1.bf16.xpose.msra.mxu0 0
        %2172 = vmatprep.subr.bf16.mxu0 0
        %2173 = vmatpush1.bf16.xpose.msra.mxu0 0
        %2174 = vmatprep.subr.bf16.mxu0 0
        %2175 = vmatpush1.bf16.xpose.msra.mxu0 0
        %2176 = vmatprep.subr.bf16.mxu0 0
        %2177 = vmatpush1.bf16.xpose.msra.mxu0 0
        %2178 = vmatprep.subr.bf16.mxu0 0
        %2179 = vmatpush1.bf16.xpose.msra.mxu0 0
        %2180 = vmatprep.subr.bf16.mxu0 0
        %2181 = vmatpush1.bf16.xpose.msra.mxu0 %v2164
        %2182 = vmatprep.subr.bf16.mxu0 0
        %2183 = vmatpush2.bf16.xpose.msra.mxu0 0
        %2184 = vmatprep.subr.bf16.mxu0 0
        %2185 = vmatpush2.bf16.xpose.msra.mxu0 0
        %2186 = vmatprep.subr.bf16.mxu0 0
        %2187 = vmatpush2.bf16.xpose.msra.mxu0 0
        %2188 = vmatprep.subr.bf16.mxu0 0
        %2189 = vmatpush2.bf16.xpose.msra.mxu0 0
        %2190 = vmatprep.subr.bf16.mxu0 0
        %2191 = vmatpush2.bf16.xpose.msra.mxu0 0
        %2192 = vmatprep.subr.bf16.mxu0 0
        %2193 = vmatpush2.bf16.xpose.msra.mxu0 0
        %2194 = vmatprep.subr.bf16.mxu0 0
        %2195 = vmatpush2.bf16.xpose.msra.mxu0 0
        %2196 = vmatprep.subr.bf16.mxu0 0
        %2197 = vmatpush2.bf16.xpose.msra.mxu0 0
        %2198 = vmatprep.mubr.bf16.mxu0 0
        %2199 = vmatmul.mubr.bf16.gmra.mxu0 %v2161
        %v2200 = vpop.f32.mrf.mxu0
        %v2201 = vadd.f32 0.0, %v2200
        %v2202 = vpop.f32.mrf.mxu0
        %v2203 = vpop.f32.mrf.mxu0
        %v2204 = vpop.f32.mrf.mxu0
        %2205 = vdwg.mxu0
        %2206 = vrot.lane.b32.xlu0 %v1137, 120
        %v2207 = vpop.permute.xlu0 %2206
        %2208 = vrot.lane.b32.xlu0 %v1137, 88
        %v2209 = vpop.permute.xlu0 %2208
        %v2211 = vsel %vm1145, %v2207, 0
        %v2214 = vsel %vm1145, %v2209, 0
        %2216 = vmatprep.subr.bf16.mxu0 0
        %2217 = vmatpush1.bf16.xpose.msra.mxu0 0
        %2218 = vmatprep.subr.bf16.mxu0 0
        %2219 = vmatpush1.bf16.xpose.msra.mxu0 0
        %2220 = vmatprep.subr.bf16.mxu0 0
        %2221 = vmatpush1.bf16.xpose.msra.mxu0 0
        %2222 = vmatprep.subr.bf16.mxu0 0
        %2223 = vmatpush1.bf16.xpose.msra.mxu0 0
        %2224 = vmatprep.subr.bf16.mxu0 0
        %2225 = vmatpush1.bf16.xpose.msra.mxu0 0
        %2226 = vmatprep.subr.bf16.mxu0 0
        %2227 = vmatpush1.bf16.xpose.msra.mxu0 0
        %2228 = vmatprep.subr.bf16.mxu0 0
        %2229 = vmatpush1.bf16.xpose.msra.mxu0 0
        %2230 = vmatprep.subr.bf16.mxu0 0
        %2231 = vmatpush1.bf16.xpose.msra.mxu0 %v2214
        %2232 = vmatprep.subr.bf16.mxu0 0
        %2233 = vmatpush2.bf16.xpose.msra.mxu0 0
        %2234 = vmatprep.subr.bf16.mxu0 0
        %2235 = vmatpush2.bf16.xpose.msra.mxu0 0
        %2236 = vmatprep.subr.bf16.mxu0 0
        %2237 = vmatpush2.bf16.xpose.msra.mxu0 0
        %2238 = vmatprep.subr.bf16.mxu0 0
        %2239 = vmatpush2.bf16.xpose.msra.mxu0 0
        %2240 = vmatprep.subr.bf16.mxu0 0
        %2241 = vmatpush2.bf16.xpose.msra.mxu0 0
        %2242 = vmatprep.subr.bf16.mxu0 0
        %2243 = vmatpush2.bf16.xpose.msra.mxu0 0
        %2244 = vmatprep.subr.bf16.mxu0 0
        %2245 = vmatpush2.bf16.xpose.msra.mxu0 0
        %2246 = vmatprep.subr.bf16.mxu0 0
        %2247 = vmatpush2.bf16.xpose.msra.mxu0 0
        %2248 = vmatprep.mubr.bf16.mxu0 0
        %2249 = vmatmul.mubr.bf16.gmra.mxu0 %v2211
        %v2250 = vpop.f32.mrf.mxu0
        %v2251 = vadd.f32 0.0, %v2250
        %v2252 = vpop.f32.mrf.mxu0
        %v2253 = vpop.f32.mrf.mxu0
        %v2254 = vpop.f32.mrf.mxu0
        %2255 = vdwg.mxu0
        %2256 = vrot.lane.b32.xlu0 %v1138, 120
        %v2257 = vpop.permute.xlu0 %2256
        %2258 = vrot.lane.b32.xlu0 %v1138, 88
        %v2259 = vpop.permute.xlu0 %2258
        %v2261 = vsel %vm1145, %v2257, 0
        %v2264 = vsel %vm1145, %v2259, 0
        %2266 = vmatprep.subr.bf16.mxu0 0
        %2267 = vmatpush1.bf16.xpose.msra.mxu0 0
        %2268 = vmatprep.subr.bf16.mxu0 0
        %2269 = vmatpush1.bf16.xpose.msra.mxu0 0
        %2270 = vmatprep.subr.bf16.mxu0 0
        %2271 = vmatpush1.bf16.xpose.msra.mxu0 0
        %2272 = vmatprep.subr.bf16.mxu0 0
        %2273 = vmatpush1.bf16.xpose.msra.mxu0 0
        %2274 = vmatprep.subr.bf16.mxu0 0
        %2275 = vmatpush1.bf16.xpose.msra.mxu0 0
        %2276 = vmatprep.subr.bf16.mxu0 0
        %2277 = vmatpush1.bf16.xpose.msra.mxu0 0
        %2278 = vmatprep.subr.bf16.mxu0 0
        %2279 = vmatpush1.bf16.xpose.msra.mxu0 0
        %2280 = vmatprep.subr.bf16.mxu0 0
        %2281 = vmatpush1.bf16.xpose.msra.mxu0 %v2264
        %2282 = vmatprep.subr.bf16.mxu0 0
        %2283 = vmatpush2.bf16.xpose.msra.mxu0 0
        %2284 = vmatprep.subr.bf16.mxu0 0
        %2285 = vmatpush2.bf16.xpose.msra.mxu0 0
        %2286 = vmatprep.subr.bf16.mxu0 0
        %2287 = vmatpush2.bf16.xpose.msra.mxu0 0
        %2288 = vmatprep.subr.bf16.mxu0 0
        %2289 = vmatpush2.bf16.xpose.msra.mxu0 0
        %2290 = vmatprep.subr.bf16.mxu0 0
        %2291 = vmatpush2.bf16.xpose.msra.mxu0 0
        %2292 = vmatprep.subr.bf16.mxu0 0
        %2293 = vmatpush2.bf16.xpose.msra.mxu0 0
        %2294 = vmatprep.subr.bf16.mxu0 0
        %2295 = vmatpush2.bf16.xpose.msra.mxu0 0
        %2296 = vmatprep.subr.bf16.mxu0 0
        %2297 = vmatpush2.bf16.xpose.msra.mxu0 0
        %2298 = vmatprep.mubr.bf16.mxu0 0
        %2299 = vmatmul.mubr.bf16.gmra.mxu0 %v2261
        %v2300 = vpop.f32.mrf.mxu0
        %v2301 = vadd.f32 0.0, %v2300
        %v2302 = vpop.f32.mrf.mxu0
        %v2303 = vpop.f32.mrf.mxu0
        %v2304 = vpop.f32.mrf.mxu0
        %2305 = vdwg.mxu0
        %2306 = vrot.lane.b32.xlu0 %v1139, 120
        %v2307 = vpop.permute.xlu0 %2306
        %2308 = vrot.lane.b32.xlu0 %v1139, 88
        %v2309 = vpop.permute.xlu0 %2308
        %v2311 = vsel %vm1145, %v2307, 0
        %v2314 = vsel %vm1145, %v2309, 0
        %2316 = vmatprep.subr.bf16.mxu0 0
        %2317 = vmatpush1.bf16.xpose.msra.mxu0 0
        %2318 = vmatprep.subr.bf16.mxu0 0
        %2319 = vmatpush1.bf16.xpose.msra.mxu0 0
        %2320 = vmatprep.subr.bf16.mxu0 0
        %2321 = vmatpush1.bf16.xpose.msra.mxu0 0
        %2322 = vmatprep.subr.bf16.mxu0 0
        %2323 = vmatpush1.bf16.xpose.msra.mxu0 0
        %2324 = vmatprep.subr.bf16.mxu0 0
        %2325 = vmatpush1.bf16.xpose.msra.mxu0 0
        %2326 = vmatprep.subr.bf16.mxu0 0
        %2327 = vmatpush1.bf16.xpose.msra.mxu0 0
        %2328 = vmatprep.subr.bf16.mxu0 0
        %2329 = vmatpush1.bf16.xpose.msra.mxu0 0
        %2330 = vmatprep.subr.bf16.mxu0 0
        %2331 = vmatpush1.bf16.xpose.msra.mxu0 %v2314
        %2332 = vmatprep.subr.bf16.mxu0 0
        %2333 = vmatpush2.bf16.xpose.msra.mxu0 0
        %2334 = vmatprep.subr.bf16.mxu0 0
        %2335 = vmatpush2.bf16.xpose.msra.mxu0 0
        %2336 = vmatprep.subr.bf16.mxu0 0
        %2337 = vmatpush2.bf16.xpose.msra.mxu0 0
        %2338 = vmatprep.subr.bf16.mxu0 0
        %2339 = vmatpush2.bf16.xpose.msra.mxu0 0
        %2340 = vmatprep.subr.bf16.mxu0 0
        %2341 = vmatpush2.bf16.xpose.msra.mxu0 0
        %2342 = vmatprep.subr.bf16.mxu0 0
        %2343 = vmatpush2.bf16.xpose.msra.mxu0 0
        %2344 = vmatprep.subr.bf16.mxu0 0
        %2345 = vmatpush2.bf16.xpose.msra.mxu0 0
        %2346 = vmatprep.subr.bf16.mxu0 0
        %2347 = vmatpush2.bf16.xpose.msra.mxu0 0
        %2348 = vmatprep.mubr.bf16.mxu0 0
        %2349 = vmatmul.mubr.bf16.gmra.mxu0 %v2311
        %v2350 = vpop.f32.mrf.mxu0
        %v2351 = vadd.f32 0.0, %v2350
        %v2352 = vpop.f32.mrf.mxu0
        %v2353 = vpop.f32.mrf.mxu0
        %v2354 = vpop.f32.mrf.mxu0
        %2355 = vdwg.mxu0
        %2356 = vrot.lane.b32.xlu0 %v1140, 120
        %v2357 = vpop.permute.xlu0 %2356
        %2358 = vrot.lane.b32.xlu0 %v1140, 88
        %v2359 = vpop.permute.xlu0 %2358
        %v2361 = vsel %vm1145, %v2357, 0
        %v2364 = vsel %vm1145, %v2359, 0
        %2366 = vmatprep.subr.bf16.mxu0 0
        %2367 = vmatpush1.bf16.xpose.msra.mxu0 0
        %2368 = vmatprep.subr.bf16.mxu0 0
        %2369 = vmatpush1.bf16.xpose.msra.mxu0 0
        %2370 = vmatprep.subr.bf16.mxu0 0
        %2371 = vmatpush1.bf16.xpose.msra.mxu0 0
        %2372 = vmatprep.subr.bf16.mxu0 0
        %2373 = vmatpush1.bf16.xpose.msra.mxu0 0
        %2374 = vmatprep.subr.bf16.mxu0 0
        %2375 = vmatpush1.bf16.xpose.msra.mxu0 0
        %2376 = vmatprep.subr.bf16.mxu0 0
        %2377 = vmatpush1.bf16.xpose.msra.mxu0 0
        %2378 = vmatprep.subr.bf16.mxu0 0
        %2379 = vmatpush1.bf16.xpose.msra.mxu0 0
        %2380 = vmatprep.subr.bf16.mxu0 0
        %2381 = vmatpush1.bf16.xpose.msra.mxu0 %v2364
        %2382 = vmatprep.subr.bf16.mxu0 0
        %2383 = vmatpush2.bf16.xpose.msra.mxu0 0
        %2384 = vmatprep.subr.bf16.mxu0 0
        %2385 = vmatpush2.bf16.xpose.msra.mxu0 0
        %2386 = vmatprep.subr.bf16.mxu0 0
        %2387 = vmatpush2.bf16.xpose.msra.mxu0 0
        %2388 = vmatprep.subr.bf16.mxu0 0
        %2389 = vmatpush2.bf16.xpose.msra.mxu0 0
        %2390 = vmatprep.subr.bf16.mxu0 0
        %2391 = vmatpush2.bf16.xpose.msra.mxu0 0
        %2392 = vmatprep.subr.bf16.mxu0 0
        %2393 = vmatpush2.bf16.xpose.msra.mxu0 0
        %2394 = vmatprep.subr.bf16.mxu0 0
        %2395 = vmatpush2.bf16.xpose.msra.mxu0 0
        %2396 = vmatprep.subr.bf16.mxu0 0
        %2397 = vmatpush2.bf16.xpose.msra.mxu0 0
        %2398 = vmatprep.mubr.bf16.mxu0 0
        %2399 = vmatmul.mubr.bf16.gmra.mxu0 %v2361
        %v2400 = vpop.f32.mrf.mxu0
        %v2401 = vadd.f32 0.0, %v2400
        %v2402 = vpop.f32.mrf.mxu0
        %v2403 = vpop.f32.mrf.mxu0
        %v2404 = vpop.f32.mrf.mxu0
        %2405 = vdwg.mxu0
        %2406 = vrot.lane.b32.xlu0 %v1141, 120
        %v2407 = vpop.permute.xlu0 %2406
        %2408 = vrot.lane.b32.xlu0 %v1141, 88
        %v2409 = vpop.permute.xlu0 %2408
        %v2411 = vsel %vm1145, %v2407, 0
        %v2414 = vsel %vm1145, %v2409, 0
        %2416 = vmatprep.subr.bf16.mxu0 0
        %2417 = vmatpush1.bf16.xpose.msra.mxu0 0
        %2418 = vmatprep.subr.bf16.mxu0 0
        %2419 = vmatpush1.bf16.xpose.msra.mxu0 0
        %2420 = vmatprep.subr.bf16.mxu0 0
        %2421 = vmatpush1.bf16.xpose.msra.mxu0 0
        %2422 = vmatprep.subr.bf16.mxu0 0
        %2423 = vmatpush1.bf16.xpose.msra.mxu0 0
        %2424 = vmatprep.subr.bf16.mxu0 0
        %2425 = vmatpush1.bf16.xpose.msra.mxu0 0
        %2426 = vmatprep.subr.bf16.mxu0 0
        %2427 = vmatpush1.bf16.xpose.msra.mxu0 0
        %2428 = vmatprep.subr.bf16.mxu0 0
        %2429 = vmatpush1.bf16.xpose.msra.mxu0 0
        %2430 = vmatprep.subr.bf16.mxu0 0
        %2431 = vmatpush1.bf16.xpose.msra.mxu0 %v2414
        %2432 = vmatprep.subr.bf16.mxu0 0
        %2433 = vmatpush2.bf16.xpose.msra.mxu0 0
        %2434 = vmatprep.subr.bf16.mxu0 0
        %2435 = vmatpush2.bf16.xpose.msra.mxu0 0
        %2436 = vmatprep.subr.bf16.mxu0 0
        %2437 = vmatpush2.bf16.xpose.msra.mxu0 0
        %2438 = vmatprep.subr.bf16.mxu0 0
        %2439 = vmatpush2.bf16.xpose.msra.mxu0 0
        %2440 = vmatprep.subr.bf16.mxu0 0
        %2441 = vmatpush2.bf16.xpose.msra.mxu0 0
        %2442 = vmatprep.subr.bf16.mxu0 0
        %2443 = vmatpush2.bf16.xpose.msra.mxu0 0
        %2444 = vmatprep.subr.bf16.mxu0 0
        %2445 = vmatpush2.bf16.xpose.msra.mxu0 0
        %2446 = vmatprep.subr.bf16.mxu0 0
        %2447 = vmatpush2.bf16.xpose.msra.mxu0 0
        %2448 = vmatprep.mubr.bf16.mxu0 0
        %2449 = vmatmul.mubr.bf16.gmra.mxu0 %v2411
        %v2450 = vpop.f32.mrf.mxu0
        %v2451 = vadd.f32 0.0, %v2450
        %v2452 = vpop.f32.mrf.mxu0
        %v2453 = vpop.f32.mrf.mxu0
        %v2454 = vpop.f32.mrf.mxu0
        %2455 = vdwg.mxu0
        %2456 = vrot.lane.b32.xlu0 %v1142, 120
        %v2457 = vpop.permute.xlu0 %2456
        %2458 = vrot.lane.b32.xlu0 %v1142, 88
        %v2459 = vpop.permute.xlu0 %2458
        %v2461 = vsel %vm1145, %v2457, 0
        %v2464 = vsel %vm1145, %v2459, 0
        %2466 = vmatprep.subr.bf16.mxu0 0
        %2467 = vmatpush1.bf16.xpose.msra.mxu0 0
        %2468 = vmatprep.subr.bf16.mxu0 0
        %2469 = vmatpush1.bf16.xpose.msra.mxu0 0
        %2470 = vmatprep.subr.bf16.mxu0 0
        %2471 = vmatpush1.bf16.xpose.msra.mxu0 0
        %2472 = vmatprep.subr.bf16.mxu0 0
        %2473 = vmatpush1.bf16.xpose.msra.mxu0 0
        %2474 = vmatprep.subr.bf16.mxu0 0
        %2475 = vmatpush1.bf16.xpose.msra.mxu0 0
        %2476 = vmatprep.subr.bf16.mxu0 0
        %2477 = vmatpush1.bf16.xpose.msra.mxu0 0
        %2478 = vmatprep.subr.bf16.mxu0 0
        %2479 = vmatpush1.bf16.xpose.msra.mxu0 0
        %2480 = vmatprep.subr.bf16.mxu0 0
        %2481 = vmatpush1.bf16.xpose.msra.mxu0 %v2464
        %2482 = vmatprep.subr.bf16.mxu0 0
        %2483 = vmatpush2.bf16.xpose.msra.mxu0 0
        %2484 = vmatprep.subr.bf16.mxu0 0
        %2485 = vmatpush2.bf16.xpose.msra.mxu0 0
        %2486 = vmatprep.subr.bf16.mxu0 0
        %2487 = vmatpush2.bf16.xpose.msra.mxu0 0
        %2488 = vmatprep.subr.bf16.mxu0 0
        %2489 = vmatpush2.bf16.xpose.msra.mxu0 0
        %2490 = vmatprep.subr.bf16.mxu0 0
        %2491 = vmatpush2.bf16.xpose.msra.mxu0 0
        %2492 = vmatprep.subr.bf16.mxu0 0
        %2493 = vmatpush2.bf16.xpose.msra.mxu0 0
        %2494 = vmatprep.subr.bf16.mxu0 0
        %2495 = vmatpush2.bf16.xpose.msra.mxu0 0
        %2496 = vmatprep.subr.bf16.mxu0 0
        %2497 = vmatpush2.bf16.xpose.msra.mxu0 0
        %2498 = vmatprep.mubr.bf16.mxu0 0
        %2499 = vmatmul.mubr.bf16.gmra.mxu0 %v2461
        %v2500 = vpop.f32.mrf.mxu0
        %v2501 = vadd.f32 0.0, %v2500
        %v2502 = vpop.f32.mrf.mxu0
        %v2503 = vpop.f32.mrf.mxu0
        %v2504 = vpop.f32.mrf.mxu0
        %2505 = vdwg.mxu0
        %v2506 = vmul.f32 %v2151, 0.35355338
        %v2507 = vmul.f32 %v2201, 0.35355338
        %v2508 = vmul.f32 %v2251, 0.35355338
        %v2509 = vmul.f32 %v2301, 0.35355338
        %v2510 = vmul.f32 %v2351, 0.35355338
        %v2511 = vmul.f32 %v2401, 0.35355338
        %v2512 = vmul.f32 %v2451, 0.35355338
        %v2513 = vmul.f32 %v2501, 0.35355338
        %v2514 = vadd.f32 %v2506, %v1539
        %v2515 = vadd.f32 %v2507, %v1543
        %v2516 = vadd.f32 %v2508, %v1547
        %v2517 = vadd.f32 %v2509, %v1551
        %v2518 = vadd.f32 %v2510, %v1555
        %v2519 = vadd.f32 %v2511, %v1559
        %v2520 = vadd.f32 %v2512, %v1563
        %v2521 = vadd.f32 %v2513, %v1567
        %v2522 = vsel %vm1145, %v2514, -inf
        %2523 = vmax.xlane.f32.xlu0 %v2522
        %v2524 = vpop.xlane.xlu0 %2523
        %v2525 = vsel %vm1145, %v2515, -inf
        %2526 = vmax.xlane.f32.xlu0 %v2525
        %v2527 = vpop.xlane.xlu0 %2526
        %v2528 = vsel %vm1145, %v2516, -inf
        %2529 = vmax.xlane.f32.xlu0 %v2528
        %v2530 = vpop.xlane.xlu0 %2529
        %v2531 = vsel %vm1145, %v2517, -inf
        %2532 = vmax.xlane.f32.xlu0 %v2531
        %v2533 = vpop.xlane.xlu0 %2532
        %v2534 = vsel %vm1145, %v2518, -inf
        %2535 = vmax.xlane.f32.xlu0 %v2534
        %v2536 = vpop.xlane.xlu0 %2535
        %v2537 = vsel %vm1145, %v2519, -inf
        %2538 = vmax.xlane.f32.xlu0 %v2537
        %v2539 = vpop.xlane.xlu0 %2538
        %v2540 = vsel %vm1145, %v2520, -inf
        %2541 = vmax.xlane.f32.xlu0 %v2540
        %v2542 = vpop.xlane.xlu0 %2541
        %v2543 = vsel %vm1145, %v2521, -inf
        %2544 = vmax.xlane.f32.xlu0 %v2543
        %v2545 = vpop.xlane.xlu0 %2544
        %v2546 = vsub.f32 %v2514, %v2524
        %v2547 = vsub.f32 %v2515, %v2527
        %v2548 = vsub.f32 %v2516, %v2530
        %v2549 = vsub.f32 %v2517, %v2533
        %v2550 = vsub.f32 %v2518, %v2536
        %v2551 = vsub.f32 %v2519, %v2539
        %v2552 = vsub.f32 %v2520, %v2542
        %v2553 = vsub.f32 %v2521, %v2545
        %v2554 = vmul.f32 %v2546, 1.442695
        %v2555 = vpow.pop %v2554
        %v2556 = vmul.f32 %v2547, 1.442695
        %v2557 = vpow.pop %v2556
        %v2558 = vmul.f32 %v2548, 1.442695
        %v2559 = vpow.pop %v2558
        %v2560 = vmul.f32 %v2549, 1.442695
        %v2561 = vpow.pop %v2560
        %v2562 = vmul.f32 %v2550, 1.442695
        %v2563 = vpow.pop %v2562
        %v2564 = vmul.f32 %v2551, 1.442695
        %v2565 = vpow.pop %v2564
        %v2566 = vmul.f32 %v2552, 1.442695
        %v2567 = vpow.pop %v2566
        %v2568 = vmul.f32 %v2553, 1.442695
        %v2569 = vpow.pop %v2568
        %v2570 = vsel %vm1145, %v2555, 0.0
        %2571 = vadd.xlane.f32.xlu0 %v2570
        %v2572 = vpop.xlane.xlu0 %2571
        %v2573 = vsel %vm1145, %v2557, 0.0
        %2574 = vadd.xlane.f32.xlu0 %v2573
        %v2575 = vpop.xlane.xlu0 %2574
        %v2576 = vsel %vm1145, %v2559, 0.0
        %2577 = vadd.xlane.f32.xlu0 %v2576
        %v2578 = vpop.xlane.xlu0 %2577
        %v2579 = vsel %vm1145, %v2561, 0.0
        %2580 = vadd.xlane.f32.xlu0 %v2579
        %v2581 = vpop.xlane.xlu0 %2580
        %v2582 = vsel %vm1145, %v2563, 0.0
        %2583 = vadd.xlane.f32.xlu0 %v2582
        %v2584 = vpop.xlane.xlu0 %2583
        %v2585 = vsel %vm1145, %v2565, 0.0
        %2586 = vadd.xlane.f32.xlu0 %v2585
        %v2587 = vpop.xlane.xlu0 %2586
        %v2588 = vsel %vm1145, %v2567, 0.0
        %2589 = vadd.xlane.f32.xlu0 %v2588
        %v2590 = vpop.xlane.xlu0 %2589
        %v2591 = vsel %vm1145, %v2569, 0.0
        %2592 = vadd.xlane.f32.xlu0 %v2591
        %v2593 = vpop.xlane.xlu0 %2592
        %v2594 = vrcp.pop %v2572
        %v2595 = vrcp.pop %v2575
        %v2596 = vrcp.pop %v2578
        %v2597 = vrcp.pop %v2581
        %v2598 = vrcp.pop %v2584
        %v2599 = vrcp.pop %v2587
        %v2600 = vrcp.pop %v2590
        %v2601 = vrcp.pop %v2593
        %v2602 = vmul.f32 %v2555, %v2594
        %v2603 = vmul.f32 %v2557, %v2595
        %v2604 = vmul.f32 %v2559, %v2596
        %v2605 = vmul.f32 %v2561, %v2597
        %v2606 = vmul.f32 %v2563, %v2598
        %v2607 = vmul.f32 %v2565, %v2599
        %v2608 = vmul.f32 %v2567, %v2600
        %v2609 = vmul.f32 %v2569, %v2601
        %v2610 = vpack.c.bf16 %v2602, %v2602
        %v2611 = vpack.c.bf16 %v2603, %v2603
        %v2612 = vpack.c.bf16 %v2604, %v2604
        %v2613 = vpack.c.bf16 %v2605, %v2605
        %v2614 = vpack.c.bf16 %v2606, %v2606
        %v2615 = vpack.c.bf16 %v2607, %v2607
        %v2616 = vpack.c.bf16 %v2608, %v2608
        %v2617 = vpack.c.bf16 %v2609, %v2609
        %2618 = vrot.lane.b32.xlu0 %v1135, 56
        %v2619 = vpop.permute.xlu0 %2618
        %v2621 = vsel %vm1145, %v2610, 0
        %v2624 = vsel %vm1685, %v2619, 0
        %2626 = vmatprep.subr.bf16.mxu0 0
        %2627 = vmatpush1.bf16.msra.mxu0 0
        %2628 = vmatprep.subr.bf16.mxu0 0
        %2629 = vmatpush1.bf16.msra.mxu0 0
        %2630 = vmatprep.subr.bf16.mxu0 0
        %2631 = vmatpush1.bf16.msra.mxu0 0
        %2632 = vmatprep.subr.bf16.mxu0 0
        %2633 = vmatpush1.bf16.msra.mxu0 0
        %2634 = vmatprep.subr.bf16.mxu0 0
        %2635 = vmatpush1.bf16.msra.mxu0 0
        %2636 = vmatprep.subr.bf16.mxu0 0
        %2637 = vmatpush1.bf16.msra.mxu0 0
        %2638 = vmatprep.subr.bf16.mxu0 0
        %2639 = vmatpush1.bf16.msra.mxu0 0
        %2640 = vmatprep.subr.bf16.mxu0 0
        %2641 = vmatpush1.bf16.msra.mxu0 %v2624
        %2642 = vmatprep.subr.bf16.mxu0 0
        %2643 = vmatpush2.bf16.msra.mxu0 0
        %2644 = vmatprep.subr.bf16.mxu0 0
        %2645 = vmatpush2.bf16.msra.mxu0 0
        %2646 = vmatprep.subr.bf16.mxu0 0
        %2647 = vmatpush2.bf16.msra.mxu0 0
        %2648 = vmatprep.subr.bf16.mxu0 0
        %2649 = vmatpush2.bf16.msra.mxu0 0
        %2650 = vmatprep.subr.bf16.mxu0 0
        %2651 = vmatpush2.bf16.msra.mxu0 0
        %2652 = vmatprep.subr.bf16.mxu0 0
        %2653 = vmatpush2.bf16.msra.mxu0 0
        %2654 = vmatprep.subr.bf16.mxu0 0
        %2655 = vmatpush2.bf16.msra.mxu0 0
        %2656 = vmatprep.subr.bf16.mxu0 0
        %2657 = vmatpush2.bf16.msra.mxu0 0
        %2658 = vmatprep.mubr.bf16.mxu0 0
        %2659 = vmatmul.mubr.bf16.gmra.mxu0 %v2621
        %v2660 = vpop.f32.mrf.mxu0
        %v2661 = vadd.f32 0.0, %v2660
        %v2662 = vpop.f32.mrf.mxu0
        %v2663 = vpop.f32.mrf.mxu0
        %v2664 = vpop.f32.mrf.mxu0
        %2665 = vdwg.mxu0
        %2666 = vrot.lane.b32.xlu0 %v1136, 56
        %v2667 = vpop.permute.xlu0 %2666
        %v2669 = vsel %vm1145, %v2611, 0
        %v2672 = vsel %vm1685, %v2667, 0
        %2674 = vmatprep.subr.bf16.mxu0 0
        %2675 = vmatpush1.bf16.msra.mxu0 0
        %2676 = vmatprep.subr.bf16.mxu0 0
        %2677 = vmatpush1.bf16.msra.mxu0 0
        %2678 = vmatprep.subr.bf16.mxu0 0
        %2679 = vmatpush1.bf16.msra.mxu0 0
        %2680 = vmatprep.subr.bf16.mxu0 0
        %2681 = vmatpush1.bf16.msra.mxu0 0
        %2682 = vmatprep.subr.bf16.mxu0 0
        %2683 = vmatpush1.bf16.msra.mxu0 0
        %2684 = vmatprep.subr.bf16.mxu0 0
        %2685 = vmatpush1.bf16.msra.mxu0 0
        %2686 = vmatprep.subr.bf16.mxu0 0
        %2687 = vmatpush1.bf16.msra.mxu0 0
        %2688 = vmatprep.subr.bf16.mxu0 0
        %2689 = vmatpush1.bf16.msra.mxu0 %v2672
        %2690 = vmatprep.subr.bf16.mxu0 0
        %2691 = vmatpush2.bf16.msra.mxu0 0
        %2692 = vmatprep.subr.bf16.mxu0 0
        %2693 = vmatpush2.bf16.msra.mxu0 0
        %2694 = vmatprep.subr.bf16.mxu0 0
        %2695 = vmatpush2.bf16.msra.mxu0 0
        %2696 = vmatprep.subr.bf16.mxu0 0
        %2697 = vmatpush2.bf16.msra.mxu0 0
        %2698 = vmatprep.subr.bf16.mxu0 0
        %2699 = vmatpush2.bf16.msra.mxu0 0
        %2700 = vmatprep.subr.bf16.mxu0 0
        %2701 = vmatpush2.bf16.msra.mxu0 0
        %2702 = vmatprep.subr.bf16.mxu0 0
        %2703 = vmatpush2.bf16.msra.mxu0 0
        %2704 = vmatprep.subr.bf16.mxu0 0
        %2705 = vmatpush2.bf16.msra.mxu0 0
        %2706 = vmatprep.mubr.bf16.mxu0 0
        %2707 = vmatmul.mubr.bf16.gmra.mxu0 %v2669
        %v2708 = vpop.f32.mrf.mxu0
        %v2709 = vadd.f32 0.0, %v2708
        %v2710 = vpop.f32.mrf.mxu0
        %v2711 = vpop.f32.mrf.mxu0
        %v2712 = vpop.f32.mrf.mxu0
        %2713 = vdwg.mxu0
        %2714 = vrot.lane.b32.xlu0 %v1137, 56
        %v2715 = vpop.permute.xlu0 %2714
        %v2717 = vsel %vm1145, %v2612, 0
        %v2720 = vsel %vm1685, %v2715, 0
        %2722 = vmatprep.subr.bf16.mxu0 0
        %2723 = vmatpush1.bf16.msra.mxu0 0
        %2724 = vmatprep.subr.bf16.mxu0 0
        %2725 = vmatpush1.bf16.msra.mxu0 0
        %2726 = vmatprep.subr.bf16.mxu0 0
        %2727 = vmatpush1.bf16.msra.mxu0 0
        %2728 = vmatprep.subr.bf16.mxu0 0
        %2729 = vmatpush1.bf16.msra.mxu0 0
        %2730 = vmatprep.subr.bf16.mxu0 0
        %2731 = vmatpush1.bf16.msra.mxu0 0
        %2732 = vmatprep.subr.bf16.mxu0 0
        %2733 = vmatpush1.bf16.msra.mxu0 0
        %2734 = vmatprep.subr.bf16.mxu0 0
        %2735 = vmatpush1.bf16.msra.mxu0 0
        %2736 = vmatprep.subr.bf16.mxu0 0
        %2737 = vmatpush1.bf16.msra.mxu0 %v2720
        %2738 = vmatprep.subr.bf16.mxu0 0
        %2739 = vmatpush2.bf16.msra.mxu0 0
        %2740 = vmatprep.subr.bf16.mxu0 0
        %2741 = vmatpush2.bf16.msra.mxu0 0
        %2742 = vmatprep.subr.bf16.mxu0 0
        %2743 = vmatpush2.bf16.msra.mxu0 0
        %2744 = vmatprep.subr.bf16.mxu0 0
        %2745 = vmatpush2.bf16.msra.mxu0 0
        %2746 = vmatprep.subr.bf16.mxu0 0
        %2747 = vmatpush2.bf16.msra.mxu0 0
        %2748 = vmatprep.subr.bf16.mxu0 0
        %2749 = vmatpush2.bf16.msra.mxu0 0
        %2750 = vmatprep.subr.bf16.mxu0 0
        %2751 = vmatpush2.bf16.msra.mxu0 0
        %2752 = vmatprep.subr.bf16.mxu0 0
        %2753 = vmatpush2.bf16.msra.mxu0 0
        %2754 = vmatprep.mubr.bf16.mxu0 0
        %2755 = vmatmul.mubr.bf16.gmra.mxu0 %v2717
        %v2756 = vpop.f32.mrf.mxu0
        %v2757 = vadd.f32 0.0, %v2756
        %v2758 = vpop.f32.mrf.mxu0
        %v2759 = vpop.f32.mrf.mxu0
        %v2760 = vpop.f32.mrf.mxu0
        %2761 = vdwg.mxu0
        %2762 = vrot.lane.b32.xlu0 %v1138, 56
        %v2763 = vpop.permute.xlu0 %2762
        %v2765 = vsel %vm1145, %v2613, 0
        %v2768 = vsel %vm1685, %v2763, 0
        %2770 = vmatprep.subr.bf16.mxu0 0
        %2771 = vmatpush1.bf16.msra.mxu0 0
        %2772 = vmatprep.subr.bf16.mxu0 0
        %2773 = vmatpush1.bf16.msra.mxu0 0
        %2774 = vmatprep.subr.bf16.mxu0 0
        %2775 = vmatpush1.bf16.msra.mxu0 0
        %2776 = vmatprep.subr.bf16.mxu0 0
        %2777 = vmatpush1.bf16.msra.mxu0 0
        %2778 = vmatprep.subr.bf16.mxu0 0
        %2779 = vmatpush1.bf16.msra.mxu0 0
        %2780 = vmatprep.subr.bf16.mxu0 0
        %2781 = vmatpush1.bf16.msra.mxu0 0
        %2782 = vmatprep.subr.bf16.mxu0 0
        %2783 = vmatpush1.bf16.msra.mxu0 0
        %2784 = vmatprep.subr.bf16.mxu0 0
        %2785 = vmatpush1.bf16.msra.mxu0 %v2768
        %2786 = vmatprep.subr.bf16.mxu0 0
        %2787 = vmatpush2.bf16.msra.mxu0 0
        %2788 = vmatprep.subr.bf16.mxu0 0
        %2789 = vmatpush2.bf16.msra.mxu0 0
        %2790 = vmatprep.subr.bf16.mxu0 0
        %2791 = vmatpush2.bf16.msra.mxu0 0
        %2792 = vmatprep.subr.bf16.mxu0 0
        %2793 = vmatpush2.bf16.msra.mxu0 0
        %2794 = vmatprep.subr.bf16.mxu0 0
        %2795 = vmatpush2.bf16.msra.mxu0 0
        %2796 = vmatprep.subr.bf16.mxu0 0
        %2797 = vmatpush2.bf16.msra.mxu0 0
        %2798 = vmatprep.subr.bf16.mxu0 0
        %2799 = vmatpush2.bf16.msra.mxu0 0
        %2800 = vmatprep.subr.bf16.mxu0 0
        %2801 = vmatpush2.bf16.msra.mxu0 0
        %2802 = vmatprep.mubr.bf16.mxu0 0
        %2803 = vmatmul.mubr.bf16.gmra.mxu0 %v2765
        %v2804 = vpop.f32.mrf.mxu0
        %v2805 = vadd.f32 0.0, %v2804
        %v2806 = vpop.f32.mrf.mxu0
        %v2807 = vpop.f32.mrf.mxu0
        %v2808 = vpop.f32.mrf.mxu0
        %2809 = vdwg.mxu0
        %2810 = vrot.lane.b32.xlu0 %v1139, 56
        %v2811 = vpop.permute.xlu0 %2810
        %v2813 = vsel %vm1145, %v2614, 0
        %v2816 = vsel %vm1685, %v2811, 0
        %2818 = vmatprep.subr.bf16.mxu0 0
        %2819 = vmatpush1.bf16.msra.mxu0 0
        %2820 = vmatprep.subr.bf16.mxu0 0
        %2821 = vmatpush1.bf16.msra.mxu0 0
        %2822 = vmatprep.subr.bf16.mxu0 0
        %2823 = vmatpush1.bf16.msra.mxu0 0
        %2824 = vmatprep.subr.bf16.mxu0 0
        %2825 = vmatpush1.bf16.msra.mxu0 0
        %2826 = vmatprep.subr.bf16.mxu0 0
        %2827 = vmatpush1.bf16.msra.mxu0 0
        %2828 = vmatprep.subr.bf16.mxu0 0
        %2829 = vmatpush1.bf16.msra.mxu0 0
        %2830 = vmatprep.subr.bf16.mxu0 0
        %2831 = vmatpush1.bf16.msra.mxu0 0
        %2832 = vmatprep.subr.bf16.mxu0 0
        %2833 = vmatpush1.bf16.msra.mxu0 %v2816
        %2834 = vmatprep.subr.bf16.mxu0 0
        %2835 = vmatpush2.bf16.msra.mxu0 0
        %2836 = vmatprep.subr.bf16.mxu0 0
        %2837 = vmatpush2.bf16.msra.mxu0 0
        %2838 = vmatprep.subr.bf16.mxu0 0
        %2839 = vmatpush2.bf16.msra.mxu0 0
        %2840 = vmatprep.subr.bf16.mxu0 0
        %2841 = vmatpush2.bf16.msra.mxu0 0
        %2842 = vmatprep.subr.bf16.mxu0 0
        %2843 = vmatpush2.bf16.msra.mxu0 0
        %2844 = vmatprep.subr.bf16.mxu0 0
        %2845 = vmatpush2.bf16.msra.mxu0 0
        %2846 = vmatprep.subr.bf16.mxu0 0
        %2847 = vmatpush2.bf16.msra.mxu0 0
        %2848 = vmatprep.subr.bf16.mxu0 0
        %2849 = vmatpush2.bf16.msra.mxu0 0
        %2850 = vmatprep.mubr.bf16.mxu0 0
        %2851 = vmatmul.mubr.bf16.gmra.mxu0 %v2813
        %v2852 = vpop.f32.mrf.mxu0
        %v2853 = vadd.f32 0.0, %v2852
        %v2854 = vpop.f32.mrf.mxu0
        %v2855 = vpop.f32.mrf.mxu0
        %v2856 = vpop.f32.mrf.mxu0
        %2857 = vdwg.mxu0
        %2858 = vrot.lane.b32.xlu0 %v1140, 56
        %v2859 = vpop.permute.xlu0 %2858
        %v2861 = vsel %vm1145, %v2615, 0
        %v2864 = vsel %vm1685, %v2859, 0
        %2866 = vmatprep.subr.bf16.mxu0 0
        %2867 = vmatpush1.bf16.msra.mxu0 0
        %2868 = vmatprep.subr.bf16.mxu0 0
        %2869 = vmatpush1.bf16.msra.mxu0 0
        %2870 = vmatprep.subr.bf16.mxu0 0
        %2871 = vmatpush1.bf16.msra.mxu0 0
        %2872 = vmatprep.subr.bf16.mxu0 0
        %2873 = vmatpush1.bf16.msra.mxu0 0
        %2874 = vmatprep.subr.bf16.mxu0 0
        %2875 = vmatpush1.bf16.msra.mxu0 0
        %2876 = vmatprep.subr.bf16.mxu0 0
        %2877 = vmatpush1.bf16.msra.mxu0 0
        %2878 = vmatprep.subr.bf16.mxu0 0
        %2879 = vmatpush1.bf16.msra.mxu0 0
        %2880 = vmatprep.subr.bf16.mxu0 0
        %2881 = vmatpush1.bf16.msra.mxu0 %v2864
        %2882 = vmatprep.subr.bf16.mxu0 0
        %2883 = vmatpush2.bf16.msra.mxu0 0
        %2884 = vmatprep.subr.bf16.mxu0 0
        %2885 = vmatpush2.bf16.msra.mxu0 0
        %2886 = vmatprep.subr.bf16.mxu0 0
        %2887 = vmatpush2.bf16.msra.mxu0 0
        %2888 = vmatprep.subr.bf16.mxu0 0
        %2889 = vmatpush2.bf16.msra.mxu0 0
        %2890 = vmatprep.subr.bf16.mxu0 0
        %2891 = vmatpush2.bf16.msra.mxu0 0
        %2892 = vmatprep.subr.bf16.mxu0 0
        %2893 = vmatpush2.bf16.msra.mxu0 0
        %2894 = vmatprep.subr.bf16.mxu0 0
        %2895 = vmatpush2.bf16.msra.mxu0 0
        %2896 = vmatprep.subr.bf16.mxu0 0
        %2897 = vmatpush2.bf16.msra.mxu0 0
        %2898 = vmatprep.mubr.bf16.mxu0 0
        %2899 = vmatmul.mubr.bf16.gmra.mxu0 %v2861
        %v2900 = vpop.f32.mrf.mxu0
        %v2901 = vadd.f32 0.0, %v2900
        %v2902 = vpop.f32.mrf.mxu0
        %v2903 = vpop.f32.mrf.mxu0
        %v2904 = vpop.f32.mrf.mxu0
        %2905 = vdwg.mxu0
        %2906 = vrot.lane.b32.xlu0 %v1141, 56
        %v2907 = vpop.permute.xlu0 %2906
        %v2909 = vsel %vm1145, %v2616, 0
        %v2912 = vsel %vm1685, %v2907, 0
        %2914 = vmatprep.subr.bf16.mxu0 0
        %2915 = vmatpush1.bf16.msra.mxu0 0
        %2916 = vmatprep.subr.bf16.mxu0 0
        %2917 = vmatpush1.bf16.msra.mxu0 0
        %2918 = vmatprep.subr.bf16.mxu0 0
        %2919 = vmatpush1.bf16.msra.mxu0 0
        %2920 = vmatprep.subr.bf16.mxu0 0
        %2921 = vmatpush1.bf16.msra.mxu0 0
        %2922 = vmatprep.subr.bf16.mxu0 0
        %2923 = vmatpush1.bf16.msra.mxu0 0
        %2924 = vmatprep.subr.bf16.mxu0 0
        %2925 = vmatpush1.bf16.msra.mxu0 0
        %2926 = vmatprep.subr.bf16.mxu0 0
        %2927 = vmatpush1.bf16.msra.mxu0 0
        %2928 = vmatprep.subr.bf16.mxu0 0
        %2929 = vmatpush1.bf16.msra.mxu0 %v2912
        %2930 = vmatprep.subr.bf16.mxu0 0
        %2931 = vmatpush2.bf16.msra.mxu0 0
        %2932 = vmatprep.subr.bf16.mxu0 0
        %2933 = vmatpush2.bf16.msra.mxu0 0
        %2934 = vmatprep.subr.bf16.mxu0 0
        %2935 = vmatpush2.bf16.msra.mxu0 0
        %2936 = vmatprep.subr.bf16.mxu0 0
        %2937 = vmatpush2.bf16.msra.mxu0 0
        %2938 = vmatprep.subr.bf16.mxu0 0
        %2939 = vmatpush2.bf16.msra.mxu0 0
        %2940 = vmatprep.subr.bf16.mxu0 0
        %2941 = vmatpush2.bf16.msra.mxu0 0
        %2942 = vmatprep.subr.bf16.mxu0 0
        %2943 = vmatpush2.bf16.msra.mxu0 0
        %2944 = vmatprep.subr.bf16.mxu0 0
        %2945 = vmatpush2.bf16.msra.mxu0 0
        %2946 = vmatprep.mubr.bf16.mxu0 0
        %2947 = vmatmul.mubr.bf16.gmra.mxu0 %v2909
        %v2948 = vpop.f32.mrf.mxu0
        %v2949 = vadd.f32 0.0, %v2948
        %v2950 = vpop.f32.mrf.mxu0
        %v2951 = vpop.f32.mrf.mxu0
        %v2952 = vpop.f32.mrf.mxu0
        %2953 = vdwg.mxu0
        %2954 = vrot.lane.b32.xlu0 %v1142, 56
        %v2955 = vpop.permute.xlu0 %2954
        %v2957 = vsel %vm1145, %v2617, 0
        %v2960 = vsel %vm1685, %v2955, 0
        %2962 = vmatprep.subr.bf16.mxu0 0
        %2963 = vmatpush1.bf16.msra.mxu0 0
        %2964 = vmatprep.subr.bf16.mxu0 0
        %2965 = vmatpush1.bf16.msra.mxu0 0
        %2966 = vmatprep.subr.bf16.mxu0 0
        %2967 = vmatpush1.bf16.msra.mxu0 0
        %2968 = vmatprep.subr.bf16.mxu0 0
        %2969 = vmatpush1.bf16.msra.mxu0 0
        %2970 = vmatprep.subr.bf16.mxu0 0
        %2971 = vmatpush1.bf16.msra.mxu0 0
        %2972 = vmatprep.subr.bf16.mxu0 0
        %2973 = vmatpush1.bf16.msra.mxu0 0
        %2974 = vmatprep.subr.bf16.mxu0 0
        %2975 = vmatpush1.bf16.msra.mxu0 0
        %2976 = vmatprep.subr.bf16.mxu0 0
        %2977 = vmatpush1.bf16.msra.mxu0 %v2960
        %2978 = vmatprep.subr.bf16.mxu0 0
        %2979 = vmatpush2.bf16.msra.mxu0 0
        %2980 = vmatprep.subr.bf16.mxu0 0
        %2981 = vmatpush2.bf16.msra.mxu0 0
        %2982 = vmatprep.subr.bf16.mxu0 0
        %2983 = vmatpush2.bf16.msra.mxu0 0
        %2984 = vmatprep.subr.bf16.mxu0 0
        %2985 = vmatpush2.bf16.msra.mxu0 0
        %2986 = vmatprep.subr.bf16.mxu0 0
        %2987 = vmatpush2.bf16.msra.mxu0 0
        %2988 = vmatprep.subr.bf16.mxu0 0
        %2989 = vmatpush2.bf16.msra.mxu0 0
        %2990 = vmatprep.subr.bf16.mxu0 0
        %2991 = vmatpush2.bf16.msra.mxu0 0
        %2992 = vmatprep.subr.bf16.mxu0 0
        %2993 = vmatpush2.bf16.msra.mxu0 0
        %2994 = vmatprep.mubr.bf16.mxu0 0
        %2995 = vmatmul.mubr.bf16.gmra.mxu0 %v2957
        %v2996 = vpop.f32.mrf.mxu0
        %v2997 = vadd.f32 0.0, %v2996
        %v2998 = vpop.f32.mrf.mxu0
        %v2999 = vpop.f32.mrf.mxu0
        %v3000 = vpop.f32.mrf.mxu0
        %3001 = vdwg.mxu0
        %v3002 = vpack.c.bf16 %v2709, %v2661
        %v3003 = vpack.c.bf16 %v2805, %v2757
        %v3004 = vpack.c.bf16 %v2901, %v2853
        %v3005 = vpack.c.bf16 %v2997, %v2949
        %v3010 = vunpack.c.l.b16 %v3002
        %v3011 = vunpack.c.h.b16 %v3002
        %v3012 = vunpack.c.l.b16 %v3003
        %v3013 = vunpack.c.h.b16 %v3003
        %v3014 = vunpack.c.l.b16 %v3004
        %v3015 = vunpack.c.h.b16 %v3004
        %v3016 = vunpack.c.l.b16 %v3005
        %v3017 = vunpack.c.h.b16 %v3005
        %v3018 = vpack.c.b16 %v3010, %v3010
        %v3019 = vpack.c.b16 %v3011, %v3011
        %v3020 = vpack.c.b16 %v3012, %v3012
        %v3021 = vpack.c.b16 %v3013, %v3013
        %v3022 = vpack.c.b16 %v3014, %v3014
        %v3023 = vpack.c.b16 %v3015, %v3015
        %v3024 = vpack.c.b16 %v3016, %v3016
        %v3025 = vpack.c.b16 %v3017, %v3017
        %3026 = vrot.lane.b32.xlu0 %v3018, 8
        %v3027 = vpop.permute.xlu0 %3026
        %3028 = vrot.lane.b32.xlu0 %v3019, 8
        %v3029 = vpop.permute.xlu0 %3028
        %3030 = vrot.lane.b32.xlu0 %v3020, 8
        %v3031 = vpop.permute.xlu0 %3030
        %3032 = vrot.lane.b32.xlu0 %v3021, 8
        %v3033 = vpop.permute.xlu0 %3032
        %3034 = vrot.lane.b32.xlu0 %v3022, 8
        %v3035 = vpop.permute.xlu0 %3034
        %3036 = vrot.lane.b32.xlu0 %v3023, 8
        %v3037 = vpop.permute.xlu0 %3036
        %3038 = vrot.lane.b32.xlu0 %v3024, 8
        %v3039 = vpop.permute.xlu0 %3038
        %3040 = vrot.lane.b32.xlu0 %v3025, 8
        %v3041 = vpop.permute.xlu0 %3040
        %vm3050 = vcmask 126016
        %3051 = vst.msk [vmem:[#allocation3] sm:$0xf] %vm3050, %v3027
        %3052 = vst.msk [vmem:[#allocation3 + $0x4] sm:$0xf] %vm3050, %v3029
        %3053 = vst.msk [vmem:[#allocation3 + $0x8] sm:$0xf] %vm3050, %v3031
        %3054 = vst.msk [vmem:[#allocation3 + $0xc] sm:$0xf] %vm3050, %v3033
        %3055 = vst.msk [vmem:[#allocation3 + $0x10] sm:$0xf] %vm3050, %v3035
        %3056 = vst.msk [vmem:[#allocation3 + $0x14] sm:$0xf] %vm3050, %v3037
        %3057 = vst.msk [vmem:[#allocation3 + $0x18] sm:$0xf] %vm3050, %v3039
        %3058 = vst.msk [vmem:[#allocation3 + $0x1c] sm:$0xf] %vm3050, %v3041
        %3059 = vrot.lane.b32.xlu0 %v1135, 112
        %v3060 = vpop.permute.xlu0 %3059
        %3061 = vrot.lane.b32.xlu0 %v1135, 80
        %v3062 = vpop.permute.xlu0 %3061
        %v3064 = vsel %vm1145, %v3060, 0
        %v3067 = vsel %vm1145, %v3062, 0
        %3069 = vmatprep.subr.bf16.mxu0 0
        %3070 = vmatpush1.bf16.xpose.msra.mxu0 0
        %3071 = vmatprep.subr.bf16.mxu0 0
        %3072 = vmatpush1.bf16.xpose.msra.mxu0 0
        %3073 = vmatprep.subr.bf16.mxu0 0
        %3074 = vmatpush1.bf16.xpose.msra.mxu0 0
        %3075 = vmatprep.subr.bf16.mxu0 0
        %3076 = vmatpush1.bf16.xpose.msra.mxu0 0
        %3077 = vmatprep.subr.bf16.mxu0 0
        %3078 = vmatpush1.bf16.xpose.msra.mxu0 0
        %3079 = vmatprep.subr.bf16.mxu0 0
        %3080 = vmatpush1.bf16.xpose.msra.mxu0 0
        %3081 = vmatprep.subr.bf16.mxu0 0
        %3082 = vmatpush1.bf16.xpose.msra.mxu0 0
        %3083 = vmatprep.subr.bf16.mxu0 0
        %3084 = vmatpush1.bf16.xpose.msra.mxu0 %v3067
        %3085 = vmatprep.subr.bf16.mxu0 0
        %3086 = vmatpush2.bf16.xpose.msra.mxu0 0
        %3087 = vmatprep.subr.bf16.mxu0 0
        %3088 = vmatpush2.bf16.xpose.msra.mxu0 0
        %3089 = vmatprep.subr.bf16.mxu0 0
        %3090 = vmatpush2.bf16.xpose.msra.mxu0 0
        %3091 = vmatprep.subr.bf16.mxu0 0
        %3092 = vmatpush2.bf16.xpose.msra.mxu0 0
        %3093 = vmatprep.subr.bf16.mxu0 0
        %3094 = vmatpush2.bf16.xpose.msra.mxu0 0
        %3095 = vmatprep.subr.bf16.mxu0 0
        %3096 = vmatpush2.bf16.xpose.msra.mxu0 0
        %3097 = vmatprep.subr.bf16.mxu0 0
        %3098 = vmatpush2.bf16.xpose.msra.mxu0 0
        %3099 = vmatprep.subr.bf16.mxu0 0
        %3100 = vmatpush2.bf16.xpose.msra.mxu0 0
        %3101 = vmatprep.mubr.bf16.mxu0 0
        %3102 = vmatmul.mubr.bf16.gmra.mxu0 %v3064
        %v3103 = vpop.f32.mrf.mxu0
        %v3104 = vadd.f32 0.0, %v3103
        %v3105 = vpop.f32.mrf.mxu0
        %v3106 = vpop.f32.mrf.mxu0
        %v3107 = vpop.f32.mrf.mxu0
        %3108 = vdwg.mxu0
        %3109 = vrot.lane.b32.xlu0 %v1136, 112
        %v3110 = vpop.permute.xlu0 %3109
        %3111 = vrot.lane.b32.xlu0 %v1136, 80
        %v3112 = vpop.permute.xlu0 %3111
        %v3114 = vsel %vm1145, %v3110, 0
        %v3117 = vsel %vm1145, %v3112, 0
        %3119 = vmatprep.subr.bf16.mxu0 0
        %3120 = vmatpush1.bf16.xpose.msra.mxu0 0
        %3121 = vmatprep.subr.bf16.mxu0 0
        %3122 = vmatpush1.bf16.xpose.msra.mxu0 0
        %3123 = vmatprep.subr.bf16.mxu0 0
        %3124 = vmatpush1.bf16.xpose.msra.mxu0 0
        %3125 = vmatprep.subr.bf16.mxu0 0
        %3126 = vmatpush1.bf16.xpose.msra.mxu0 0
        %3127 = vmatprep.subr.bf16.mxu0 0
        %3128 = vmatpush1.bf16.xpose.msra.mxu0 0
        %3129 = vmatprep.subr.bf16.mxu0 0
        %3130 = vmatpush1.bf16.xpose.msra.mxu0 0
        %3131 = vmatprep.subr.bf16.mxu0 0
        %3132 = vmatpush1.bf16.xpose.msra.mxu0 0
        %3133 = vmatprep.subr.bf16.mxu0 0
        %3134 = vmatpush1.bf16.xpose.msra.mxu0 %v3117
        %3135 = vmatprep.subr.bf16.mxu0 0
        %3136 = vmatpush2.bf16.xpose.msra.mxu0 0
        %3137 = vmatprep.subr.bf16.mxu0 0
        %3138 = vmatpush2.bf16.xpose.msra.mxu0 0
        %3139 = vmatprep.subr.bf16.mxu0 0
        %3140 = vmatpush2.bf16.xpose.msra.mxu0 0
        %3141 = vmatprep.subr.bf16.mxu0 0
        %3142 = vmatpush2.bf16.xpose.msra.mxu0 0
        %3143 = vmatprep.subr.bf16.mxu0 0
        %3144 = vmatpush2.bf16.xpose.msra.mxu0 0
        %3145 = vmatprep.subr.bf16.mxu0 0
        %3146 = vmatpush2.bf16.xpose.msra.mxu0 0
        %3147 = vmatprep.subr.bf16.mxu0 0
        %3148 = vmatpush2.bf16.xpose.msra.mxu0 0
        %3149 = vmatprep.subr.bf16.mxu0 0
        %3150 = vmatpush2.bf16.xpose.msra.mxu0 0
        %3151 = vmatprep.mubr.bf16.mxu0 0
        %3152 = vmatmul.mubr.bf16.gmra.mxu0 %v3114
        %v3153 = vpop.f32.mrf.mxu0
        %v3154 = vadd.f32 0.0, %v3153
        %v3155 = vpop.f32.mrf.mxu0
        %v3156 = vpop.f32.mrf.mxu0
        %v3157 = vpop.f32.mrf.mxu0
        %3158 = vdwg.mxu0
        %3159 = vrot.lane.b32.xlu0 %v1137, 112
        %v3160 = vpop.permute.xlu0 %3159
        %3161 = vrot.lane.b32.xlu0 %v1137, 80
        %v3162 = vpop.permute.xlu0 %3161
        %v3164 = vsel %vm1145, %v3160, 0
        %v3167 = vsel %vm1145, %v3162, 0
        %3169 = vmatprep.subr.bf16.mxu0 0
        %3170 = vmatpush1.bf16.xpose.msra.mxu0 0
        %3171 = vmatprep.subr.bf16.mxu0 0
        %3172 = vmatpush1.bf16.xpose.msra.mxu0 0
        %3173 = vmatprep.subr.bf16.mxu0 0
        %3174 = vmatpush1.bf16.xpose.msra.mxu0 0
        %3175 = vmatprep.subr.bf16.mxu0 0
        %3176 = vmatpush1.bf16.xpose.msra.mxu0 0
        %3177 = vmatprep.subr.bf16.mxu0 0
        %3178 = vmatpush1.bf16.xpose.msra.mxu0 0
        %3179 = vmatprep.subr.bf16.mxu0 0
        %3180 = vmatpush1.bf16.xpose.msra.mxu0 0
        %3181 = vmatprep.subr.bf16.mxu0 0
        %3182 = vmatpush1.bf16.xpose.msra.mxu0 0
        %3183 = vmatprep.subr.bf16.mxu0 0
        %3184 = vmatpush1.bf16.xpose.msra.mxu0 %v3167
        %3185 = vmatprep.subr.bf16.mxu0 0
        %3186 = vmatpush2.bf16.xpose.msra.mxu0 0
        %3187 = vmatprep.subr.bf16.mxu0 0
        %3188 = vmatpush2.bf16.xpose.msra.mxu0 0
        %3189 = vmatprep.subr.bf16.mxu0 0
        %3190 = vmatpush2.bf16.xpose.msra.mxu0 0
        %3191 = vmatprep.subr.bf16.mxu0 0
        %3192 = vmatpush2.bf16.xpose.msra.mxu0 0
        %3193 = vmatprep.subr.bf16.mxu0 0
        %3194 = vmatpush2.bf16.xpose.msra.mxu0 0
        %3195 = vmatprep.subr.bf16.mxu0 0
        %3196 = vmatpush2.bf16.xpose.msra.mxu0 0
        %3197 = vmatprep.subr.bf16.mxu0 0
        %3198 = vmatpush2.bf16.xpose.msra.mxu0 0
        %3199 = vmatprep.subr.bf16.mxu0 0
        %3200 = vmatpush2.bf16.xpose.msra.mxu0 0
        %3201 = vmatprep.mubr.bf16.mxu0 0
        %3202 = vmatmul.mubr.bf16.gmra.mxu0 %v3164
        %v3203 = vpop.f32.mrf.mxu0
        %v3204 = vadd.f32 0.0, %v3203
        %v3205 = vpop.f32.mrf.mxu0
        %v3206 = vpop.f32.mrf.mxu0
        %v3207 = vpop.f32.mrf.mxu0
        %3208 = vdwg.mxu0
        %3209 = vrot.lane.b32.xlu0 %v1138, 112
        %v3210 = vpop.permute.xlu0 %3209
        %3211 = vrot.lane.b32.xlu0 %v1138, 80
        %v3212 = vpop.permute.xlu0 %3211
        %v3214 = vsel %vm1145, %v3210, 0
        %v3217 = vsel %vm1145, %v3212, 0
        %3219 = vmatprep.subr.bf16.mxu0 0
        %3220 = vmatpush1.bf16.xpose.msra.mxu0 0
        %3221 = vmatprep.subr.bf16.mxu0 0
        %3222 = vmatpush1.bf16.xpose.msra.mxu0 0
        %3223 = vmatprep.subr.bf16.mxu0 0
        %3224 = vmatpush1.bf16.xpose.msra.mxu0 0
        %3225 = vmatprep.subr.bf16.mxu0 0
        %3226 = vmatpush1.bf16.xpose.msra.mxu0 0
        %3227 = vmatprep.subr.bf16.mxu0 0
        %3228 = vmatpush1.bf16.xpose.msra.mxu0 0
        %3229 = vmatprep.subr.bf16.mxu0 0
        %3230 = vmatpush1.bf16.xpose.msra.mxu0 0
        %3231 = vmatprep.subr.bf16.mxu0 0
        %3232 = vmatpush1.bf16.xpose.msra.mxu0 0
        %3233 = vmatprep.subr.bf16.mxu0 0
        %3234 = vmatpush1.bf16.xpose.msra.mxu0 %v3217
        %3235 = vmatprep.subr.bf16.mxu0 0
        %3236 = vmatpush2.bf16.xpose.msra.mxu0 0
        %3237 = vmatprep.subr.bf16.mxu0 0
        %3238 = vmatpush2.bf16.xpose.msra.mxu0 0
        %3239 = vmatprep.subr.bf16.mxu0 0
        %3240 = vmatpush2.bf16.xpose.msra.mxu0 0
        %3241 = vmatprep.subr.bf16.mxu0 0
        %3242 = vmatpush2.bf16.xpose.msra.mxu0 0
        %3243 = vmatprep.subr.bf16.mxu0 0
        %3244 = vmatpush2.bf16.xpose.msra.mxu0 0
        %3245 = vmatprep.subr.bf16.mxu0 0
        %3246 = vmatpush2.bf16.xpose.msra.mxu0 0
        %3247 = vmatprep.subr.bf16.mxu0 0
        %3248 = vmatpush2.bf16.xpose.msra.mxu0 0
        %3249 = vmatprep.subr.bf16.mxu0 0
        %3250 = vmatpush2.bf16.xpose.msra.mxu0 0
        %3251 = vmatprep.mubr.bf16.mxu0 0
        %3252 = vmatmul.mubr.bf16.gmra.mxu0 %v3214
        %v3253 = vpop.f32.mrf.mxu0
        %v3254 = vadd.f32 0.0, %v3253
        %v3255 = vpop.f32.mrf.mxu0
        %v3256 = vpop.f32.mrf.mxu0
        %v3257 = vpop.f32.mrf.mxu0
        %3258 = vdwg.mxu0
        %3259 = vrot.lane.b32.xlu0 %v1139, 112
        %v3260 = vpop.permute.xlu0 %3259
        %3261 = vrot.lane.b32.xlu0 %v1139, 80
        %v3262 = vpop.permute.xlu0 %3261
        %v3264 = vsel %vm1145, %v3260, 0
        %v3267 = vsel %vm1145, %v3262, 0
        %3269 = vmatprep.subr.bf16.mxu0 0
        %3270 = vmatpush1.bf16.xpose.msra.mxu0 0
        %3271 = vmatprep.subr.bf16.mxu0 0
        %3272 = vmatpush1.bf16.xpose.msra.mxu0 0
        %3273 = vmatprep.subr.bf16.mxu0 0
        %3274 = vmatpush1.bf16.xpose.msra.mxu0 0
        %3275 = vmatprep.subr.bf16.mxu0 0
        %3276 = vmatpush1.bf16.xpose.msra.mxu0 0
        %3277 = vmatprep.subr.bf16.mxu0 0
        %3278 = vmatpush1.bf16.xpose.msra.mxu0 0
        %3279 = vmatprep.subr.bf16.mxu0 0
        %3280 = vmatpush1.bf16.xpose.msra.mxu0 0
        %3281 = vmatprep.subr.bf16.mxu0 0
        %3282 = vmatpush1.bf16.xpose.msra.mxu0 0
        %3283 = vmatprep.subr.bf16.mxu0 0
        %3284 = vmatpush1.bf16.xpose.msra.mxu0 %v3267
        %3285 = vmatprep.subr.bf16.mxu0 0
        %3286 = vmatpush2.bf16.xpose.msra.mxu0 0
        %3287 = vmatprep.subr.bf16.mxu0 0
        %3288 = vmatpush2.bf16.xpose.msra.mxu0 0
        %3289 = vmatprep.subr.bf16.mxu0 0
        %3290 = vmatpush2.bf16.xpose.msra.mxu0 0
        %3291 = vmatprep.subr.bf16.mxu0 0
        %3292 = vmatpush2.bf16.xpose.msra.mxu0 0
        %3293 = vmatprep.subr.bf16.mxu0 0
        %3294 = vmatpush2.bf16.xpose.msra.mxu0 0
        %3295 = vmatprep.subr.bf16.mxu0 0
        %3296 = vmatpush2.bf16.xpose.msra.mxu0 0
        %3297 = vmatprep.subr.bf16.mxu0 0
        %3298 = vmatpush2.bf16.xpose.msra.mxu0 0
        %3299 = vmatprep.subr.bf16.mxu0 0
        %3300 = vmatpush2.bf16.xpose.msra.mxu0 0
        %3301 = vmatprep.mubr.bf16.mxu0 0
        %3302 = vmatmul.mubr.bf16.gmra.mxu0 %v3264
        %v3303 = vpop.f32.mrf.mxu0
        %v3304 = vadd.f32 0.0, %v3303
        %v3305 = vpop.f32.mrf.mxu0
        %v3306 = vpop.f32.mrf.mxu0
        %v3307 = vpop.f32.mrf.mxu0
        %3308 = vdwg.mxu0
        %3309 = vrot.lane.b32.xlu0 %v1140, 112
        %v3310 = vpop.permute.xlu0 %3309
        %3311 = vrot.lane.b32.xlu0 %v1140, 80
        %v3312 = vpop.permute.xlu0 %3311
        %v3314 = vsel %vm1145, %v3310, 0
        %v3317 = vsel %vm1145, %v3312, 0
        %3319 = vmatprep.subr.bf16.mxu0 0
        %3320 = vmatpush1.bf16.xpose.msra.mxu0 0
        %3321 = vmatprep.subr.bf16.mxu0 0
        %3322 = vmatpush1.bf16.xpose.msra.mxu0 0
        %3323 = vmatprep.subr.bf16.mxu0 0
        %3324 = vmatpush1.bf16.xpose.msra.mxu0 0
        %3325 = vmatprep.subr.bf16.mxu0 0
        %3326 = vmatpush1.bf16.xpose.msra.mxu0 0
        %3327 = vmatprep.subr.bf16.mxu0 0
        %3328 = vmatpush1.bf16.xpose.msra.mxu0 0
        %3329 = vmatprep.subr.bf16.mxu0 0
        %3330 = vmatpush1.bf16.xpose.msra.mxu0 0
        %3331 = vmatprep.subr.bf16.mxu0 0
        %3332 = vmatpush1.bf16.xpose.msra.mxu0 0
        %3333 = vmatprep.subr.bf16.mxu0 0
        %3334 = vmatpush1.bf16.xpose.msra.mxu0 %v3317
        %3335 = vmatprep.subr.bf16.mxu0 0
        %3336 = vmatpush2.bf16.xpose.msra.mxu0 0
        %3337 = vmatprep.subr.bf16.mxu0 0
        %3338 = vmatpush2.bf16.xpose.msra.mxu0 0
        %3339 = vmatprep.subr.bf16.mxu0 0
        %3340 = vmatpush2.bf16.xpose.msra.mxu0 0
        %3341 = vmatprep.subr.bf16.mxu0 0
        %3342 = vmatpush2.bf16.xpose.msra.mxu0 0
        %3343 = vmatprep.subr.bf16.mxu0 0
        %3344 = vmatpush2.bf16.xpose.msra.mxu0 0
        %3345 = vmatprep.subr.bf16.mxu0 0
        %3346 = vmatpush2.bf16.xpose.msra.mxu0 0
        %3347 = vmatprep.subr.bf16.mxu0 0
        %3348 = vmatpush2.bf16.xpose.msra.mxu0 0
        %3349 = vmatprep.subr.bf16.mxu0 0
        %3350 = vmatpush2.bf16.xpose.msra.mxu0 0
        %3351 = vmatprep.mubr.bf16.mxu0 0
        %3352 = vmatmul.mubr.bf16.gmra.mxu0 %v3314
        %v3353 = vpop.f32.mrf.mxu0
        %v3354 = vadd.f32 0.0, %v3353
        %v3355 = vpop.f32.mrf.mxu0
        %v3356 = vpop.f32.mrf.mxu0
        %v3357 = vpop.f32.mrf.mxu0
        %3358 = vdwg.mxu0
        %3359 = vrot.lane.b32.xlu0 %v1141, 112
        %v3360 = vpop.permute.xlu0 %3359
        %3361 = vrot.lane.b32.xlu0 %v1141, 80
        %v3362 = vpop.permute.xlu0 %3361
        %v3364 = vsel %vm1145, %v3360, 0
        %v3367 = vsel %vm1145, %v3362, 0
        %3369 = vmatprep.subr.bf16.mxu0 0
        %3370 = vmatpush1.bf16.xpose.msra.mxu0 0
        %3371 = vmatprep.subr.bf16.mxu0 0
        %3372 = vmatpush1.bf16.xpose.msra.mxu0 0
        %3373 = vmatprep.subr.bf16.mxu0 0
        %3374 = vmatpush1.bf16.xpose.msra.mxu0 0
        %3375 = vmatprep.subr.bf16.mxu0 0
        %3376 = vmatpush1.bf16.xpose.msra.mxu0 0
        %3377 = vmatprep.subr.bf16.mxu0 0
        %3378 = vmatpush1.bf16.xpose.msra.mxu0 0
        %3379 = vmatprep.subr.bf16.mxu0 0
        %3380 = vmatpush1.bf16.xpose.msra.mxu0 0
        %3381 = vmatprep.subr.bf16.mxu0 0
        %3382 = vmatpush1.bf16.xpose.msra.mxu0 0
        %3383 = vmatprep.subr.bf16.mxu0 0
        %3384 = vmatpush1.bf16.xpose.msra.mxu0 %v3367
        %3385 = vmatprep.subr.bf16.mxu0 0
        %3386 = vmatpush2.bf16.xpose.msra.mxu0 0
        %3387 = vmatprep.subr.bf16.mxu0 0
        %3388 = vmatpush2.bf16.xpose.msra.mxu0 0
        %3389 = vmatprep.subr.bf16.mxu0 0
        %3390 = vmatpush2.bf16.xpose.msra.mxu0 0
        %3391 = vmatprep.subr.bf16.mxu0 0
        %3392 = vmatpush2.bf16.xpose.msra.mxu0 0
        %3393 = vmatprep.subr.bf16.mxu0 0
        %3394 = vmatpush2.bf16.xpose.msra.mxu0 0
        %3395 = vmatprep.subr.bf16.mxu0 0
        %3396 = vmatpush2.bf16.xpose.msra.mxu0 0
        %3397 = vmatprep.subr.bf16.mxu0 0
        %3398 = vmatpush2.bf16.xpose.msra.mxu0 0
        %3399 = vmatprep.subr.bf16.mxu0 0
        %3400 = vmatpush2.bf16.xpose.msra.mxu0 0
        %3401 = vmatprep.mubr.bf16.mxu0 0
        %3402 = vmatmul.mubr.bf16.gmra.mxu0 %v3364
        %v3403 = vpop.f32.mrf.mxu0
        %v3404 = vadd.f32 0.0, %v3403
        %v3405 = vpop.f32.mrf.mxu0
        %v3406 = vpop.f32.mrf.mxu0
        %v3407 = vpop.f32.mrf.mxu0
        %3408 = vdwg.mxu0
        %3409 = vrot.lane.b32.xlu0 %v1142, 112
        %v3410 = vpop.permute.xlu0 %3409
        %3411 = vrot.lane.b32.xlu0 %v1142, 80
        %v3412 = vpop.permute.xlu0 %3411
        %v3414 = vsel %vm1145, %v3410, 0
        %v3417 = vsel %vm1145, %v3412, 0
        %3419 = vmatprep.subr.bf16.mxu0 0
        %3420 = vmatpush1.bf16.xpose.msra.mxu0 0
        %3421 = vmatprep.subr.bf16.mxu0 0
        %3422 = vmatpush1.bf16.xpose.msra.mxu0 0
        %3423 = vmatprep.subr.bf16.mxu0 0
        %3424 = vmatpush1.bf16.xpose.msra.mxu0 0
        %3425 = vmatprep.subr.bf16.mxu0 0
        %3426 = vmatpush1.bf16.xpose.msra.mxu0 0
        %3427 = vmatprep.subr.bf16.mxu0 0
        %3428 = vmatpush1.bf16.xpose.msra.mxu0 0
        %3429 = vmatprep.subr.bf16.mxu0 0
        %3430 = vmatpush1.bf16.xpose.msra.mxu0 0
        %3431 = vmatprep.subr.bf16.mxu0 0
        %3432 = vmatpush1.bf16.xpose.msra.mxu0 0
        %3433 = vmatprep.subr.bf16.mxu0 0
        %3434 = vmatpush1.bf16.xpose.msra.mxu0 %v3417
        %3435 = vmatprep.subr.bf16.mxu0 0
        %3436 = vmatpush2.bf16.xpose.msra.mxu0 0
        %3437 = vmatprep.subr.bf16.mxu0 0
        %3438 = vmatpush2.bf16.xpose.msra.mxu0 0
        %3439 = vmatprep.subr.bf16.mxu0 0
        %3440 = vmatpush2.bf16.xpose.msra.mxu0 0
        %3441 = vmatprep.subr.bf16.mxu0 0
        %3442 = vmatpush2.bf16.xpose.msra.mxu0 0
        %3443 = vmatprep.subr.bf16.mxu0 0
        %3444 = vmatpush2.bf16.xpose.msra.mxu0 0
        %3445 = vmatprep.subr.bf16.mxu0 0
        %3446 = vmatpush2.bf16.xpose.msra.mxu0 0
        %3447 = vmatprep.subr.bf16.mxu0 0
        %3448 = vmatpush2.bf16.xpose.msra.mxu0 0
        %3449 = vmatprep.subr.bf16.mxu0 0
        %3450 = vmatpush2.bf16.xpose.msra.mxu0 0
        %3451 = vmatprep.mubr.bf16.mxu0 0
        %3452 = vmatmul.mubr.bf16.gmra.mxu0 %v3414
        %v3453 = vpop.f32.mrf.mxu0
        %v3454 = vadd.f32 0.0, %v3453
        %v3455 = vpop.f32.mrf.mxu0
        %v3456 = vpop.f32.mrf.mxu0
        %v3457 = vpop.f32.mrf.mxu0
        %3458 = vdwg.mxu0
        %v3459 = vmul.f32 %v3104, 0.35355338
        %v3460 = vmul.f32 %v3154, 0.35355338
        %v3461 = vmul.f32 %v3204, 0.35355338
        %v3462 = vmul.f32 %v3254, 0.35355338
        %v3463 = vmul.f32 %v3304, 0.35355338
        %v3464 = vmul.f32 %v3354, 0.35355338
        %v3465 = vmul.f32 %v3404, 0.35355338
        %v3466 = vmul.f32 %v3454, 0.35355338
        %v3467 = vadd.f32 %v3459, %v1539
        %v3468 = vadd.f32 %v3460, %v1543
        %v3469 = vadd.f32 %v3461, %v1547
        %v3470 = vadd.f32 %v3462, %v1551
        %v3471 = vadd.f32 %v3463, %v1555
        %v3472 = vadd.f32 %v3464, %v1559
        %v3473 = vadd.f32 %v3465, %v1563
        %v3474 = vadd.f32 %v3466, %v1567
        %v3475 = vsel %vm1145, %v3467, -inf
        %3476 = vmax.xlane.f32.xlu0 %v3475
        %v3477 = vpop.xlane.xlu0 %3476
        %v3478 = vsel %vm1145, %v3468, -inf
        %3479 = vmax.xlane.f32.xlu0 %v3478
        %v3480 = vpop.xlane.xlu0 %3479
        %v3481 = vsel %vm1145, %v3469, -inf
        %3482 = vmax.xlane.f32.xlu0 %v3481
        %v3483 = vpop.xlane.xlu0 %3482
        %v3484 = vsel %vm1145, %v3470, -inf
        %3485 = vmax.xlane.f32.xlu0 %v3484
        %v3486 = vpop.xlane.xlu0 %3485
        %v3487 = vsel %vm1145, %v3471, -inf
        %3488 = vmax.xlane.f32.xlu0 %v3487
        %v3489 = vpop.xlane.xlu0 %3488
        %v3490 = vsel %vm1145, %v3472, -inf
        %3491 = vmax.xlane.f32.xlu0 %v3490
        %v3492 = vpop.xlane.xlu0 %3491
        %v3493 = vsel %vm1145, %v3473, -inf
        %3494 = vmax.xlane.f32.xlu0 %v3493
        %v3495 = vpop.xlane.xlu0 %3494
        %v3496 = vsel %vm1145, %v3474, -inf
        %3497 = vmax.xlane.f32.xlu0 %v3496
        %v3498 = vpop.xlane.xlu0 %3497
        %v3499 = vsub.f32 %v3467, %v3477
        %v3500 = vsub.f32 %v3468, %v3480
        %v3501 = vsub.f32 %v3469, %v3483
        %v3502 = vsub.f32 %v3470, %v3486
        %v3503 = vsub.f32 %v3471, %v3489
        %v3504 = vsub.f32 %v3472, %v3492
        %v3505 = vsub.f32 %v3473, %v3495
        %v3506 = vsub.f32 %v3474, %v3498
        %v3507 = vmul.f32 %v3499, 1.442695
        %v3508 = vpow.pop %v3507
        %v3509 = vmul.f32 %v3500, 1.442695
        %v3510 = vpow.pop %v3509
        %v3511 = vmul.f32 %v3501, 1.442695
        %v3512 = vpow.pop %v3511
        %v3513 = vmul.f32 %v3502, 1.442695
        %v3514 = vpow.pop %v3513
        %v3515 = vmul.f32 %v3503, 1.442695
        %v3516 = vpow.pop %v3515
        %v3517 = vmul.f32 %v3504, 1.442695
        %v3518 = vpow.pop %v3517
        %v3519 = vmul.f32 %v3505, 1.442695
        %v3520 = vpow.pop %v3519
        %v3521 = vmul.f32 %v3506, 1.442695
        %v3522 = vpow.pop %v3521
        %v3523 = vsel %vm1145, %v3508, 0.0
        %3524 = vadd.xlane.f32.xlu0 %v3523
        %v3525 = vpop.xlane.xlu0 %3524
        %v3526 = vsel %vm1145, %v3510, 0.0
        %3527 = vadd.xlane.f32.xlu0 %v3526
        %v3528 = vpop.xlane.xlu0 %3527
        %v3529 = vsel %vm1145, %v3512, 0.0
        %3530 = vadd.xlane.f32.xlu0 %v3529
        %v3531 = vpop.xlane.xlu0 %3530
        %v3532 = vsel %vm1145, %v3514, 0.0
        %3533 = vadd.xlane.f32.xlu0 %v3532
        %v3534 = vpop.xlane.xlu0 %3533
        %v3535 = vsel %vm1145, %v3516, 0.0
        %3536 = vadd.xlane.f32.xlu0 %v3535
        %v3537 = vpop.xlane.xlu0 %3536
        %v3538 = vsel %vm1145, %v3518, 0.0
        %3539 = vadd.xlane.f32.xlu0 %v3538
        %v3540 = vpop.xlane.xlu0 %3539
        %v3541 = vsel %vm1145, %v3520, 0.0
        %3542 = vadd.xlane.f32.xlu0 %v3541
        %v3543 = vpop.xlane.xlu0 %3542
        %v3544 = vsel %vm1145, %v3522, 0.0
        %3545 = vadd.xlane.f32.xlu0 %v3544
        %v3546 = vpop.xlane.xlu0 %3545
        %v3547 = vrcp.pop %v3525
        %v3548 = vrcp.pop %v3528
        %v3549 = vrcp.pop %v3531
        %v3550 = vrcp.pop %v3534
        %v3551 = vrcp.pop %v3537
        %v3552 = vrcp.pop %v3540
        %v3553 = vrcp.pop %v3543
        %v3554 = vrcp.pop %v3546
        %v3555 = vmul.f32 %v3508, %v3547
        %v3556 = vmul.f32 %v3510, %v3548
        %v3557 = vmul.f32 %v3512, %v3549
        %v3558 = vmul.f32 %v3514, %v3550
        %v3559 = vmul.f32 %v3516, %v3551
        %v3560 = vmul.f32 %v3518, %v3552
        %v3561 = vmul.f32 %v3520, %v3553
        %v3562 = vmul.f32 %v3522, %v3554
        %v3563 = vpack.c.bf16 %v3555, %v3555
        %v3564 = vpack.c.bf16 %v3556, %v3556
        %v3565 = vpack.c.bf16 %v3557, %v3557
        %v3566 = vpack.c.bf16 %v3558, %v3558
        %v3567 = vpack.c.bf16 %v3559, %v3559
        %v3568 = vpack.c.bf16 %v3560, %v3560
        %v3569 = vpack.c.bf16 %v3561, %v3561
        %v3570 = vpack.c.bf16 %v3562, %v3562
        %3571 = vrot.lane.b32.xlu0 %v1135, 48
        %v3572 = vpop.permute.xlu0 %3571
        %v3574 = vsel %vm1145, %v3563, 0
        %v3577 = vsel %vm1685, %v3572, 0
        %3579 = vmatprep.subr.bf16.mxu0 0
        %3580 = vmatpush1.bf16.msra.mxu0 0
        %3581 = vmatprep.subr.bf16.mxu0 0
        %3582 = vmatpush1.bf16.msra.mxu0 0
        %3583 = vmatprep.subr.bf16.mxu0 0
        %3584 = vmatpush1.bf16.msra.mxu0 0
        %3585 = vmatprep.subr.bf16.mxu0 0
        %3586 = vmatpush1.bf16.msra.mxu0 0
        %3587 = vmatprep.subr.bf16.mxu0 0
        %3588 = vmatpush1.bf16.msra.mxu0 0
        %3589 = vmatprep.subr.bf16.mxu0 0
        %3590 = vmatpush1.bf16.msra.mxu0 0
        %3591 = vmatprep.subr.bf16.mxu0 0
        %3592 = vmatpush1.bf16.msra.mxu0 0
        %3593 = vmatprep.subr.bf16.mxu0 0
        %3594 = vmatpush1.bf16.msra.mxu0 %v3577
        %3595 = vmatprep.subr.bf16.mxu0 0
        %3596 = vmatpush2.bf16.msra.mxu0 0
        %3597 = vmatprep.subr.bf16.mxu0 0
        %3598 = vmatpush2.bf16.msra.mxu0 0
        %3599 = vmatprep.subr.bf16.mxu0 0
        %3600 = vmatpush2.bf16.msra.mxu0 0
        %3601 = vmatprep.subr.bf16.mxu0 0
        %3602 = vmatpush2.bf16.msra.mxu0 0
        %3603 = vmatprep.subr.bf16.mxu0 0
        %3604 = vmatpush2.bf16.msra.mxu0 0
        %3605 = vmatprep.subr.bf16.mxu0 0
        %3606 = vmatpush2.bf16.msra.mxu0 0
        %3607 = vmatprep.subr.bf16.mxu0 0
        %3608 = vmatpush2.bf16.msra.mxu0 0
        %3609 = vmatprep.subr.bf16.mxu0 0
        %3610 = vmatpush2.bf16.msra.mxu0 0
        %3611 = vmatprep.mubr.bf16.mxu0 0
        %3612 = vmatmul.mubr.bf16.gmra.mxu0 %v3574
        %v3613 = vpop.f32.mrf.mxu0
        %v3614 = vadd.f32 0.0, %v3613
        %v3615 = vpop.f32.mrf.mxu0
        %v3616 = vpop.f32.mrf.mxu0
        %v3617 = vpop.f32.mrf.mxu0
        %3618 = vdwg.mxu0
        %3619 = vrot.lane.b32.xlu0 %v1136, 48
        %v3620 = vpop.permute.xlu0 %3619
        %v3622 = vsel %vm1145, %v3564, 0
        %v3625 = vsel %vm1685, %v3620, 0
        %3627 = vmatprep.subr.bf16.mxu0 0
        %3628 = vmatpush1.bf16.msra.mxu0 0
        %3629 = vmatprep.subr.bf16.mxu0 0
        %3630 = vmatpush1.bf16.msra.mxu0 0
        %3631 = vmatprep.subr.bf16.mxu0 0
        %3632 = vmatpush1.bf16.msra.mxu0 0
        %3633 = vmatprep.subr.bf16.mxu0 0
        %3634 = vmatpush1.bf16.msra.mxu0 0
        %3635 = vmatprep.subr.bf16.mxu0 0
        %3636 = vmatpush1.bf16.msra.mxu0 0
        %3637 = vmatprep.subr.bf16.mxu0 0
        %3638 = vmatpush1.bf16.msra.mxu0 0
        %3639 = vmatprep.subr.bf16.mxu0 0
        %3640 = vmatpush1.bf16.msra.mxu0 0
        %3641 = vmatprep.subr.bf16.mxu0 0
        %3642 = vmatpush1.bf16.msra.mxu0 %v3625
        %3643 = vmatprep.subr.bf16.mxu0 0
        %3644 = vmatpush2.bf16.msra.mxu0 0
        %3645 = vmatprep.subr.bf16.mxu0 0
        %3646 = vmatpush2.bf16.msra.mxu0 0
        %3647 = vmatprep.subr.bf16.mxu0 0
        %3648 = vmatpush2.bf16.msra.mxu0 0
        %3649 = vmatprep.subr.bf16.mxu0 0
        %3650 = vmatpush2.bf16.msra.mxu0 0
        %3651 = vmatprep.subr.bf16.mxu0 0
        %3652 = vmatpush2.bf16.msra.mxu0 0
        %3653 = vmatprep.subr.bf16.mxu0 0
        %3654 = vmatpush2.bf16.msra.mxu0 0
        %3655 = vmatprep.subr.bf16.mxu0 0
        %3656 = vmatpush2.bf16.msra.mxu0 0
        %3657 = vmatprep.subr.bf16.mxu0 0
        %3658 = vmatpush2.bf16.msra.mxu0 0
        %3659 = vmatprep.mubr.bf16.mxu0 0
        %3660 = vmatmul.mubr.bf16.gmra.mxu0 %v3622
        %v3661 = vpop.f32.mrf.mxu0
        %v3662 = vadd.f32 0.0, %v3661
        %v3663 = vpop.f32.mrf.mxu0
        %v3664 = vpop.f32.mrf.mxu0
        %v3665 = vpop.f32.mrf.mxu0
        %3666 = vdwg.mxu0
        %3667 = vrot.lane.b32.xlu0 %v1137, 48
        %v3668 = vpop.permute.xlu0 %3667
        %v3670 = vsel %vm1145, %v3565, 0
        %v3673 = vsel %vm1685, %v3668, 0
        %3675 = vmatprep.subr.bf16.mxu0 0
        %3676 = vmatpush1.bf16.msra.mxu0 0
        %3677 = vmatprep.subr.bf16.mxu0 0
        %3678 = vmatpush1.bf16.msra.mxu0 0
        %3679 = vmatprep.subr.bf16.mxu0 0
        %3680 = vmatpush1.bf16.msra.mxu0 0
        %3681 = vmatprep.subr.bf16.mxu0 0
        %3682 = vmatpush1.bf16.msra.mxu0 0
        %3683 = vmatprep.subr.bf16.mxu0 0
        %3684 = vmatpush1.bf16.msra.mxu0 0
        %3685 = vmatprep.subr.bf16.mxu0 0
        %3686 = vmatpush1.bf16.msra.mxu0 0
        %3687 = vmatprep.subr.bf16.mxu0 0
        %3688 = vmatpush1.bf16.msra.mxu0 0
        %3689 = vmatprep.subr.bf16.mxu0 0
        %3690 = vmatpush1.bf16.msra.mxu0 %v3673
        %3691 = vmatprep.subr.bf16.mxu0 0
        %3692 = vmatpush2.bf16.msra.mxu0 0
        %3693 = vmatprep.subr.bf16.mxu0 0
        %3694 = vmatpush2.bf16.msra.mxu0 0
        %3695 = vmatprep.subr.bf16.mxu0 0
        %3696 = vmatpush2.bf16.msra.mxu0 0
        %3697 = vmatprep.subr.bf16.mxu0 0
        %3698 = vmatpush2.bf16.msra.mxu0 0
        %3699 = vmatprep.subr.bf16.mxu0 0
        %3700 = vmatpush2.bf16.msra.mxu0 0
        %3701 = vmatprep.subr.bf16.mxu0 0
        %3702 = vmatpush2.bf16.msra.mxu0 0
        %3703 = vmatprep.subr.bf16.mxu0 0
        %3704 = vmatpush2.bf16.msra.mxu0 0
        %3705 = vmatprep.subr.bf16.mxu0 0
        %3706 = vmatpush2.bf16.msra.mxu0 0
        %3707 = vmatprep.mubr.bf16.mxu0 0
        %3708 = vmatmul.mubr.bf16.gmra.mxu0 %v3670
        %v3709 = vpop.f32.mrf.mxu0
        %v3710 = vadd.f32 0.0, %v3709
        %v3711 = vpop.f32.mrf.mxu0
        %v3712 = vpop.f32.mrf.mxu0
        %v3713 = vpop.f32.mrf.mxu0
        %3714 = vdwg.mxu0
        %3715 = vrot.lane.b32.xlu0 %v1138, 48
        %v3716 = vpop.permute.xlu0 %3715
        %v3718 = vsel %vm1145, %v3566, 0
        %v3721 = vsel %vm1685, %v3716, 0
        %3723 = vmatprep.subr.bf16.mxu0 0
        %3724 = vmatpush1.bf16.msra.mxu0 0
        %3725 = vmatprep.subr.bf16.mxu0 0
        %3726 = vmatpush1.bf16.msra.mxu0 0
        %3727 = vmatprep.subr.bf16.mxu0 0
        %3728 = vmatpush1.bf16.msra.mxu0 0
        %3729 = vmatprep.subr.bf16.mxu0 0
        %3730 = vmatpush1.bf16.msra.mxu0 0
        %3731 = vmatprep.subr.bf16.mxu0 0
        %3732 = vmatpush1.bf16.msra.mxu0 0
        %3733 = vmatprep.subr.bf16.mxu0 0
        %3734 = vmatpush1.bf16.msra.mxu0 0
        %3735 = vmatprep.subr.bf16.mxu0 0
        %3736 = vmatpush1.bf16.msra.mxu0 0
        %3737 = vmatprep.subr.bf16.mxu0 0
        %3738 = vmatpush1.bf16.msra.mxu0 %v3721
        %3739 = vmatprep.subr.bf16.mxu0 0
        %3740 = vmatpush2.bf16.msra.mxu0 0
        %3741 = vmatprep.subr.bf16.mxu0 0
        %3742 = vmatpush2.bf16.msra.mxu0 0
        %3743 = vmatprep.subr.bf16.mxu0 0
        %3744 = vmatpush2.bf16.msra.mxu0 0
        %3745 = vmatprep.subr.bf16.mxu0 0
        %3746 = vmatpush2.bf16.msra.mxu0 0
        %3747 = vmatprep.subr.bf16.mxu0 0
        %3748 = vmatpush2.bf16.msra.mxu0 0
        %3749 = vmatprep.subr.bf16.mxu0 0
        %3750 = vmatpush2.bf16.msra.mxu0 0
        %3751 = vmatprep.subr.bf16.mxu0 0
        %3752 = vmatpush2.bf16.msra.mxu0 0
        %3753 = vmatprep.subr.bf16.mxu0 0
        %3754 = vmatpush2.bf16.msra.mxu0 0
        %3755 = vmatprep.mubr.bf16.mxu0 0
        %3756 = vmatmul.mubr.bf16.gmra.mxu0 %v3718
        %v3757 = vpop.f32.mrf.mxu0
        %v3758 = vadd.f32 0.0, %v3757
        %v3759 = vpop.f32.mrf.mxu0
        %v3760 = vpop.f32.mrf.mxu0
        %v3761 = vpop.f32.mrf.mxu0
        %3762 = vdwg.mxu0
        %3763 = vrot.lane.b32.xlu0 %v1139, 48
        %v3764 = vpop.permute.xlu0 %3763
        %v3766 = vsel %vm1145, %v3567, 0
        %v3769 = vsel %vm1685, %v3764, 0
        %3771 = vmatprep.subr.bf16.mxu0 0
        %3772 = vmatpush1.bf16.msra.mxu0 0
        %3773 = vmatprep.subr.bf16.mxu0 0
        %3774 = vmatpush1.bf16.msra.mxu0 0
        %3775 = vmatprep.subr.bf16.mxu0 0
        %3776 = vmatpush1.bf16.msra.mxu0 0
        %3777 = vmatprep.subr.bf16.mxu0 0
        %3778 = vmatpush1.bf16.msra.mxu0 0
        %3779 = vmatprep.subr.bf16.mxu0 0
        %3780 = vmatpush1.bf16.msra.mxu0 0
        %3781 = vmatprep.subr.bf16.mxu0 0
        %3782 = vmatpush1.bf16.msra.mxu0 0
        %3783 = vmatprep.subr.bf16.mxu0 0
        %3784 = vmatpush1.bf16.msra.mxu0 0
        %3785 = vmatprep.subr.bf16.mxu0 0
        %3786 = vmatpush1.bf16.msra.mxu0 %v3769
        %3787 = vmatprep.subr.bf16.mxu0 0
        %3788 = vmatpush2.bf16.msra.mxu0 0
        %3789 = vmatprep.subr.bf16.mxu0 0
        %3790 = vmatpush2.bf16.msra.mxu0 0
        %3791 = vmatprep.subr.bf16.mxu0 0
        %3792 = vmatpush2.bf16.msra.mxu0 0
        %3793 = vmatprep.subr.bf16.mxu0 0
        %3794 = vmatpush2.bf16.msra.mxu0 0
        %3795 = vmatprep.subr.bf16.mxu0 0
        %3796 = vmatpush2.bf16.msra.mxu0 0
        %3797 = vmatprep.subr.bf16.mxu0 0
        %3798 = vmatpush2.bf16.msra.mxu0 0
        %3799 = vmatprep.subr.bf16.mxu0 0
        %3800 = vmatpush2.bf16.msra.mxu0 0
        %3801 = vmatprep.subr.bf16.mxu0 0
        %3802 = vmatpush2.bf16.msra.mxu0 0
        %3803 = vmatprep.mubr.bf16.mxu0 0
        %3804 = vmatmul.mubr.bf16.gmra.mxu0 %v3766
        %v3805 = vpop.f32.mrf.mxu0
        %v3806 = vadd.f32 0.0, %v3805
        %v3807 = vpop.f32.mrf.mxu0
        %v3808 = vpop.f32.mrf.mxu0
        %v3809 = vpop.f32.mrf.mxu0
        %3810 = vdwg.mxu0
        %3811 = vrot.lane.b32.xlu0 %v1140, 48
        %v3812 = vpop.permute.xlu0 %3811
        %v3814 = vsel %vm1145, %v3568, 0
        %v3817 = vsel %vm1685, %v3812, 0
        %3819 = vmatprep.subr.bf16.mxu0 0
        %3820 = vmatpush1.bf16.msra.mxu0 0
        %3821 = vmatprep.subr.bf16.mxu0 0
        %3822 = vmatpush1.bf16.msra.mxu0 0
        %3823 = vmatprep.subr.bf16.mxu0 0
        %3824 = vmatpush1.bf16.msra.mxu0 0
        %3825 = vmatprep.subr.bf16.mxu0 0
        %3826 = vmatpush1.bf16.msra.mxu0 0
        %3827 = vmatprep.subr.bf16.mxu0 0
        %3828 = vmatpush1.bf16.msra.mxu0 0
        %3829 = vmatprep.subr.bf16.mxu0 0
        %3830 = vmatpush1.bf16.msra.mxu0 0
        %3831 = vmatprep.subr.bf16.mxu0 0
        %3832 = vmatpush1.bf16.msra.mxu0 0
        %3833 = vmatprep.subr.bf16.mxu0 0
        %3834 = vmatpush1.bf16.msra.mxu0 %v3817
        %3835 = vmatprep.subr.bf16.mxu0 0
        %3836 = vmatpush2.bf16.msra.mxu0 0
        %3837 = vmatprep.subr.bf16.mxu0 0
        %3838 = vmatpush2.bf16.msra.mxu0 0
        %3839 = vmatprep.subr.bf16.mxu0 0
        %3840 = vmatpush2.bf16.msra.mxu0 0
        %3841 = vmatprep.subr.bf16.mxu0 0
        %3842 = vmatpush2.bf16.msra.mxu0 0
        %3843 = vmatprep.subr.bf16.mxu0 0
        %3844 = vmatpush2.bf16.msra.mxu0 0
        %3845 = vmatprep.subr.bf16.mxu0 0
        %3846 = vmatpush2.bf16.msra.mxu0 0
        %3847 = vmatprep.subr.bf16.mxu0 0
        %3848 = vmatpush2.bf16.msra.mxu0 0
        %3849 = vmatprep.subr.bf16.mxu0 0
        %3850 = vmatpush2.bf16.msra.mxu0 0
        %3851 = vmatprep.mubr.bf16.mxu0 0
        %3852 = vmatmul.mubr.bf16.gmra.mxu0 %v3814
        %v3853 = vpop.f32.mrf.mxu0
        %v3854 = vadd.f32 0.0, %v3853
        %v3855 = vpop.f32.mrf.mxu0
        %v3856 = vpop.f32.mrf.mxu0
        %v3857 = vpop.f32.mrf.mxu0
        %3858 = vdwg.mxu0
        %3859 = vrot.lane.b32.xlu0 %v1141, 48
        %v3860 = vpop.permute.xlu0 %3859
        %v3862 = vsel %vm1145, %v3569, 0
        %v3865 = vsel %vm1685, %v3860, 0
        %3867 = vmatprep.subr.bf16.mxu0 0
        %3868 = vmatpush1.bf16.msra.mxu0 0
        %3869 = vmatprep.subr.bf16.mxu0 0
        %3870 = vmatpush1.bf16.msra.mxu0 0
        %3871 = vmatprep.subr.bf16.mxu0 0
        %3872 = vmatpush1.bf16.msra.mxu0 0
        %3873 = vmatprep.subr.bf16.mxu0 0
        %3874 = vmatpush1.bf16.msra.mxu0 0
        %3875 = vmatprep.subr.bf16.mxu0 0
        %3876 = vmatpush1.bf16.msra.mxu0 0
        %3877 = vmatprep.subr.bf16.mxu0 0
        %3878 = vmatpush1.bf16.msra.mxu0 0
        %3879 = vmatprep.subr.bf16.mxu0 0
        %3880 = vmatpush1.bf16.msra.mxu0 0
        %3881 = vmatprep.subr.bf16.mxu0 0
        %3882 = vmatpush1.bf16.msra.mxu0 %v3865
        %3883 = vmatprep.subr.bf16.mxu0 0
        %3884 = vmatpush2.bf16.msra.mxu0 0
        %3885 = vmatprep.subr.bf16.mxu0 0
        %3886 = vmatpush2.bf16.msra.mxu0 0
        %3887 = vmatprep.subr.bf16.mxu0 0
        %3888 = vmatpush2.bf16.msra.mxu0 0
        %3889 = vmatprep.subr.bf16.mxu0 0
        %3890 = vmatpush2.bf16.msra.mxu0 0
        %3891 = vmatprep.subr.bf16.mxu0 0
        %3892 = vmatpush2.bf16.msra.mxu0 0
        %3893 = vmatprep.subr.bf16.mxu0 0
        %3894 = vmatpush2.bf16.msra.mxu0 0
        %3895 = vmatprep.subr.bf16.mxu0 0
        %3896 = vmatpush2.bf16.msra.mxu0 0
        %3897 = vmatprep.subr.bf16.mxu0 0
        %3898 = vmatpush2.bf16.msra.mxu0 0
        %3899 = vmatprep.mubr.bf16.mxu0 0
        %3900 = vmatmul.mubr.bf16.gmra.mxu0 %v3862
        %v3901 = vpop.f32.mrf.mxu0
        %v3902 = vadd.f32 0.0, %v3901
        %v3903 = vpop.f32.mrf.mxu0
        %v3904 = vpop.f32.mrf.mxu0
        %v3905 = vpop.f32.mrf.mxu0
        %3906 = vdwg.mxu0
        %3907 = vrot.lane.b32.xlu0 %v1142, 48
        %v3908 = vpop.permute.xlu0 %3907
        %v3910 = vsel %vm1145, %v3570, 0
        %v3913 = vsel %vm1685, %v3908, 0
        %3915 = vmatprep.subr.bf16.mxu0 0
        %3916 = vmatpush1.bf16.msra.mxu0 0
        %3917 = vmatprep.subr.bf16.mxu0 0
        %3918 = vmatpush1.bf16.msra.mxu0 0
        %3919 = vmatprep.subr.bf16.mxu0 0
        %3920 = vmatpush1.bf16.msra.mxu0 0
        %3921 = vmatprep.subr.bf16.mxu0 0
        %3922 = vmatpush1.bf16.msra.mxu0 0
        %3923 = vmatprep.subr.bf16.mxu0 0
        %3924 = vmatpush1.bf16.msra.mxu0 0
        %3925 = vmatprep.subr.bf16.mxu0 0
        %3926 = vmatpush1.bf16.msra.mxu0 0
        %3927 = vmatprep.subr.bf16.mxu0 0
        %3928 = vmatpush1.bf16.msra.mxu0 0
        %3929 = vmatprep.subr.bf16.mxu0 0
        %3930 = vmatpush1.bf16.msra.mxu0 %v3913
        %3931 = vmatprep.subr.bf16.mxu0 0
        %3932 = vmatpush2.bf16.msra.mxu0 0
        %3933 = vmatprep.subr.bf16.mxu0 0
        %3934 = vmatpush2.bf16.msra.mxu0 0
        %3935 = vmatprep.subr.bf16.mxu0 0
        %3936 = vmatpush2.bf16.msra.mxu0 0
        %3937 = vmatprep.subr.bf16.mxu0 0
        %3938 = vmatpush2.bf16.msra.mxu0 0
        %3939 = vmatprep.subr.bf16.mxu0 0
        %3940 = vmatpush2.bf16.msra.mxu0 0
        %3941 = vmatprep.subr.bf16.mxu0 0
        %3942 = vmatpush2.bf16.msra.mxu0 0
        %3943 = vmatprep.subr.bf16.mxu0 0
        %3944 = vmatpush2.bf16.msra.mxu0 0
        %3945 = vmatprep.subr.bf16.mxu0 0
        %3946 = vmatpush2.bf16.msra.mxu0 0
        %3947 = vmatprep.mubr.bf16.mxu0 0
        %3948 = vmatmul.mubr.bf16.gmra.mxu0 %v3910
        %v3949 = vpop.f32.mrf.mxu0
        %v3950 = vadd.f32 0.0, %v3949
        %v3951 = vpop.f32.mrf.mxu0
        %v3952 = vpop.f32.mrf.mxu0
        %v3953 = vpop.f32.mrf.mxu0
        %3954 = vdwg.mxu0
        %v3955 = vpack.c.bf16 %v3662, %v3614
        %v3956 = vpack.c.bf16 %v3758, %v3710
        %v3957 = vpack.c.bf16 %v3854, %v3806
        %v3958 = vpack.c.bf16 %v3950, %v3902
        %v3963 = vunpack.c.l.b16 %v3955
        %v3964 = vunpack.c.h.b16 %v3955
        %v3965 = vunpack.c.l.b16 %v3956
        %v3966 = vunpack.c.h.b16 %v3956
        %v3967 = vunpack.c.l.b16 %v3957
        %v3968 = vunpack.c.h.b16 %v3957
        %v3969 = vunpack.c.l.b16 %v3958
        %v3970 = vunpack.c.h.b16 %v3958
        %v3971 = vpack.c.b16 %v3963, %v3963
        %v3972 = vpack.c.b16 %v3964, %v3964
        %v3973 = vpack.c.b16 %v3965, %v3965
        %v3974 = vpack.c.b16 %v3966, %v3966
        %v3975 = vpack.c.b16 %v3967, %v3967
        %v3976 = vpack.c.b16 %v3968, %v3968
        %v3977 = vpack.c.b16 %v3969, %v3969
        %v3978 = vpack.c.b16 %v3970, %v3970
        %3979 = vrot.lane.b32.xlu0 %v3971, 16
        %v3980 = vpop.permute.xlu0 %3979
        %3981 = vrot.lane.b32.xlu0 %v3972, 16
        %v3982 = vpop.permute.xlu0 %3981
        %3983 = vrot.lane.b32.xlu0 %v3973, 16
        %v3984 = vpop.permute.xlu0 %3983
        %3985 = vrot.lane.b32.xlu0 %v3974, 16
        %v3986 = vpop.permute.xlu0 %3985
        %3987 = vrot.lane.b32.xlu0 %v3975, 16
        %v3988 = vpop.permute.xlu0 %3987
        %3989 = vrot.lane.b32.xlu0 %v3976, 16
        %v3990 = vpop.permute.xlu0 %3989
        %3991 = vrot.lane.b32.xlu0 %v3977, 16
        %v3992 = vpop.permute.xlu0 %3991
        %3993 = vrot.lane.b32.xlu0 %v3978, 16
        %v3994 = vpop.permute.xlu0 %3993
        %vm4003 = vcmask 191616
        %4004 = vst.msk [vmem:[#allocation3] sm:$0xf] %vm4003, %v3980
        %4005 = vst.msk [vmem:[#allocation3 + $0x4] sm:$0xf] %vm4003, %v3982
        %4006 = vst.msk [vmem:[#allocation3 + $0x8] sm:$0xf] %vm4003, %v3984
        %4007 = vst.msk [vmem:[#allocation3 + $0xc] sm:$0xf] %vm4003, %v3986
        %4008 = vst.msk [vmem:[#allocation3 + $0x10] sm:$0xf] %vm4003, %v3988
        %4009 = vst.msk [vmem:[#allocation3 + $0x14] sm:$0xf] %vm4003, %v3990
        %4010 = vst.msk [vmem:[#allocation3 + $0x18] sm:$0xf] %vm4003, %v3992
        %4011 = vst.msk [vmem:[#allocation3 + $0x1c] sm:$0xf] %vm4003, %v3994
        %4012 = vrot.lane.b32.xlu0 %v1135, 104
        %v4013 = vpop.permute.xlu0 %4012
        %4014 = vrot.lane.b32.xlu0 %v1135, 72
        %v4015 = vpop.permute.xlu0 %4014
        %v4017 = vsel %vm1145, %v4013, 0
        %v4020 = vsel %vm1145, %v4015, 0
        %4022 = vmatprep.subr.bf16.mxu0 0
        %4023 = vmatpush1.bf16.xpose.msra.mxu0 0
        %4024 = vmatprep.subr.bf16.mxu0 0
        %4025 = vmatpush1.bf16.xpose.msra.mxu0 0
        %4026 = vmatprep.subr.bf16.mxu0 0
        %4027 = vmatpush1.bf16.xpose.msra.mxu0 0
        %4028 = vmatprep.subr.bf16.mxu0 0
        %4029 = vmatpush1.bf16.xpose.msra.mxu0 0
        %4030 = vmatprep.subr.bf16.mxu0 0
        %4031 = vmatpush1.bf16.xpose.msra.mxu0 0
        %4032 = vmatprep.subr.bf16.mxu0 0
        %4033 = vmatpush1.bf16.xpose.msra.mxu0 0
        %4034 = vmatprep.subr.bf16.mxu0 0
        %4035 = vmatpush1.bf16.xpose.msra.mxu0 0
        %4036 = vmatprep.subr.bf16.mxu0 0
        %4037 = vmatpush1.bf16.xpose.msra.mxu0 %v4020
        %4038 = vmatprep.subr.bf16.mxu0 0
        %4039 = vmatpush2.bf16.xpose.msra.mxu0 0
        %4040 = vmatprep.subr.bf16.mxu0 0
        %4041 = vmatpush2.bf16.xpose.msra.mxu0 0
        %4042 = vmatprep.subr.bf16.mxu0 0
        %4043 = vmatpush2.bf16.xpose.msra.mxu0 0
        %4044 = vmatprep.subr.bf16.mxu0 0
        %4045 = vmatpush2.bf16.xpose.msra.mxu0 0
        %4046 = vmatprep.subr.bf16.mxu0 0
        %4047 = vmatpush2.bf16.xpose.msra.mxu0 0
        %4048 = vmatprep.subr.bf16.mxu0 0
        %4049 = vmatpush2.bf16.xpose.msra.mxu0 0
        %4050 = vmatprep.subr.bf16.mxu0 0
        %4051 = vmatpush2.bf16.xpose.msra.mxu0 0
        %4052 = vmatprep.subr.bf16.mxu0 0
        %4053 = vmatpush2.bf16.xpose.msra.mxu0 0
        %4054 = vmatprep.mubr.bf16.mxu0 0
        %4055 = vmatmul.mubr.bf16.gmra.mxu0 %v4017
        %v4056 = vpop.f32.mrf.mxu0
        %v4057 = vadd.f32 0.0, %v4056
        %v4058 = vpop.f32.mrf.mxu0
        %v4059 = vpop.f32.mrf.mxu0
        %v4060 = vpop.f32.mrf.mxu0
        %4061 = vdwg.mxu0
        %4062 = vrot.lane.b32.xlu0 %v1136, 104
        %v4063 = vpop.permute.xlu0 %4062
        %4064 = vrot.lane.b32.xlu0 %v1136, 72
        %v4065 = vpop.permute.xlu0 %4064
        %v4067 = vsel %vm1145, %v4063, 0
        %v4070 = vsel %vm1145, %v4065, 0
        %4072 = vmatprep.subr.bf16.mxu0 0
        %4073 = vmatpush1.bf16.xpose.msra.mxu0 0
        %4074 = vmatprep.subr.bf16.mxu0 0
        %4075 = vmatpush1.bf16.xpose.msra.mxu0 0
        %4076 = vmatprep.subr.bf16.mxu0 0
        %4077 = vmatpush1.bf16.xpose.msra.mxu0 0
        %4078 = vmatprep.subr.bf16.mxu0 0
        %4079 = vmatpush1.bf16.xpose.msra.mxu0 0
        %4080 = vmatprep.subr.bf16.mxu0 0
        %4081 = vmatpush1.bf16.xpose.msra.mxu0 0
        %4082 = vmatprep.subr.bf16.mxu0 0
        %4083 = vmatpush1.bf16.xpose.msra.mxu0 0
        %4084 = vmatprep.subr.bf16.mxu0 0
        %4085 = vmatpush1.bf16.xpose.msra.mxu0 0
        %4086 = vmatprep.subr.bf16.mxu0 0
        %4087 = vmatpush1.bf16.xpose.msra.mxu0 %v4070
        %4088 = vmatprep.subr.bf16.mxu0 0
        %4089 = vmatpush2.bf16.xpose.msra.mxu0 0
        %4090 = vmatprep.subr.bf16.mxu0 0
        %4091 = vmatpush2.bf16.xpose.msra.mxu0 0
        %4092 = vmatprep.subr.bf16.mxu0 0
        %4093 = vmatpush2.bf16.xpose.msra.mxu0 0
        %4094 = vmatprep.subr.bf16.mxu0 0
        %4095 = vmatpush2.bf16.xpose.msra.mxu0 0
        %4096 = vmatprep.subr.bf16.mxu0 0
        %4097 = vmatpush2.bf16.xpose.msra.mxu0 0
        %4098 = vmatprep.subr.bf16.mxu0 0
        %4099 = vmatpush2.bf16.xpose.msra.mxu0 0
        %4100 = vmatprep.subr.bf16.mxu0 0
        %4101 = vmatpush2.bf16.xpose.msra.mxu0 0
        %4102 = vmatprep.subr.bf16.mxu0 0
        %4103 = vmatpush2.bf16.xpose.msra.mxu0 0
        %4104 = vmatprep.mubr.bf16.mxu0 0
        %4105 = vmatmul.mubr.bf16.gmra.mxu0 %v4067
        %v4106 = vpop.f32.mrf.mxu0
        %v4107 = vadd.f32 0.0, %v4106
        %v4108 = vpop.f32.mrf.mxu0
        %v4109 = vpop.f32.mrf.mxu0
        %v4110 = vpop.f32.mrf.mxu0
        %4111 = vdwg.mxu0
        %4112 = vrot.lane.b32.xlu0 %v1137, 104
        %v4113 = vpop.permute.xlu0 %4112
        %4114 = vrot.lane.b32.xlu0 %v1137, 72
        %v4115 = vpop.permute.xlu0 %4114
        %v4117 = vsel %vm1145, %v4113, 0
        %v4120 = vsel %vm1145, %v4115, 0
        %4122 = vmatprep.subr.bf16.mxu0 0
        %4123 = vmatpush1.bf16.xpose.msra.mxu0 0
        %4124 = vmatprep.subr.bf16.mxu0 0
        %4125 = vmatpush1.bf16.xpose.msra.mxu0 0
        %4126 = vmatprep.subr.bf16.mxu0 0
        %4127 = vmatpush1.bf16.xpose.msra.mxu0 0
        %4128 = vmatprep.subr.bf16.mxu0 0
        %4129 = vmatpush1.bf16.xpose.msra.mxu0 0
        %4130 = vmatprep.subr.bf16.mxu0 0
        %4131 = vmatpush1.bf16.xpose.msra.mxu0 0
        %4132 = vmatprep.subr.bf16.mxu0 0
        %4133 = vmatpush1.bf16.xpose.msra.mxu0 0
        %4134 = vmatprep.subr.bf16.mxu0 0
        %4135 = vmatpush1.bf16.xpose.msra.mxu0 0
        %4136 = vmatprep.subr.bf16.mxu0 0
        %4137 = vmatpush1.bf16.xpose.msra.mxu0 %v4120
        %4138 = vmatprep.subr.bf16.mxu0 0
        %4139 = vmatpush2.bf16.xpose.msra.mxu0 0
        %4140 = vmatprep.subr.bf16.mxu0 0
        %4141 = vmatpush2.bf16.xpose.msra.mxu0 0
        %4142 = vmatprep.subr.bf16.mxu0 0
        %4143 = vmatpush2.bf16.xpose.msra.mxu0 0
        %4144 = vmatprep.subr.bf16.mxu0 0
        %4145 = vmatpush2.bf16.xpose.msra.mxu0 0
        %4146 = vmatprep.subr.bf16.mxu0 0
        %4147 = vmatpush2.bf16.xpose.msra.mxu0 0
        %4148 = vmatprep.subr.bf16.mxu0 0
        %4149 = vmatpush2.bf16.xpose.msra.mxu0 0
        %4150 = vmatprep.subr.bf16.mxu0 0
        %4151 = vmatpush2.bf16.xpose.msra.mxu0 0
        %4152 = vmatprep.subr.bf16.mxu0 0
        %4153 = vmatpush2.bf16.xpose.msra.mxu0 0
        %4154 = vmatprep.mubr.bf16.mxu0 0
        %4155 = vmatmul.mubr.bf16.gmra.mxu0 %v4117
        %v4156 = vpop.f32.mrf.mxu0
        %v4157 = vadd.f32 0.0, %v4156
        %v4158 = vpop.f32.mrf.mxu0
        %v4159 = vpop.f32.mrf.mxu0
        %v4160 = vpop.f32.mrf.mxu0
        %4161 = vdwg.mxu0
        %4162 = vrot.lane.b32.xlu0 %v1138, 104
        %v4163 = vpop.permute.xlu0 %4162
        %4164 = vrot.lane.b32.xlu0 %v1138, 72
        %v4165 = vpop.permute.xlu0 %4164
        %v4167 = vsel %vm1145, %v4163, 0
        %v4170 = vsel %vm1145, %v4165, 0
        %4172 = vmatprep.subr.bf16.mxu0 0
        %4173 = vmatpush1.bf16.xpose.msra.mxu0 0
        %4174 = vmatprep.subr.bf16.mxu0 0
        %4175 = vmatpush1.bf16.xpose.msra.mxu0 0
        %4176 = vmatprep.subr.bf16.mxu0 0
        %4177 = vmatpush1.bf16.xpose.msra.mxu0 0
        %4178 = vmatprep.subr.bf16.mxu0 0
        %4179 = vmatpush1.bf16.xpose.msra.mxu0 0
        %4180 = vmatprep.subr.bf16.mxu0 0
        %4181 = vmatpush1.bf16.xpose.msra.mxu0 0
        %4182 = vmatprep.subr.bf16.mxu0 0
        %4183 = vmatpush1.bf16.xpose.msra.mxu0 0
        %4184 = vmatprep.subr.bf16.mxu0 0
        %4185 = vmatpush1.bf16.xpose.msra.mxu0 0
        %4186 = vmatprep.subr.bf16.mxu0 0
        %4187 = vmatpush1.bf16.xpose.msra.mxu0 %v4170
        %4188 = vmatprep.subr.bf16.mxu0 0
        %4189 = vmatpush2.bf16.xpose.msra.mxu0 0
        %4190 = vmatprep.subr.bf16.mxu0 0
        %4191 = vmatpush2.bf16.xpose.msra.mxu0 0
        %4192 = vmatprep.subr.bf16.mxu0 0
        %4193 = vmatpush2.bf16.xpose.msra.mxu0 0
        %4194 = vmatprep.subr.bf16.mxu0 0
        %4195 = vmatpush2.bf16.xpose.msra.mxu0 0
        %4196 = vmatprep.subr.bf16.mxu0 0
        %4197 = vmatpush2.bf16.xpose.msra.mxu0 0
        %4198 = vmatprep.subr.bf16.mxu0 0
        %4199 = vmatpush2.bf16.xpose.msra.mxu0 0
        %4200 = vmatprep.subr.bf16.mxu0 0
        %4201 = vmatpush2.bf16.xpose.msra.mxu0 0
        %4202 = vmatprep.subr.bf16.mxu0 0
        %4203 = vmatpush2.bf16.xpose.msra.mxu0 0
        %4204 = vmatprep.mubr.bf16.mxu0 0
        %4205 = vmatmul.mubr.bf16.gmra.mxu0 %v4167
        %v4206 = vpop.f32.mrf.mxu0
        %v4207 = vadd.f32 0.0, %v4206
        %v4208 = vpop.f32.mrf.mxu0
        %v4209 = vpop.f32.mrf.mxu0
        %v4210 = vpop.f32.mrf.mxu0
        %4211 = vdwg.mxu0
        %4212 = vrot.lane.b32.xlu0 %v1139, 104
        %v4213 = vpop.permute.xlu0 %4212
        %4214 = vrot.lane.b32.xlu0 %v1139, 72
        %v4215 = vpop.permute.xlu0 %4214
        %v4217 = vsel %vm1145, %v4213, 0
        %v4220 = vsel %vm1145, %v4215, 0
        %4222 = vmatprep.subr.bf16.mxu0 0
        %4223 = vmatpush1.bf16.xpose.msra.mxu0 0
        %4224 = vmatprep.subr.bf16.mxu0 0
        %4225 = vmatpush1.bf16.xpose.msra.mxu0 0
        %4226 = vmatprep.subr.bf16.mxu0 0
        %4227 = vmatpush1.bf16.xpose.msra.mxu0 0
        %4228 = vmatprep.subr.bf16.mxu0 0
        %4229 = vmatpush1.bf16.xpose.msra.mxu0 0
        %4230 = vmatprep.subr.bf16.mxu0 0
        %4231 = vmatpush1.bf16.xpose.msra.mxu0 0
        %4232 = vmatprep.subr.bf16.mxu0 0
        %4233 = vmatpush1.bf16.xpose.msra.mxu0 0
        %4234 = vmatprep.subr.bf16.mxu0 0
        %4235 = vmatpush1.bf16.xpose.msra.mxu0 0
        %4236 = vmatprep.subr.bf16.mxu0 0
        %4237 = vmatpush1.bf16.xpose.msra.mxu0 %v4220
        %4238 = vmatprep.subr.bf16.mxu0 0
        %4239 = vmatpush2.bf16.xpose.msra.mxu0 0
        %4240 = vmatprep.subr.bf16.mxu0 0
        %4241 = vmatpush2.bf16.xpose.msra.mxu0 0
        %4242 = vmatprep.subr.bf16.mxu0 0
        %4243 = vmatpush2.bf16.xpose.msra.mxu0 0
        %4244 = vmatprep.subr.bf16.mxu0 0
        %4245 = vmatpush2.bf16.xpose.msra.mxu0 0
        %4246 = vmatprep.subr.bf16.mxu0 0
        %4247 = vmatpush2.bf16.xpose.msra.mxu0 0
        %4248 = vmatprep.subr.bf16.mxu0 0
        %4249 = vmatpush2.bf16.xpose.msra.mxu0 0
        %4250 = vmatprep.subr.bf16.mxu0 0
        %4251 = vmatpush2.bf16.xpose.msra.mxu0 0
        %4252 = vmatprep.subr.bf16.mxu0 0
        %4253 = vmatpush2.bf16.xpose.msra.mxu0 0
        %4254 = vmatprep.mubr.bf16.mxu0 0
        %4255 = vmatmul.mubr.bf16.gmra.mxu0 %v4217
        %v4256 = vpop.f32.mrf.mxu0
        %v4257 = vadd.f32 0.0, %v4256
        %v4258 = vpop.f32.mrf.mxu0
        %v4259 = vpop.f32.mrf.mxu0
        %v4260 = vpop.f32.mrf.mxu0
        %4261 = vdwg.mxu0
        %4262 = vrot.lane.b32.xlu0 %v1140, 104
        %v4263 = vpop.permute.xlu0 %4262
        %4264 = vrot.lane.b32.xlu0 %v1140, 72
        %v4265 = vpop.permute.xlu0 %4264
        %v4267 = vsel %vm1145, %v4263, 0
        %v4270 = vsel %vm1145, %v4265, 0
        %4272 = vmatprep.subr.bf16.mxu0 0
        %4273 = vmatpush1.bf16.xpose.msra.mxu0 0
        %4274 = vmatprep.subr.bf16.mxu0 0
        %4275 = vmatpush1.bf16.xpose.msra.mxu0 0
        %4276 = vmatprep.subr.bf16.mxu0 0
        %4277 = vmatpush1.bf16.xpose.msra.mxu0 0
        %4278 = vmatprep.subr.bf16.mxu0 0
        %4279 = vmatpush1.bf16.xpose.msra.mxu0 0
        %4280 = vmatprep.subr.bf16.mxu0 0
        %4281 = vmatpush1.bf16.xpose.msra.mxu0 0
        %4282 = vmatprep.subr.bf16.mxu0 0
        %4283 = vmatpush1.bf16.xpose.msra.mxu0 0
        %4284 = vmatprep.subr.bf16.mxu0 0
        %4285 = vmatpush1.bf16.xpose.msra.mxu0 0
        %4286 = vmatprep.subr.bf16.mxu0 0
        %4287 = vmatpush1.bf16.xpose.msra.mxu0 %v4270
        %4288 = vmatprep.subr.bf16.mxu0 0
        %4289 = vmatpush2.bf16.xpose.msra.mxu0 0
        %4290 = vmatprep.subr.bf16.mxu0 0
        %4291 = vmatpush2.bf16.xpose.msra.mxu0 0
        %4292 = vmatprep.subr.bf16.mxu0 0
        %4293 = vmatpush2.bf16.xpose.msra.mxu0 0
        %4294 = vmatprep.subr.bf16.mxu0 0
        %4295 = vmatpush2.bf16.xpose.msra.mxu0 0
        %4296 = vmatprep.subr.bf16.mxu0 0
        %4297 = vmatpush2.bf16.xpose.msra.mxu0 0
        %4298 = vmatprep.subr.bf16.mxu0 0
        %4299 = vmatpush2.bf16.xpose.msra.mxu0 0
        %4300 = vmatprep.subr.bf16.mxu0 0
        %4301 = vmatpush2.bf16.xpose.msra.mxu0 0
        %4302 = vmatprep.subr.bf16.mxu0 0
        %4303 = vmatpush2.bf16.xpose.msra.mxu0 0
        %4304 = vmatprep.mubr.bf16.mxu0 0
        %4305 = vmatmul.mubr.bf16.gmra.mxu0 %v4267
        %v4306 = vpop.f32.mrf.mxu0
        %v4307 = vadd.f32 0.0, %v4306
        %v4308 = vpop.f32.mrf.mxu0
        %v4309 = vpop.f32.mrf.mxu0
        %v4310 = vpop.f32.mrf.mxu0
        %4311 = vdwg.mxu0
        %4312 = vrot.lane.b32.xlu0 %v1141, 104
        %v4313 = vpop.permute.xlu0 %4312
        %4314 = vrot.lane.b32.xlu0 %v1141, 72
        %v4315 = vpop.permute.xlu0 %4314
        %v4317 = vsel %vm1145, %v4313, 0
        %v4320 = vsel %vm1145, %v4315, 0
        %4322 = vmatprep.subr.bf16.mxu0 0
        %4323 = vmatpush1.bf16.xpose.msra.mxu0 0
        %4324 = vmatprep.subr.bf16.mxu0 0
        %4325 = vmatpush1.bf16.xpose.msra.mxu0 0
        %4326 = vmatprep.subr.bf16.mxu0 0
        %4327 = vmatpush1.bf16.xpose.msra.mxu0 0
        %4328 = vmatprep.subr.bf16.mxu0 0
        %4329 = vmatpush1.bf16.xpose.msra.mxu0 0
        %4330 = vmatprep.subr.bf16.mxu0 0
        %4331 = vmatpush1.bf16.xpose.msra.mxu0 0
        %4332 = vmatprep.subr.bf16.mxu0 0
        %4333 = vmatpush1.bf16.xpose.msra.mxu0 0
        %4334 = vmatprep.subr.bf16.mxu0 0
        %4335 = vmatpush1.bf16.xpose.msra.mxu0 0
        %4336 = vmatprep.subr.bf16.mxu0 0
        %4337 = vmatpush1.bf16.xpose.msra.mxu0 %v4320
        %4338 = vmatprep.subr.bf16.mxu0 0
        %4339 = vmatpush2.bf16.xpose.msra.mxu0 0
        %4340 = vmatprep.subr.bf16.mxu0 0
        %4341 = vmatpush2.bf16.xpose.msra.mxu0 0
        %4342 = vmatprep.subr.bf16.mxu0 0
        %4343 = vmatpush2.bf16.xpose.msra.mxu0 0
        %4344 = vmatprep.subr.bf16.mxu0 0
        %4345 = vmatpush2.bf16.xpose.msra.mxu0 0
        %4346 = vmatprep.subr.bf16.mxu0 0
        %4347 = vmatpush2.bf16.xpose.msra.mxu0 0
        %4348 = vmatprep.subr.bf16.mxu0 0
        %4349 = vmatpush2.bf16.xpose.msra.mxu0 0
        %4350 = vmatprep.subr.bf16.mxu0 0
        %4351 = vmatpush2.bf16.xpose.msra.mxu0 0
        %4352 = vmatprep.subr.bf16.mxu0 0
        %4353 = vmatpush2.bf16.xpose.msra.mxu0 0
        %4354 = vmatprep.mubr.bf16.mxu0 0
        %4355 = vmatmul.mubr.bf16.gmra.mxu0 %v4317
        %v4356 = vpop.f32.mrf.mxu0
        %v4357 = vadd.f32 0.0, %v4356
        %v4358 = vpop.f32.mrf.mxu0
        %v4359 = vpop.f32.mrf.mxu0
        %v4360 = vpop.f32.mrf.mxu0
        %4361 = vdwg.mxu0
        %4362 = vrot.lane.b32.xlu0 %v1142, 104
        %v4363 = vpop.permute.xlu0 %4362
        %4364 = vrot.lane.b32.xlu0 %v1142, 72
        %v4365 = vpop.permute.xlu0 %4364
        %v4367 = vsel %vm1145, %v4363, 0
        %v4370 = vsel %vm1145, %v4365, 0
        %4372 = vmatprep.subr.bf16.mxu0 0
        %4373 = vmatpush1.bf16.xpose.msra.mxu0 0
        %4374 = vmatprep.subr.bf16.mxu0 0
        %4375 = vmatpush1.bf16.xpose.msra.mxu0 0
        %4376 = vmatprep.subr.bf16.mxu0 0
        %4377 = vmatpush1.bf16.xpose.msra.mxu0 0
        %4378 = vmatprep.subr.bf16.mxu0 0
        %4379 = vmatpush1.bf16.xpose.msra.mxu0 0
        %4380 = vmatprep.subr.bf16.mxu0 0
        %4381 = vmatpush1.bf16.xpose.msra.mxu0 0
        %4382 = vmatprep.subr.bf16.mxu0 0
        %4383 = vmatpush1.bf16.xpose.msra.mxu0 0
        %4384 = vmatprep.subr.bf16.mxu0 0
        %4385 = vmatpush1.bf16.xpose.msra.mxu0 0
        %4386 = vmatprep.subr.bf16.mxu0 0
        %4387 = vmatpush1.bf16.xpose.msra.mxu0 %v4370
        %4388 = vmatprep.subr.bf16.mxu0 0
        %4389 = vmatpush2.bf16.xpose.msra.mxu0 0
        %4390 = vmatprep.subr.bf16.mxu0 0
        %4391 = vmatpush2.bf16.xpose.msra.mxu0 0
        %4392 = vmatprep.subr.bf16.mxu0 0
        %4393 = vmatpush2.bf16.xpose.msra.mxu0 0
        %4394 = vmatprep.subr.bf16.mxu0 0
        %4395 = vmatpush2.bf16.xpose.msra.mxu0 0
        %4396 = vmatprep.subr.bf16.mxu0 0
        %4397 = vmatpush2.bf16.xpose.msra.mxu0 0
        %4398 = vmatprep.subr.bf16.mxu0 0
        %4399 = vmatpush2.bf16.xpose.msra.mxu0 0
        %4400 = vmatprep.subr.bf16.mxu0 0
        %4401 = vmatpush2.bf16.xpose.msra.mxu0 0
        %4402 = vmatprep.subr.bf16.mxu0 0
        %4403 = vmatpush2.bf16.xpose.msra.mxu0 0
        %4404 = vmatprep.mubr.bf16.mxu0 0
        %4405 = vmatmul.mubr.bf16.gmra.mxu0 %v4367
        %v4406 = vpop.f32.mrf.mxu0
        %v4407 = vadd.f32 0.0, %v4406
        %v4408 = vpop.f32.mrf.mxu0
        %v4409 = vpop.f32.mrf.mxu0
        %v4410 = vpop.f32.mrf.mxu0
        %4411 = vdwg.mxu0
        %v4412 = vmul.f32 %v4057, 0.35355338
        %v4413 = vmul.f32 %v4107, 0.35355338
        %v4414 = vmul.f32 %v4157, 0.35355338
        %v4415 = vmul.f32 %v4207, 0.35355338
        %v4416 = vmul.f32 %v4257, 0.35355338
        %v4417 = vmul.f32 %v4307, 0.35355338
        %v4418 = vmul.f32 %v4357, 0.35355338
        %v4419 = vmul.f32 %v4407, 0.35355338
        %v4420 = vadd.f32 %v4412, %v1539
        %v4421 = vadd.f32 %v4413, %v1543
        %v4422 = vadd.f32 %v4414, %v1547
        %v4423 = vadd.f32 %v4415, %v1551
        %v4424 = vadd.f32 %v4416, %v1555
        %v4425 = vadd.f32 %v4417, %v1559
        %v4426 = vadd.f32 %v4418, %v1563
        %v4427 = vadd.f32 %v4419, %v1567
        %v4428 = vsel %vm1145, %v4420, -inf
        %4429 = vmax.xlane.f32.xlu0 %v4428
        %v4430 = vpop.xlane.xlu0 %4429
        %v4431 = vsel %vm1145, %v4421, -inf
        %4432 = vmax.xlane.f32.xlu0 %v4431
        %v4433 = vpop.xlane.xlu0 %4432
        %v4434 = vsel %vm1145, %v4422, -inf
        %4435 = vmax.xlane.f32.xlu0 %v4434
        %v4436 = vpop.xlane.xlu0 %4435
        %v4437 = vsel %vm1145, %v4423, -inf
        %4438 = vmax.xlane.f32.xlu0 %v4437
        %v4439 = vpop.xlane.xlu0 %4438
        %v4440 = vsel %vm1145, %v4424, -inf
        %4441 = vmax.xlane.f32.xlu0 %v4440
        %v4442 = vpop.xlane.xlu0 %4441
        %v4443 = vsel %vm1145, %v4425, -inf
        %4444 = vmax.xlane.f32.xlu0 %v4443
        %v4445 = vpop.xlane.xlu0 %4444
        %v4446 = vsel %vm1145, %v4426, -inf
        %4447 = vmax.xlane.f32.xlu0 %v4446
        %v4448 = vpop.xlane.xlu0 %4447
        %v4449 = vsel %vm1145, %v4427, -inf
        %4450 = vmax.xlane.f32.xlu0 %v4449
        %v4451 = vpop.xlane.xlu0 %4450
        %v4452 = vsub.f32 %v4420, %v4430
        %v4453 = vsub.f32 %v4421, %v4433
        %v4454 = vsub.f32 %v4422, %v4436
        %v4455 = vsub.f32 %v4423, %v4439
        %v4456 = vsub.f32 %v4424, %v4442
        %v4457 = vsub.f32 %v4425, %v4445
        %v4458 = vsub.f32 %v4426, %v4448
        %v4459 = vsub.f32 %v4427, %v4451
        %v4460 = vmul.f32 %v4452, 1.442695
        %v4461 = vpow.pop %v4460
        %v4462 = vmul.f32 %v4453, 1.442695
        %v4463 = vpow.pop %v4462
        %v4464 = vmul.f32 %v4454, 1.442695
        %v4465 = vpow.pop %v4464
        %v4466 = vmul.f32 %v4455, 1.442695
        %v4467 = vpow.pop %v4466
        %v4468 = vmul.f32 %v4456, 1.442695
        %v4469 = vpow.pop %v4468
        %v4470 = vmul.f32 %v4457, 1.442695
        %v4471 = vpow.pop %v4470
        %v4472 = vmul.f32 %v4458, 1.442695
        %v4473 = vpow.pop %v4472
        %v4474 = vmul.f32 %v4459, 1.442695
        %v4475 = vpow.pop %v4474
        %v4476 = vsel %vm1145, %v4461, 0.0
        %4477 = vadd.xlane.f32.xlu0 %v4476
        %v4478 = vpop.xlane.xlu0 %4477
        %v4479 = vsel %vm1145, %v4463, 0.0
        %4480 = vadd.xlane.f32.xlu0 %v4479
        %v4481 = vpop.xlane.xlu0 %4480
        %v4482 = vsel %vm1145, %v4465, 0.0
        %4483 = vadd.xlane.f32.xlu0 %v4482
        %v4484 = vpop.xlane.xlu0 %4483
        %v4485 = vsel %vm1145, %v4467, 0.0
        %4486 = vadd.xlane.f32.xlu0 %v4485
        %v4487 = vpop.xlane.xlu0 %4486
        %v4488 = vsel %vm1145, %v4469, 0.0
        %4489 = vadd.xlane.f32.xlu0 %v4488
        %v4490 = vpop.xlane.xlu0 %4489
        %v4491 = vsel %vm1145, %v4471, 0.0
        %4492 = vadd.xlane.f32.xlu0 %v4491
        %v4493 = vpop.xlane.xlu0 %4492
        %v4494 = vsel %vm1145, %v4473, 0.0
        %4495 = vadd.xlane.f32.xlu0 %v4494
        %v4496 = vpop.xlane.xlu0 %4495
        %v4497 = vsel %vm1145, %v4475, 0.0
        %4498 = vadd.xlane.f32.xlu0 %v4497
        %v4499 = vpop.xlane.xlu0 %4498
        %v4500 = vrcp.pop %v4478
        %v4501 = vrcp.pop %v4481
        %v4502 = vrcp.pop %v4484
        %v4503 = vrcp.pop %v4487
        %v4504 = vrcp.pop %v4490
        %v4505 = vrcp.pop %v4493
        %v4506 = vrcp.pop %v4496
        %v4507 = vrcp.pop %v4499
        %v4508 = vmul.f32 %v4461, %v4500
        %v4509 = vmul.f32 %v4463, %v4501
        %v4510 = vmul.f32 %v4465, %v4502
        %v4511 = vmul.f32 %v4467, %v4503
        %v4512 = vmul.f32 %v4469, %v4504
        %v4513 = vmul.f32 %v4471, %v4505
        %v4514 = vmul.f32 %v4473, %v4506
        %v4515 = vmul.f32 %v4475, %v4507
        %v4516 = vpack.c.bf16 %v4508, %v4508
        %v4517 = vpack.c.bf16 %v4509, %v4509
        %v4518 = vpack.c.bf16 %v4510, %v4510
        %v4519 = vpack.c.bf16 %v4511, %v4511
        %v4520 = vpack.c.bf16 %v4512, %v4512
        %v4521 = vpack.c.bf16 %v4513, %v4513
        %v4522 = vpack.c.bf16 %v4514, %v4514
        %v4523 = vpack.c.bf16 %v4515, %v4515
        %4524 = vrot.lane.b32.xlu0 %v1135, 40
        %v4525 = vpop.permute.xlu0 %4524
        %v4527 = vsel %vm1145, %v4516, 0
        %v4530 = vsel %vm1685, %v4525, 0
        %4532 = vmatprep.subr.bf16.mxu0 0
        %4533 = vmatpush1.bf16.msra.mxu0 0
        %4534 = vmatprep.subr.bf16.mxu0 0
        %4535 = vmatpush1.bf16.msra.mxu0 0
        %4536 = vmatprep.subr.bf16.mxu0 0
        %4537 = vmatpush1.bf16.msra.mxu0 0
        %4538 = vmatprep.subr.bf16.mxu0 0
        %4539 = vmatpush1.bf16.msra.mxu0 0
        %4540 = vmatprep.subr.bf16.mxu0 0
        %4541 = vmatpush1.bf16.msra.mxu0 0
        %4542 = vmatprep.subr.bf16.mxu0 0
        %4543 = vmatpush1.bf16.msra.mxu0 0
        %4544 = vmatprep.subr.bf16.mxu0 0
        %4545 = vmatpush1.bf16.msra.mxu0 0
        %4546 = vmatprep.subr.bf16.mxu0 0
        %4547 = vmatpush1.bf16.msra.mxu0 %v4530
        %4548 = vmatprep.subr.bf16.mxu0 0
        %4549 = vmatpush2.bf16.msra.mxu0 0
        %4550 = vmatprep.subr.bf16.mxu0 0
        %4551 = vmatpush2.bf16.msra.mxu0 0
        %4552 = vmatprep.subr.bf16.mxu0 0
        %4553 = vmatpush2.bf16.msra.mxu0 0
        %4554 = vmatprep.subr.bf16.mxu0 0
        %4555 = vmatpush2.bf16.msra.mxu0 0
        %4556 = vmatprep.subr.bf16.mxu0 0
        %4557 = vmatpush2.bf16.msra.mxu0 0
        %4558 = vmatprep.subr.bf16.mxu0 0
        %4559 = vmatpush2.bf16.msra.mxu0 0
        %4560 = vmatprep.subr.bf16.mxu0 0
        %4561 = vmatpush2.bf16.msra.mxu0 0
        %4562 = vmatprep.subr.bf16.mxu0 0
        %4563 = vmatpush2.bf16.msra.mxu0 0
        %4564 = vmatprep.mubr.bf16.mxu0 0
        %4565 = vmatmul.mubr.bf16.gmra.mxu0 %v4527
        %v4566 = vpop.f32.mrf.mxu0
        %v4567 = vadd.f32 0.0, %v4566
        %v4568 = vpop.f32.mrf.mxu0
        %v4569 = vpop.f32.mrf.mxu0
        %v4570 = vpop.f32.mrf.mxu0
        %4571 = vdwg.mxu0
        %4572 = vrot.lane.b32.xlu0 %v1136, 40
        %v4573 = vpop.permute.xlu0 %4572
        %v4575 = vsel %vm1145, %v4517, 0
        %v4578 = vsel %vm1685, %v4573, 0
        %4580 = vmatprep.subr.bf16.mxu0 0
        %4581 = vmatpush1.bf16.msra.mxu0 0
        %4582 = vmatprep.subr.bf16.mxu0 0
        %4583 = vmatpush1.bf16.msra.mxu0 0
        %4584 = vmatprep.subr.bf16.mxu0 0
        %4585 = vmatpush1.bf16.msra.mxu0 0
        %4586 = vmatprep.subr.bf16.mxu0 0
        %4587 = vmatpush1.bf16.msra.mxu0 0
        %4588 = vmatprep.subr.bf16.mxu0 0
        %4589 = vmatpush1.bf16.msra.mxu0 0
        %4590 = vmatprep.subr.bf16.mxu0 0
        %4591 = vmatpush1.bf16.msra.mxu0 0
        %4592 = vmatprep.subr.bf16.mxu0 0
        %4593 = vmatpush1.bf16.msra.mxu0 0
        %4594 = vmatprep.subr.bf16.mxu0 0
        %4595 = vmatpush1.bf16.msra.mxu0 %v4578
        %4596 = vmatprep.subr.bf16.mxu0 0
        %4597 = vmatpush2.bf16.msra.mxu0 0
        %4598 = vmatprep.subr.bf16.mxu0 0
        %4599 = vmatpush2.bf16.msra.mxu0 0
        %4600 = vmatprep.subr.bf16.mxu0 0
        %4601 = vmatpush2.bf16.msra.mxu0 0
        %4602 = vmatprep.subr.bf16.mxu0 0
        %4603 = vmatpush2.bf16.msra.mxu0 0
        %4604 = vmatprep.subr.bf16.mxu0 0
        %4605 = vmatpush2.bf16.msra.mxu0 0
        %4606 = vmatprep.subr.bf16.mxu0 0
        %4607 = vmatpush2.bf16.msra.mxu0 0
        %4608 = vmatprep.subr.bf16.mxu0 0
        %4609 = vmatpush2.bf16.msra.mxu0 0
        %4610 = vmatprep.subr.bf16.mxu0 0
        %4611 = vmatpush2.bf16.msra.mxu0 0
        %4612 = vmatprep.mubr.bf16.mxu0 0
        %4613 = vmatmul.mubr.bf16.gmra.mxu0 %v4575
        %v4614 = vpop.f32.mrf.mxu0
        %v4615 = vadd.f32 0.0, %v4614
        %v4616 = vpop.f32.mrf.mxu0
        %v4617 = vpop.f32.mrf.mxu0
        %v4618 = vpop.f32.mrf.mxu0
        %4619 = vdwg.mxu0
        %4620 = vrot.lane.b32.xlu0 %v1137, 40
        %v4621 = vpop.permute.xlu0 %4620
        %v4623 = vsel %vm1145, %v4518, 0
        %v4626 = vsel %vm1685, %v4621, 0
        %4628 = vmatprep.subr.bf16.mxu0 0
        %4629 = vmatpush1.bf16.msra.mxu0 0
        %4630 = vmatprep.subr.bf16.mxu0 0
        %4631 = vmatpush1.bf16.msra.mxu0 0
        %4632 = vmatprep.subr.bf16.mxu0 0
        %4633 = vmatpush1.bf16.msra.mxu0 0
        %4634 = vmatprep.subr.bf16.mxu0 0
        %4635 = vmatpush1.bf16.msra.mxu0 0
        %4636 = vmatprep.subr.bf16.mxu0 0
        %4637 = vmatpush1.bf16.msra.mxu0 0
        %4638 = vmatprep.subr.bf16.mxu0 0
        %4639 = vmatpush1.bf16.msra.mxu0 0
        %4640 = vmatprep.subr.bf16.mxu0 0
        %4641 = vmatpush1.bf16.msra.mxu0 0
        %4642 = vmatprep.subr.bf16.mxu0 0
        %4643 = vmatpush1.bf16.msra.mxu0 %v4626
        %4644 = vmatprep.subr.bf16.mxu0 0
        %4645 = vmatpush2.bf16.msra.mxu0 0
        %4646 = vmatprep.subr.bf16.mxu0 0
        %4647 = vmatpush2.bf16.msra.mxu0 0
        %4648 = vmatprep.subr.bf16.mxu0 0
        %4649 = vmatpush2.bf16.msra.mxu0 0
        %4650 = vmatprep.subr.bf16.mxu0 0
        %4651 = vmatpush2.bf16.msra.mxu0 0
        %4652 = vmatprep.subr.bf16.mxu0 0
        %4653 = vmatpush2.bf16.msra.mxu0 0
        %4654 = vmatprep.subr.bf16.mxu0 0
        %4655 = vmatpush2.bf16.msra.mxu0 0
        %4656 = vmatprep.subr.bf16.mxu0 0
        %4657 = vmatpush2.bf16.msra.mxu0 0
        %4658 = vmatprep.subr.bf16.mxu0 0
        %4659 = vmatpush2.bf16.msra.mxu0 0
        %4660 = vmatprep.mubr.bf16.mxu0 0
        %4661 = vmatmul.mubr.bf16.gmra.mxu0 %v4623
        %v4662 = vpop.f32.mrf.mxu0
        %v4663 = vadd.f32 0.0, %v4662
        %v4664 = vpop.f32.mrf.mxu0
        %v4665 = vpop.f32.mrf.mxu0
        %v4666 = vpop.f32.mrf.mxu0
        %4667 = vdwg.mxu0
        %4668 = vrot.lane.b32.xlu0 %v1138, 40
        %v4669 = vpop.permute.xlu0 %4668
        %v4671 = vsel %vm1145, %v4519, 0
        %v4674 = vsel %vm1685, %v4669, 0
        %4676 = vmatprep.subr.bf16.mxu0 0
        %4677 = vmatpush1.bf16.msra.mxu0 0
        %4678 = vmatprep.subr.bf16.mxu0 0
        %4679 = vmatpush1.bf16.msra.mxu0 0
        %4680 = vmatprep.subr.bf16.mxu0 0
        %4681 = vmatpush1.bf16.msra.mxu0 0
        %4682 = vmatprep.subr.bf16.mxu0 0
        %4683 = vmatpush1.bf16.msra.mxu0 0
        %4684 = vmatprep.subr.bf16.mxu0 0
        %4685 = vmatpush1.bf16.msra.mxu0 0
        %4686 = vmatprep.subr.bf16.mxu0 0
        %4687 = vmatpush1.bf16.msra.mxu0 0
        %4688 = vmatprep.subr.bf16.mxu0 0
        %4689 = vmatpush1.bf16.msra.mxu0 0
        %4690 = vmatprep.subr.bf16.mxu0 0
        %4691 = vmatpush1.bf16.msra.mxu0 %v4674
        %4692 = vmatprep.subr.bf16.mxu0 0
        %4693 = vmatpush2.bf16.msra.mxu0 0
        %4694 = vmatprep.subr.bf16.mxu0 0
        %4695 = vmatpush2.bf16.msra.mxu0 0
        %4696 = vmatprep.subr.bf16.mxu0 0
        %4697 = vmatpush2.bf16.msra.mxu0 0
        %4698 = vmatprep.subr.bf16.mxu0 0
        %4699 = vmatpush2.bf16.msra.mxu0 0
        %4700 = vmatprep.subr.bf16.mxu0 0
        %4701 = vmatpush2.bf16.msra.mxu0 0
        %4702 = vmatprep.subr.bf16.mxu0 0
        %4703 = vmatpush2.bf16.msra.mxu0 0
        %4704 = vmatprep.subr.bf16.mxu0 0
        %4705 = vmatpush2.bf16.msra.mxu0 0
        %4706 = vmatprep.subr.bf16.mxu0 0
        %4707 = vmatpush2.bf16.msra.mxu0 0
        %4708 = vmatprep.mubr.bf16.mxu0 0
        %4709 = vmatmul.mubr.bf16.gmra.mxu0 %v4671
        %v4710 = vpop.f32.mrf.mxu0
        %v4711 = vadd.f32 0.0, %v4710
        %v4712 = vpop.f32.mrf.mxu0
        %v4713 = vpop.f32.mrf.mxu0
        %v4714 = vpop.f32.mrf.mxu0
        %4715 = vdwg.mxu0
        %4716 = vrot.lane.b32.xlu0 %v1139, 40
        %v4717 = vpop.permute.xlu0 %4716
        %v4719 = vsel %vm1145, %v4520, 0
        %v4722 = vsel %vm1685, %v4717, 0
        %4724 = vmatprep.subr.bf16.mxu0 0
        %4725 = vmatpush1.bf16.msra.mxu0 0
        %4726 = vmatprep.subr.bf16.mxu0 0
        %4727 = vmatpush1.bf16.msra.mxu0 0
        %4728 = vmatprep.subr.bf16.mxu0 0
        %4729 = vmatpush1.bf16.msra.mxu0 0
        %4730 = vmatprep.subr.bf16.mxu0 0
        %4731 = vmatpush1.bf16.msra.mxu0 0
        %4732 = vmatprep.subr.bf16.mxu0 0
        %4733 = vmatpush1.bf16.msra.mxu0 0
        %4734 = vmatprep.subr.bf16.mxu0 0
        %4735 = vmatpush1.bf16.msra.mxu0 0
        %4736 = vmatprep.subr.bf16.mxu0 0
        %4737 = vmatpush1.bf16.msra.mxu0 0
        %4738 = vmatprep.subr.bf16.mxu0 0
        %4739 = vmatpush1.bf16.msra.mxu0 %v4722
        %4740 = vmatprep.subr.bf16.mxu0 0
        %4741 = vmatpush2.bf16.msra.mxu0 0
        %4742 = vmatprep.subr.bf16.mxu0 0
        %4743 = vmatpush2.bf16.msra.mxu0 0
        %4744 = vmatprep.subr.bf16.mxu0 0
        %4745 = vmatpush2.bf16.msra.mxu0 0
        %4746 = vmatprep.subr.bf16.mxu0 0
        %4747 = vmatpush2.bf16.msra.mxu0 0
        %4748 = vmatprep.subr.bf16.mxu0 0
        %4749 = vmatpush2.bf16.msra.mxu0 0
        %4750 = vmatprep.subr.bf16.mxu0 0
        %4751 = vmatpush2.bf16.msra.mxu0 0
        %4752 = vmatprep.subr.bf16.mxu0 0
        %4753 = vmatpush2.bf16.msra.mxu0 0
        %4754 = vmatprep.subr.bf16.mxu0 0
        %4755 = vmatpush2.bf16.msra.mxu0 0
        %4756 = vmatprep.mubr.bf16.mxu0 0
        %4757 = vmatmul.mubr.bf16.gmra.mxu0 %v4719
        %v4758 = vpop.f32.mrf.mxu0
        %v4759 = vadd.f32 0.0, %v4758
        %v4760 = vpop.f32.mrf.mxu0
        %v4761 = vpop.f32.mrf.mxu0
        %v4762 = vpop.f32.mrf.mxu0
        %4763 = vdwg.mxu0
        %4764 = vrot.lane.b32.xlu0 %v1140, 40
        %v4765 = vpop.permute.xlu0 %4764
        %v4767 = vsel %vm1145, %v4521, 0
        %v4770 = vsel %vm1685, %v4765, 0
        %4772 = vmatprep.subr.bf16.mxu0 0
        %4773 = vmatpush1.bf16.msra.mxu0 0
        %4774 = vmatprep.subr.bf16.mxu0 0
        %4775 = vmatpush1.bf16.msra.mxu0 0
        %4776 = vmatprep.subr.bf16.mxu0 0
        %4777 = vmatpush1.bf16.msra.mxu0 0
        %4778 = vmatprep.subr.bf16.mxu0 0
        %4779 = vmatpush1.bf16.msra.mxu0 0
        %4780 = vmatprep.subr.bf16.mxu0 0
        %4781 = vmatpush1.bf16.msra.mxu0 0
        %4782 = vmatprep.subr.bf16.mxu0 0
        %4783 = vmatpush1.bf16.msra.mxu0 0
        %4784 = vmatprep.subr.bf16.mxu0 0
        %4785 = vmatpush1.bf16.msra.mxu0 0
        %4786 = vmatprep.subr.bf16.mxu0 0
        %4787 = vmatpush1.bf16.msra.mxu0 %v4770
        %4788 = vmatprep.subr.bf16.mxu0 0
        %4789 = vmatpush2.bf16.msra.mxu0 0
        %4790 = vmatprep.subr.bf16.mxu0 0
        %4791 = vmatpush2.bf16.msra.mxu0 0
        %4792 = vmatprep.subr.bf16.mxu0 0
        %4793 = vmatpush2.bf16.msra.mxu0 0
        %4794 = vmatprep.subr.bf16.mxu0 0
        %4795 = vmatpush2.bf16.msra.mxu0 0
        %4796 = vmatprep.subr.bf16.mxu0 0
        %4797 = vmatpush2.bf16.msra.mxu0 0
        %4798 = vmatprep.subr.bf16.mxu0 0
        %4799 = vmatpush2.bf16.msra.mxu0 0
        %4800 = vmatprep.subr.bf16.mxu0 0
        %4801 = vmatpush2.bf16.msra.mxu0 0
        %4802 = vmatprep.subr.bf16.mxu0 0
        %4803 = vmatpush2.bf16.msra.mxu0 0
        %4804 = vmatprep.mubr.bf16.mxu0 0
        %4805 = vmatmul.mubr.bf16.gmra.mxu0 %v4767
        %v4806 = vpop.f32.mrf.mxu0
        %v4807 = vadd.f32 0.0, %v4806
        %v4808 = vpop.f32.mrf.mxu0
        %v4809 = vpop.f32.mrf.mxu0
        %v4810 = vpop.f32.mrf.mxu0
        %4811 = vdwg.mxu0
        %4812 = vrot.lane.b32.xlu0 %v1141, 40
        %v4813 = vpop.permute.xlu0 %4812
        %v4815 = vsel %vm1145, %v4522, 0
        %v4818 = vsel %vm1685, %v4813, 0
        %4820 = vmatprep.subr.bf16.mxu0 0
        %4821 = vmatpush1.bf16.msra.mxu0 0
        %4822 = vmatprep.subr.bf16.mxu0 0
        %4823 = vmatpush1.bf16.msra.mxu0 0
        %4824 = vmatprep.subr.bf16.mxu0 0
        %4825 = vmatpush1.bf16.msra.mxu0 0
        %4826 = vmatprep.subr.bf16.mxu0 0
        %4827 = vmatpush1.bf16.msra.mxu0 0
        %4828 = vmatprep.subr.bf16.mxu0 0
        %4829 = vmatpush1.bf16.msra.mxu0 0
        %4830 = vmatprep.subr.bf16.mxu0 0
        %4831 = vmatpush1.bf16.msra.mxu0 0
        %4832 = vmatprep.subr.bf16.mxu0 0
        %4833 = vmatpush1.bf16.msra.mxu0 0
        %4834 = vmatprep.subr.bf16.mxu0 0
        %4835 = vmatpush1.bf16.msra.mxu0 %v4818
        %4836 = vmatprep.subr.bf16.mxu0 0
        %4837 = vmatpush2.bf16.msra.mxu0 0
        %4838 = vmatprep.subr.bf16.mxu0 0
        %4839 = vmatpush2.bf16.msra.mxu0 0
        %4840 = vmatprep.subr.bf16.mxu0 0
        %4841 = vmatpush2.bf16.msra.mxu0 0
        %4842 = vmatprep.subr.bf16.mxu0 0
        %4843 = vmatpush2.bf16.msra.mxu0 0
        %4844 = vmatprep.subr.bf16.mxu0 0
        %4845 = vmatpush2.bf16.msra.mxu0 0
        %4846 = vmatprep.subr.bf16.mxu0 0
        %4847 = vmatpush2.bf16.msra.mxu0 0
        %4848 = vmatprep.subr.bf16.mxu0 0
        %4849 = vmatpush2.bf16.msra.mxu0 0
        %4850 = vmatprep.subr.bf16.mxu0 0
        %4851 = vmatpush2.bf16.msra.mxu0 0
        %4852 = vmatprep.mubr.bf16.mxu0 0
        %4853 = vmatmul.mubr.bf16.gmra.mxu0 %v4815
        %v4854 = vpop.f32.mrf.mxu0
        %v4855 = vadd.f32 0.0, %v4854
        %v4856 = vpop.f32.mrf.mxu0
        %v4857 = vpop.f32.mrf.mxu0
        %v4858 = vpop.f32.mrf.mxu0
        %4859 = vdwg.mxu0
        %4860 = vrot.lane.b32.xlu0 %v1142, 40
        %v4861 = vpop.permute.xlu0 %4860
        %v4863 = vsel %vm1145, %v4523, 0
        %v4866 = vsel %vm1685, %v4861, 0
        %4868 = vmatprep.subr.bf16.mxu0 0
        %4869 = vmatpush1.bf16.msra.mxu0 0
        %4870 = vmatprep.subr.bf16.mxu0 0
        %4871 = vmatpush1.bf16.msra.mxu0 0
        %4872 = vmatprep.subr.bf16.mxu0 0
        %4873 = vmatpush1.bf16.msra.mxu0 0
        %4874 = vmatprep.subr.bf16.mxu0 0
        %4875 = vmatpush1.bf16.msra.mxu0 0
        %4876 = vmatprep.subr.bf16.mxu0 0
        %4877 = vmatpush1.bf16.msra.mxu0 0
        %4878 = vmatprep.subr.bf16.mxu0 0
        %4879 = vmatpush1.bf16.msra.mxu0 0
        %4880 = vmatprep.subr.bf16.mxu0 0
        %4881 = vmatpush1.bf16.msra.mxu0 0
        %4882 = vmatprep.subr.bf16.mxu0 0
        %4883 = vmatpush1.bf16.msra.mxu0 %v4866
        %4884 = vmatprep.subr.bf16.mxu0 0
        %4885 = vmatpush2.bf16.msra.mxu0 0
        %4886 = vmatprep.subr.bf16.mxu0 0
        %4887 = vmatpush2.bf16.msra.mxu0 0
        %4888 = vmatprep.subr.bf16.mxu0 0
        %4889 = vmatpush2.bf16.msra.mxu0 0
        %4890 = vmatprep.subr.bf16.mxu0 0
        %4891 = vmatpush2.bf16.msra.mxu0 0
        %4892 = vmatprep.subr.bf16.mxu0 0
        %4893 = vmatpush2.bf16.msra.mxu0 0
        %4894 = vmatprep.subr.bf16.mxu0 0
        %4895 = vmatpush2.bf16.msra.mxu0 0
        %4896 = vmatprep.subr.bf16.mxu0 0
        %4897 = vmatpush2.bf16.msra.mxu0 0
        %4898 = vmatprep.subr.bf16.mxu0 0
        %4899 = vmatpush2.bf16.msra.mxu0 0
        %4900 = vmatprep.mubr.bf16.mxu0 0
        %4901 = vmatmul.mubr.bf16.gmra.mxu0 %v4863
        %v4902 = vpop.f32.mrf.mxu0
        %v4903 = vadd.f32 0.0, %v4902
        %v4904 = vpop.f32.mrf.mxu0
        %v4905 = vpop.f32.mrf.mxu0
        %v4906 = vpop.f32.mrf.mxu0
        %4907 = vdwg.mxu0
        %v4908 = vpack.c.bf16 %v4615, %v4567
        %v4909 = vpack.c.bf16 %v4711, %v4663
        %v4910 = vpack.c.bf16 %v4807, %v4759
        %v4911 = vpack.c.bf16 %v4903, %v4855
        %v4916 = vunpack.c.l.b16 %v4908
        %v4917 = vunpack.c.h.b16 %v4908
        %v4918 = vunpack.c.l.b16 %v4909
        %v4919 = vunpack.c.h.b16 %v4909
        %v4920 = vunpack.c.l.b16 %v4910
        %v4921 = vunpack.c.h.b16 %v4910
        %v4922 = vunpack.c.l.b16 %v4911
        %v4923 = vunpack.c.h.b16 %v4911
        %v4924 = vpack.c.b16 %v4916, %v4916
        %v4925 = vpack.c.b16 %v4917, %v4917
        %v4926 = vpack.c.b16 %v4918, %v4918
        %v4927 = vpack.c.b16 %v4919, %v4919
        %v4928 = vpack.c.b16 %v4920, %v4920
        %v4929 = vpack.c.b16 %v4921, %v4921
        %v4930 = vpack.c.b16 %v4922, %v4922
        %v4931 = vpack.c.b16 %v4923, %v4923
        %4932 = vrot.lane.b32.xlu0 %v4924, 24
        %v4933 = vpop.permute.xlu0 %4932
        %4934 = vrot.lane.b32.xlu0 %v4925, 24
        %v4935 = vpop.permute.xlu0 %4934
        %4936 = vrot.lane.b32.xlu0 %v4926, 24
        %v4937 = vpop.permute.xlu0 %4936
        %4938 = vrot.lane.b32.xlu0 %v4927, 24
        %v4939 = vpop.permute.xlu0 %4938
        %4940 = vrot.lane.b32.xlu0 %v4928, 24
        %v4941 = vpop.permute.xlu0 %4940
        %4942 = vrot.lane.b32.xlu0 %v4929, 24
        %v4943 = vpop.permute.xlu0 %4942
        %4944 = vrot.lane.b32.xlu0 %v4930, 24
        %v4945 = vpop.permute.xlu0 %4944
        %4946 = vrot.lane.b32.xlu0 %v4931, 24
        %v4947 = vpop.permute.xlu0 %4946
        %vm4956 = vcmask 257216
        %4957 = vst.msk [vmem:[#allocation3] sm:$0xf] %vm4956, %v4933
        %4958 = vst.msk [vmem:[#allocation3 + $0x4] sm:$0xf] %vm4956, %v4935
        %4959 = vst.msk [vmem:[#allocation3 + $0x8] sm:$0xf] %vm4956, %v4937
        %4960 = vst.msk [vmem:[#allocation3 + $0xc] sm:$0xf] %vm4956, %v4939
        %4961 = vst.msk [vmem:[#allocation3 + $0x10] sm:$0xf] %vm4956, %v4941
        %4962 = vst.msk [vmem:[#allocation3 + $0x14] sm:$0xf] %vm4956, %v4943
        %4963 = vst.msk [vmem:[#allocation3 + $0x18] sm:$0xf] %vm4956, %v4945
        %4964 = vst.msk [vmem:[#allocation3 + $0x1c] sm:$0xf] %vm4956, %v4947
        %v4965 = vld [vmem:[#allocation3] sm:$0xf]
        %v4966 = vld [vmem:[#allocation3 + $0x4] sm:$0xf]
        %v4967 = vld [vmem:[#allocation3 + $0x8] sm:$0xf]
        %v4968 = vld [vmem:[#allocation3 + $0xc] sm:$0xf]
        %v4969 = vld [vmem:[#allocation3 + $0x10] sm:$0xf]
        %v4970 = vld [vmem:[#allocation3 + $0x14] sm:$0xf]
        %v4971 = vld [vmem:[#allocation3 + $0x18] sm:$0xf]
        %v4972 = vld [vmem:[#allocation3 + $0x1c] sm:$0xf]
        %v4973 = vld [vmem:[%s758] sm:$0xf]
        %v4974 = vld [vmem:[%s758 + $0x4] sm:$0xf]
        %v4975 = vld [vmem:[%s758 + $0x8] sm:$0xf]
        %v4976 = vld [vmem:[%s758 + $0xc] sm:$0xf]
        %v4977 = vld [vmem:[%s761] sm:$0x1]
        %v4979 = vlaneseq
        %v4980 = vshrl.u32 %v4979, 7
        %v4981 = vsub.s32 0, %v4980
        %v4982 = vrot.slane %v4977, %v4981
        %v4992 = vunpack.c.l.b16 %v4965
        %v4993 = vunpack.c.l.b16 %v4966
        %v4994 = vunpack.c.l.b16 %v4967
        %v4995 = vunpack.c.l.b16 %v4968
        %v4996 = vunpack.c.l.b16 %v4969
        %v4997 = vunpack.c.l.b16 %v4970
        %v4998 = vunpack.c.l.b16 %v4971
        %v4999 = vunpack.c.l.b16 %v4972
        %v5000 = vpack.c.b16 %v4993, %v4992
        %v5001 = vpack.c.b16 %v4995, %v4994
        %v5002 = vpack.c.b16 %v4997, %v4996
        %v5003 = vpack.c.b16 %v4999, %v4998
        %v5008 = vunpack.c.l.b16 %v4973
        %v5009 = vunpack.c.l.b16 %v4974
        %v5010 = vunpack.c.l.b16 %v4975
        %v5011 = vunpack.c.l.b16 %v4976
        %v5012 = vpack.c.b16 %v5009, %v5008
        %v5013 = vpack.c.b16 %v5011, %v5010
        %v5017 = vsel %vm1041, %v5000, 0
        %v5020 = vsel %vm1041, %v5001, 0
        %v5023 = vsel %vm1041, %v5002, 0
        %v5026 = vsel %vm1041, %v5003, 0
        %5028 = vmatprep.subr.bf16.mxu0 0
        %5029 = vmatpush1.bf16.msra.mxu0 0
        %5030 = vmatprep.subr.bf16.mxu0 0
        %5031 = vmatpush1.bf16.msra.mxu0 0
        %5032 = vmatprep.subr.bf16.mxu0 0
        %5033 = vmatpush1.bf16.msra.mxu0 0
        %5034 = vmatprep.subr.bf16.mxu0 0
        %5035 = vmatpush1.bf16.msra.mxu0 0
        %5036 = vmatprep.subr.bf16.mxu0 0
        %5037 = vmatpush1.bf16.msra.mxu0 0
        %5038 = vmatprep.subr.bf16.mxu0 0
        %5039 = vmatpush1.bf16.msra.mxu0 0
        %5040 = vmatprep.subr.bf16.mxu0 0
        %5041 = vmatpush1.bf16.msra.mxu0 %v5013
        %5042 = vmatprep.subr.bf16.mxu0 0
        %5043 = vmatpush1.bf16.msra.mxu0 %v5012
        %5044 = vmatprep.subr.bf16.mxu0 0
        %5045 = vmatpush2.bf16.msra.mxu0 0
        %5046 = vmatprep.subr.bf16.mxu0 0
        %5047 = vmatpush2.bf16.msra.mxu0 0
        %5048 = vmatprep.subr.bf16.mxu0 0
        %5049 = vmatpush2.bf16.msra.mxu0 0
        %5050 = vmatprep.subr.bf16.mxu0 0
        %5051 = vmatpush2.bf16.msra.mxu0 0
        %5052 = vmatprep.subr.bf16.mxu0 0
        %5053 = vmatpush2.bf16.msra.mxu0 0
        %5054 = vmatprep.subr.bf16.mxu0 0
        %5055 = vmatpush2.bf16.msra.mxu0 0
        %5056 = vmatprep.subr.bf16.mxu0 0
        %5057 = vmatpush2.bf16.msra.mxu0 0
        %5058 = vmatprep.subr.bf16.mxu0 0
        %5059 = vmatpush2.bf16.msra.mxu0 0
        %5060 = vmatprep.mubr.bf16.mxu0 0
        %5061 = vmatmul.mubr.bf16.gmra.mxu0 %v5017
        %v5062 = vpop.f32.mrf.mxu0
        %v5063 = vadd.f32 %v4982, %v5062
        %v5064 = vpop.f32.mrf.mxu0
        %v5065 = vpop.f32.mrf.mxu0
        %v5066 = vadd.f32 %v4982, %v5065
        %v5067 = vpop.f32.mrf.mxu0
        %5068 = vmatprep.mubr.bf16.mxu0 0
        %5069 = vmatmul.mubr.bf16.gmra.mxu0 %v5020
        %v5070 = vpop.f32.mrf.mxu0
        %v5071 = vadd.f32 %v4982, %v5070
        %v5072 = vpop.f32.mrf.mxu0
        %v5073 = vpop.f32.mrf.mxu0
        %v5074 = vadd.f32 %v4982, %v5073
        %v5075 = vpop.f32.mrf.mxu0
        %5076 = vmatprep.mubr.bf16.mxu0 0
        %5077 = vmatmul.mubr.bf16.gmra.mxu0 %v5023
        %v5078 = vpop.f32.mrf.mxu0
        %v5079 = vadd.f32 %v4982, %v5078
        %v5080 = vpop.f32.mrf.mxu0
        %v5081 = vpop.f32.mrf.mxu0
        %v5082 = vadd.f32 %v4982, %v5081
        %v5083 = vpop.f32.mrf.mxu0
        %5084 = vmatprep.mubr.bf16.mxu0 0
        %5085 = vmatmul.mubr.bf16.gmra.mxu0 %v5026
        %v5086 = vpop.f32.mrf.mxu0
        %v5087 = vadd.f32 %v4982, %v5086
        %v5088 = vpop.f32.mrf.mxu0
        %v5089 = vpop.f32.mrf.mxu0
        %v5090 = vadd.f32 %v4982, %v5089
        %v5091 = vpop.f32.mrf.mxu0
        %5092 = vdwg.mxu0
        %v5093 = vadd.f32 %v955, %v5063
        %v5094 = vadd.f32 %v956, %v5066
        %v5095 = vadd.f32 %v957, %v5071
        %v5096 = vadd.f32 %v958, %v5074
        %v5097 = vadd.f32 %v959, %v5079
        %v5098 = vadd.f32 %v960, %v5082
        %v5099 = vadd.f32 %v961, %v5087
        %v5100 = vadd.f32 %v962, %v5090
        %v5101 = vld [vmem:[%s764] sm:$0x1]
        %v5102 = vld [vmem:[%s767] sm:$0x1]
        %v5103 = vsel %vm1041, %v5093, 0.0
        %5104 = vadd.xlane.f32.xlu0 %v5103
        %v5105 = vpop.xlane.xlu0 %5104
        %v5106 = vsel %vm1041, %v5094, 0.0
        %5107 = vadd.xlane.f32.xlu0 %v5106
        %v5108 = vpop.xlane.xlu0 %5107
        %v5109 = vsel %vm1041, %v5095, 0.0
        %5110 = vadd.xlane.f32.xlu0 %v5109
        %v5111 = vpop.xlane.xlu0 %5110
        %v5112 = vsel %vm1041, %v5096, 0.0
        %5113 = vadd.xlane.f32.xlu0 %v5112
        %v5114 = vpop.xlane.xlu0 %5113
        %v5115 = vsel %vm1041, %v5097, 0.0
        %5116 = vadd.xlane.f32.xlu0 %v5115
        %v5117 = vpop.xlane.xlu0 %5116
        %v5118 = vsel %vm1041, %v5098, 0.0
        %5119 = vadd.xlane.f32.xlu0 %v5118
        %v5120 = vpop.xlane.xlu0 %5119
        %v5121 = vsel %vm1041, %v5099, 0.0
        %5122 = vadd.xlane.f32.xlu0 %v5121
        %v5123 = vpop.xlane.xlu0 %5122
        %v5124 = vsel %vm1041, %v5100, 0.0
        %5125 = vadd.xlane.f32.xlu0 %v5124
        %v5126 = vpop.xlane.xlu0 %5125
        %v5127 = vrcp.pop 32.0
        %v5128 = vmul.f32 %v5105, %v5127
        %v5129 = vmul.f32 %v5108, %v5127
        %v5130 = vmul.f32 %v5111, %v5127
        %v5131 = vmul.f32 %v5114, %v5127
        %v5132 = vmul.f32 %v5117, %v5127
        %v5133 = vmul.f32 %v5120, %v5127
        %v5134 = vmul.f32 %v5123, %v5127
        %v5135 = vmul.f32 %v5126, %v5127
        %v5136 = vsub.f32 %v5093, %v5128
        %v5137 = vsub.f32 %v5094, %v5129
        %v5138 = vsub.f32 %v5095, %v5130
        %v5139 = vsub.f32 %v5096, %v5131
        %v5140 = vsub.f32 %v5097, %v5132
        %v5141 = vsub.f32 %v5098, %v5133
        %v5142 = vsub.f32 %v5099, %v5134
        %v5143 = vsub.f32 %v5100, %v5135
        %v5144 = vmul.f32 %v5136, %v5136
        %v5145 = vmul.f32 %v5137, %v5137
        %v5146 = vmul.f32 %v5138, %v5138
        %v5147 = vmul.f32 %v5139, %v5139
        %v5148 = vmul.f32 %v5140, %v5140
        %v5149 = vmul.f32 %v5141, %v5141
        %v5150 = vmul.f32 %v5142, %v5142
        %v5151 = vmul.f32 %v5143, %v5143
        %v5152 = vsel %vm1041, %v5144, 0.0
        %5153 = vadd.xlane.f32.xlu0 %v5152
        %v5154 = vpop.xlane.xlu0 %5153
        %v5155 = vsel %vm1041, %v5145, 0.0
        %5156 = vadd.xlane.f32.xlu0 %v5155
        %v5157 = vpop.xlane.xlu0 %5156
        %v5158 = vsel %vm1041, %v5146, 0.0
        %5159 = vadd.xlane.f32.xlu0 %v5158
        %v5160 = vpop.xlane.xlu0 %5159
        %v5161 = vsel %vm1041, %v5147, 0.0
        %5162 = vadd.xlane.f32.xlu0 %v5161
        %v5163 = vpop.xlane.xlu0 %5162
        %v5164 = vsel %vm1041, %v5148, 0.0
        %5165 = vadd.xlane.f32.xlu0 %v5164
        %v5166 = vpop.xlane.xlu0 %5165
        %v5167 = vsel %vm1041, %v5149, 0.0
        %5168 = vadd.xlane.f32.xlu0 %v5167
        %v5169 = vpop.xlane.xlu0 %5168
        %v5170 = vsel %vm1041, %v5150, 0.0
        %5171 = vadd.xlane.f32.xlu0 %v5170
        %v5172 = vpop.xlane.xlu0 %5171
        %v5173 = vsel %vm1041, %v5151, 0.0
        %5174 = vadd.xlane.f32.xlu0 %v5173
        %v5175 = vpop.xlane.xlu0 %5174
        %v5176 = vmul.f32 %v5154, %v5127
        %v5177 = vmul.f32 %v5157, %v5127
        %v5178 = vmul.f32 %v5160, %v5127
        %v5179 = vmul.f32 %v5163, %v5127
        %v5180 = vmul.f32 %v5166, %v5127
        %v5181 = vmul.f32 %v5169, %v5127
        %v5182 = vmul.f32 %v5172, %v5127
        %v5183 = vmul.f32 %v5175, %v5127
        %v5184 = vadd.f32 %v5176, 1e-05
        %v5185 = vadd.f32 %v5177, 1e-05
        %v5186 = vadd.f32 %v5178, 1e-05
        %v5187 = vadd.f32 %v5179, 1e-05
        %v5188 = vadd.f32 %v5180, 1e-05
        %v5189 = vadd.f32 %v5181, 1e-05
        %v5190 = vadd.f32 %v5182, 1e-05
        %v5191 = vadd.f32 %v5183, 1e-05
        %v5192 = vrsqrt.pop %v5184
        %v5193 = vrsqrt.pop %v5185
        %v5194 = vrsqrt.pop %v5186
        %v5195 = vrsqrt.pop %v5187
        %v5196 = vrsqrt.pop %v5188
        %v5197 = vrsqrt.pop %v5189
        %v5198 = vrsqrt.pop %v5190
        %v5199 = vrsqrt.pop %v5191
        %v5200 = vmul.f32 %v5136, %v5192
        %v5201 = vmul.f32 %v5137, %v5193
        %v5202 = vmul.f32 %v5138, %v5194
        %v5203 = vmul.f32 %v5139, %v5195
        %v5204 = vmul.f32 %v5140, %v5196
        %v5205 = vmul.f32 %v5141, %v5197
        %v5206 = vmul.f32 %v5142, %v5198
        %v5207 = vmul.f32 %v5143, %v5199
        %v5209 = vlaneseq
        %v5210 = vshrl.u32 %v5209, 7
        %v5211 = vsub.s32 0, %v5210
        %v5212 = vrot.slane %v5101, %v5211
        %v5214 = vmul.f32 %v5200, %v5212
        %v5215 = vmul.f32 %v5201, %v5212
        %v5216 = vmul.f32 %v5202, %v5212
        %v5217 = vmul.f32 %v5203, %v5212
        %v5218 = vmul.f32 %v5204, %v5212
        %v5219 = vmul.f32 %v5205, %v5212
        %v5220 = vmul.f32 %v5206, %v5212
        %v5221 = vmul.f32 %v5207, %v5212
        %v5223 = vlaneseq
        %v5224 = vshrl.u32 %v5223, 7
        %v5225 = vsub.s32 0, %v5224
        %v5226 = vrot.slane %v5102, %v5225
        %v5228 = vadd.f32 %v5214, %v5226
        %v5229 = vadd.f32 %v5215, %v5226
        %v5230 = vadd.f32 %v5216, %v5226
        %v5231 = vadd.f32 %v5217, %v5226
        %v5232 = vadd.f32 %v5218, %v5226
        %v5233 = vadd.f32 %v5219, %v5226
        %v5234 = vadd.f32 %v5220, %v5226
        %v5235 = vadd.f32 %v5221, %v5226
        %v5236 = vpack.c.bf16 %v5229, %v5228
        %v5237 = vpack.c.bf16 %v5231, %v5230
        %v5238 = vpack.c.bf16 %v5233, %v5232
        %v5239 = vpack.c.bf16 %v5235, %v5234
        %v5240 = vld [vmem:[%s772] sm:$0xf]
        %v5241 = vld [vmem:[%s772 + $0x4] sm:$0xf]
        %v5242 = vld [vmem:[%s772 + $0x8] sm:$0xf]
        %v5243 = vld [vmem:[%s772 + $0xc] sm:$0xf]
        %v5244 = vld [vmem:[%s775] sm:$0x1]
        %v5246 = vlaneseq
        %v5247 = vshrl.u32 %v5246, 7
        %v5248 = vsub.s32 0, %v5247
        %v5249 = vrot.slane %v5244, %v5248
        %v5255 = vunpack.c.l.b16 %v5240
        %v5256 = vunpack.c.l.b16 %v5241
        %v5257 = vunpack.c.l.b16 %v5242
        %v5258 = vunpack.c.l.b16 %v5243
        %v5259 = vpack.c.b16 %v5256, %v5255
        %v5260 = vpack.c.b16 %v5258, %v5257
        %v5264 = vsel %vm1041, %v5236, 0
        %v5267 = vsel %vm1041, %v5237, 0
        %v5270 = vsel %vm1041, %v5238, 0
        %v5273 = vsel %vm1041, %v5239, 0
        %5275 = vmatprep.subr.bf16.mxu0 0
        %5276 = vmatpush1.bf16.msra.mxu0 0
        %5277 = vmatprep.subr.bf16.mxu0 0
        %5278 = vmatpush1.bf16.msra.mxu0 0
        %5279 = vmatprep.subr.bf16.mxu0 0
        %5280 = vmatpush1.bf16.msra.mxu0 0
        %5281 = vmatprep.subr.bf16.mxu0 0
        %5282 = vmatpush1.bf16.msra.mxu0 0
        %5283 = vmatprep.subr.bf16.mxu0 0
        %5284 = vmatpush1.bf16.msra.mxu0 0
        %5285 = vmatprep.subr.bf16.mxu0 0
        %5286 = vmatpush1.bf16.msra.mxu0 0
        %5287 = vmatprep.subr.bf16.mxu0 0
        %5288 = vmatpush1.bf16.msra.mxu0 %v5260
        %5289 = vmatprep.subr.bf16.mxu0 0
        %5290 = vmatpush1.bf16.msra.mxu0 %v5259
        %5291 = vmatprep.subr.bf16.mxu0 0
        %5292 = vmatpush2.bf16.msra.mxu0 0
        %5293 = vmatprep.subr.bf16.mxu0 0
        %5294 = vmatpush2.bf16.msra.mxu0 0
        %5295 = vmatprep.subr.bf16.mxu0 0
        %5296 = vmatpush2.bf16.msra.mxu0 0
        %5297 = vmatprep.subr.bf16.mxu0 0
        %5298 = vmatpush2.bf16.msra.mxu0 0
        %5299 = vmatprep.subr.bf16.mxu0 0
        %5300 = vmatpush2.bf16.msra.mxu0 0
        %5301 = vmatprep.subr.bf16.mxu0 0
        %5302 = vmatpush2.bf16.msra.mxu0 0
        %5303 = vmatprep.subr.bf16.mxu0 0
        %5304 = vmatpush2.bf16.msra.mxu0 0
        %5305 = vmatprep.subr.bf16.mxu0 0
        %5306 = vmatpush2.bf16.msra.mxu0 0
        %5307 = vmatprep.mubr.bf16.mxu0 0
        %5308 = vmatmul.mubr.bf16.gmra.mxu0 %v5264
        %v5309 = vpop.f32.mrf.mxu0
        %v5310 = vadd.f32 %v5249, %v5309
        %v5311 = vpop.f32.mrf.mxu0
        %v5312 = vpop.f32.mrf.mxu0
        %v5313 = vadd.f32 %v5249, %v5312
        %v5314 = vpop.f32.mrf.mxu0
        %5315 = vmatprep.mubr.bf16.mxu0 0
        %5316 = vmatmul.mubr.bf16.gmra.mxu0 %v5267
        %v5317 = vpop.f32.mrf.mxu0
        %v5318 = vadd.f32 %v5249, %v5317
        %v5319 = vpop.f32.mrf.mxu0
        %v5320 = vpop.f32.mrf.mxu0
        %v5321 = vadd.f32 %v5249, %v5320
        %v5322 = vpop.f32.mrf.mxu0
        %5323 = vmatprep.mubr.bf16.mxu0 0
        %5324 = vmatmul.mubr.bf16.gmra.mxu0 %v5270
        %v5325 = vpop.f32.mrf.mxu0
        %v5326 = vadd.f32 %v5249, %v5325
        %v5327 = vpop.f32.mrf.mxu0
        %v5328 = vpop.f32.mrf.mxu0
        %v5329 = vadd.f32 %v5249, %v5328
        %v5330 = vpop.f32.mrf.mxu0
        %5331 = vmatprep.mubr.bf16.mxu0 0
        %5332 = vmatmul.mubr.bf16.gmra.mxu0 %v5273
        %v5333 = vpop.f32.mrf.mxu0
        %v5334 = vadd.f32 %v5249, %v5333
        %v5335 = vpop.f32.mrf.mxu0
        %v5336 = vpop.f32.mrf.mxu0
        %v5337 = vadd.f32 %v5249, %v5336
        %v5338 = vpop.f32.mrf.mxu0
        %5339 = vdwg.mxu0
        %v5340 = vmul.f32 %v5310, 0.5
        %v5341 = vmul.f32 %v5313, 0.5
        %v5342 = vmul.f32 %v5318, 0.5
        %v5343 = vmul.f32 %v5321, 0.5
        %v5344 = vmul.f32 %v5326, 0.5
        %v5345 = vmul.f32 %v5329, 0.5
        %v5346 = vmul.f32 %v5334, 0.5
        %v5347 = vmul.f32 %v5337, 0.5
        %v5348 = vmul.f32 %v5310, 0.044715
        %v5349 = vmul.f32 %v5313, 0.044715
        %v5350 = vmul.f32 %v5318, 0.044715
        %v5351 = vmul.f32 %v5321, 0.044715
        %v5352 = vmul.f32 %v5326, 0.044715
        %v5353 = vmul.f32 %v5329, 0.044715
        %v5354 = vmul.f32 %v5334, 0.044715
        %v5355 = vmul.f32 %v5337, 0.044715
        %v5356 = vmul.f32 %v5348, %v5310
        %v5357 = vmul.f32 %v5349, %v5313
        %v5358 = vmul.f32 %v5350, %v5318
        %v5359 = vmul.f32 %v5351, %v5321
        %v5360 = vmul.f32 %v5352, %v5326
        %v5361 = vmul.f32 %v5353, %v5329
        %v5362 = vmul.f32 %v5354, %v5334
        %v5363 = vmul.f32 %v5355, %v5337
        %v5364 = vmul.f32 %v5356, %v5310
        %v5365 = vmul.f32 %v5357, %v5313
        %v5366 = vmul.f32 %v5358, %v5318
        %v5367 = vmul.f32 %v5359, %v5321
        %v5368 = vmul.f32 %v5360, %v5326
        %v5369 = vmul.f32 %v5361, %v5329
        %v5370 = vmul.f32 %v5362, %v5334
        %v5371 = vmul.f32 %v5363, %v5337
        %v5372 = vadd.f32 %v5310, %v5364
        %v5373 = vadd.f32 %v5313, %v5365
        %v5374 = vadd.f32 %v5318, %v5366
        %v5375 = vadd.f32 %v5321, %v5367
        %v5376 = vadd.f32 %v5326, %v5368
        %v5377 = vadd.f32 %v5329, %v5369
        %v5378 = vadd.f32 %v5334, %v5370
        %v5379 = vadd.f32 %v5337, %v5371
        %v5380 = vmul.f32 %v5372, 0.7978846
        %v5381 = vmul.f32 %v5373, 0.7978846
        %v5382 = vmul.f32 %v5374, 0.7978846
        %v5383 = vmul.f32 %v5375, 0.7978846
        %v5384 = vmul.f32 %v5376, 0.7978846
        %v5385 = vmul.f32 %v5377, 0.7978846
        %v5386 = vmul.f32 %v5378, 0.7978846
        %v5387 = vmul.f32 %v5379, 0.7978846
        %v5388 = vtanh.pop %v5380
        %v5389 = vtanh.pop %v5381
        %v5390 = vtanh.pop %v5382
        %v5391 = vtanh.pop %v5383
        %v5392 = vtanh.pop %v5384
        %v5393 = vtanh.pop %v5385
        %v5394 = vtanh.pop %v5386
        %v5395 = vtanh.pop %v5387
        %v5396 = vadd.f32 %v5388, 1.0
        %v5397 = vadd.f32 %v5389, 1.0
        %v5398 = vadd.f32 %v5390, 1.0
        %v5399 = vadd.f32 %v5391, 1.0
        %v5400 = vadd.f32 %v5392, 1.0
        %v5401 = vadd.f32 %v5393, 1.0
        %v5402 = vadd.f32 %v5394, 1.0
        %v5403 = vadd.f32 %v5395, 1.0
        %v5404 = vmul.f32 %v5340, %v5396
        %v5405 = vmul.f32 %v5341, %v5397
        %v5406 = vmul.f32 %v5342, %v5398
        %v5407 = vmul.f32 %v5343, %v5399
        %v5408 = vmul.f32 %v5344, %v5400
        %v5409 = vmul.f32 %v5345, %v5401
        %v5410 = vmul.f32 %v5346, %v5402
        %v5411 = vmul.f32 %v5347, %v5403
        %v5412 = vpack.c.bf16 %v5405, %v5404
        %v5413 = vpack.c.bf16 %v5407, %v5406
        %v5414 = vpack.c.bf16 %v5409, %v5408
        %v5415 = vpack.c.bf16 %v5411, %v5410
        %v5416 = vld [vmem:[%s780] sm:$0xf]
        %v5417 = vld [vmem:[%s780 + $0x4] sm:$0xf]
        %v5418 = vld [vmem:[%s780 + $0x8] sm:$0xf]
        %v5419 = vld [vmem:[%s780 + $0xc] sm:$0xf]
        %v5420 = vld [vmem:[%s780 + $0x10] sm:$0xf]
        %v5421 = vld [vmem:[%s780 + $0x14] sm:$0xf]
        %v5422 = vld [vmem:[%s780 + $0x18] sm:$0xf]
        %v5423 = vld [vmem:[%s780 + $0x1c] sm:$0xf]
        %v5424 = vld [vmem:[%s783] sm:$0x1]
        %v5426 = vlaneseq
        %v5427 = vshrl.u32 %v5426, 7
        %v5428 = vsub.s32 0, %v5427
        %v5429 = vrot.slane %v5424, %v5428
        %v5439 = vunpack.c.l.b16 %v5416
        %v5440 = vunpack.c.l.b16 %v5417
        %v5441 = vunpack.c.l.b16 %v5418
        %v5442 = vunpack.c.l.b16 %v5419
        %v5443 = vunpack.c.l.b16 %v5420
        %v5444 = vunpack.c.l.b16 %v5421
        %v5445 = vunpack.c.l.b16 %v5422
        %v5446 = vunpack.c.l.b16 %v5423
        %v5447 = vpack.c.b16 %v5440, %v5439
        %v5448 = vpack.c.b16 %v5442, %v5441
        %v5449 = vpack.c.b16 %v5444, %v5443
        %v5450 = vpack.c.b16 %v5446, %v5445
        %vm5455 = vcmask 523264
        %v5457 = vsel %vm5455, %v5412, 0
        %v5460 = vsel %vm5455, %v5413, 0
        %v5463 = vsel %vm5455, %v5414, 0
        %v5466 = vsel %vm5455, %v5415, 0
        %5468 = vmatprep.subr.bf16.mxu0 0
        %5469 = vmatpush1.bf16.msra.mxu0 0
        %5470 = vmatprep.subr.bf16.mxu0 0
        %5471 = vmatpush1.bf16.msra.mxu0 0
        %5472 = vmatprep.subr.bf16.mxu0 0
        %5473 = vmatpush1.bf16.msra.mxu0 0
        %5474 = vmatprep.subr.bf16.mxu0 0
        %5475 = vmatpush1.bf16.msra.mxu0 0
        %5476 = vmatprep.subr.bf16.mxu0 0
        %5477 = vmatpush1.bf16.msra.mxu0 %v5450
        %5478 = vmatprep.subr.bf16.mxu0 0
        %5479 = vmatpush1.bf16.msra.mxu0 %v5449
        %5480 = vmatprep.subr.bf16.mxu0 0
        %5481 = vmatpush1.bf16.msra.mxu0 %v5448
        %5482 = vmatprep.subr.bf16.mxu0 0
        %5483 = vmatpush1.bf16.msra.mxu0 %v5447
        %5484 = vmatprep.subr.bf16.mxu0 0
        %5485 = vmatpush2.bf16.msra.mxu0 0
        %5486 = vmatprep.subr.bf16.mxu0 0
        %5487 = vmatpush2.bf16.msra.mxu0 0
        %5488 = vmatprep.subr.bf16.mxu0 0
        %5489 = vmatpush2.bf16.msra.mxu0 0
        %5490 = vmatprep.subr.bf16.mxu0 0
        %5491 = vmatpush2.bf16.msra.mxu0 0
        %5492 = vmatprep.subr.bf16.mxu0 0
        %5493 = vmatpush2.bf16.msra.mxu0 0
        %5494 = vmatprep.subr.bf16.mxu0 0
        %5495 = vmatpush2.bf16.msra.mxu0 0
        %5496 = vmatprep.subr.bf16.mxu0 0
        %5497 = vmatpush2.bf16.msra.mxu0 0
        %5498 = vmatprep.subr.bf16.mxu0 0
        %5499 = vmatpush2.bf16.msra.mxu0 0
        %5500 = vmatprep.mubr.bf16.mxu0 0
        %5501 = vmatmul.mubr.bf16.gmra.mxu0 %v5457
        %v5502 = vpop.f32.mrf.mxu0
        %v5503 = vadd.f32 %v5429, %v5502
        %v5504 = vpop.f32.mrf.mxu0
        %v5505 = vpop.f32.mrf.mxu0
        %v5506 = vadd.f32 %v5429, %v5505
        %v5507 = vpop.f32.mrf.mxu0
        %5508 = vmatprep.mubr.bf16.mxu0 0
        %5509 = vmatmul.mubr.bf16.gmra.mxu0 %v5460
        %v5510 = vpop.f32.mrf.mxu0
        %v5511 = vadd.f32 %v5429, %v5510
        %v5512 = vpop.f32.mrf.mxu0
        %v5513 = vpop.f32.mrf.mxu0
        %v5514 = vadd.f32 %v5429, %v5513
        %v5515 = vpop.f32.mrf.mxu0
        %5516 = vmatprep.mubr.bf16.mxu0 0
        %5517 = vmatmul.mubr.bf16.gmra.mxu0 %v5463
        %v5518 = vpop.f32.mrf.mxu0
        %v5519 = vadd.f32 %v5429, %v5518
        %v5520 = vpop.f32.mrf.mxu0
        %v5521 = vpop.f32.mrf.mxu0
        %v5522 = vadd.f32 %v5429, %v5521
        %v5523 = vpop.f32.mrf.mxu0
        %5524 = vmatprep.mubr.bf16.mxu0 0
        %5525 = vmatmul.mubr.bf16.gmra.mxu0 %v5466
        %v5526 = vpop.f32.mrf.mxu0
        %v5527 = vadd.f32 %v5429, %v5526
        %v5528 = vpop.f32.mrf.mxu0
        %v5529 = vpop.f32.mrf.mxu0
        %v5530 = vadd.f32 %v5429, %v5529
        %v5531 = vpop.f32.mrf.mxu0
        %5532 = vdwg.mxu0
        %v5533 = vadd.f32 %v5228, %v5503
        %v5534 = vadd.f32 %v5229, %v5506
        %v5535 = vadd.f32 %v5230, %v5511
        %v5536 = vadd.f32 %v5231, %v5514
        %v5537 = vadd.f32 %v5232, %v5519
        %v5538 = vadd.f32 %v5233, %v5522
        %v5539 = vadd.f32 %v5234, %v5527
        %v5540 = vadd.f32 %v5235, %v5530
        %v5541 = vld [vmem:[%s786] sm:$0x1]
        %v5542 = vld [vmem:[%s789] sm:$0x1]
        %v5543 = vsel %vm1041, %v5533, 0.0
        %5544 = vadd.xlane.f32.xlu0 %v5543
        %v5545 = vpop.xlane.xlu0 %5544
        %v5546 = vsel %vm1041, %v5534, 0.0
        %5547 = vadd.xlane.f32.xlu0 %v5546
        %v5548 = vpop.xlane.xlu0 %5547
        %v5549 = vsel %vm1041, %v5535, 0.0
        %5550 = vadd.xlane.f32.xlu0 %v5549
        %v5551 = vpop.xlane.xlu0 %5550
        %v5552 = vsel %vm1041, %v5536, 0.0
        %5553 = vadd.xlane.f32.xlu0 %v5552
        %v5554 = vpop.xlane.xlu0 %5553
        %v5555 = vsel %vm1041, %v5537, 0.0
        %5556 = vadd.xlane.f32.xlu0 %v5555
        %v5557 = vpop.xlane.xlu0 %5556
        %v5558 = vsel %vm1041, %v5538, 0.0
        %5559 = vadd.xlane.f32.xlu0 %v5558
        %v5560 = vpop.xlane.xlu0 %5559
        %v5561 = vsel %vm1041, %v5539, 0.0
        %5562 = vadd.xlane.f32.xlu0 %v5561
        %v5563 = vpop.xlane.xlu0 %5562
        %v5564 = vsel %vm1041, %v5540, 0.0
        %5565 = vadd.xlane.f32.xlu0 %v5564
        %v5566 = vpop.xlane.xlu0 %5565
        %v5567 = vmul.f32 %v5545, %v5127
        %v5568 = vmul.f32 %v5548, %v5127
        %v5569 = vmul.f32 %v5551, %v5127
        %v5570 = vmul.f32 %v5554, %v5127
        %v5571 = vmul.f32 %v5557, %v5127
        %v5572 = vmul.f32 %v5560, %v5127
        %v5573 = vmul.f32 %v5563, %v5127
        %v5574 = vmul.f32 %v5566, %v5127
        %v5575 = vsub.f32 %v5533, %v5567
        %v5576 = vsub.f32 %v5534, %v5568
        %v5577 = vsub.f32 %v5535, %v5569
        %v5578 = vsub.f32 %v5536, %v5570
        %v5579 = vsub.f32 %v5537, %v5571
        %v5580 = vsub.f32 %v5538, %v5572
        %v5581 = vsub.f32 %v5539, %v5573
        %v5582 = vsub.f32 %v5540, %v5574
        %v5583 = vmul.f32 %v5575, %v5575
        %v5584 = vmul.f32 %v5576, %v5576
        %v5585 = vmul.f32 %v5577, %v5577
        %v5586 = vmul.f32 %v5578, %v5578
        %v5587 = vmul.f32 %v5579, %v5579
        %v5588 = vmul.f32 %v5580, %v5580
        %v5589 = vmul.f32 %v5581, %v5581
        %v5590 = vmul.f32 %v5582, %v5582
        %v5591 = vsel %vm1041, %v5583, 0.0
        %5592 = vadd.xlane.f32.xlu0 %v5591
        %v5593 = vpop.xlane.xlu0 %5592
        %v5594 = vsel %vm1041, %v5584, 0.0
        %5595 = vadd.xlane.f32.xlu0 %v5594
        %v5596 = vpop.xlane.xlu0 %5595
        %v5597 = vsel %vm1041, %v5585, 0.0
        %5598 = vadd.xlane.f32.xlu0 %v5597
        %v5599 = vpop.xlane.xlu0 %5598
        %v5600 = vsel %vm1041, %v5586, 0.0
        %5601 = vadd.xlane.f32.xlu0 %v5600
        %v5602 = vpop.xlane.xlu0 %5601
        %v5603 = vsel %vm1041, %v5587, 0.0
        %5604 = vadd.xlane.f32.xlu0 %v5603
        %v5605 = vpop.xlane.xlu0 %5604
        %v5606 = vsel %vm1041, %v5588, 0.0
        %5607 = vadd.xlane.f32.xlu0 %v5606
        %v5608 = vpop.xlane.xlu0 %5607
        %v5609 = vsel %vm1041, %v5589, 0.0
        %5610 = vadd.xlane.f32.xlu0 %v5609
        %v5611 = vpop.xlane.xlu0 %5610
        %v5612 = vsel %vm1041, %v5590, 0.0
        %5613 = vadd.xlane.f32.xlu0 %v5612
        %v5614 = vpop.xlane.xlu0 %5613
        %v5615 = vmul.f32 %v5593, %v5127
        %v5616 = vmul.f32 %v5596, %v5127
        %v5617 = vmul.f32 %v5599, %v5127
        %v5618 = vmul.f32 %v5602, %v5127
        %v5619 = vmul.f32 %v5605, %v5127
        %v5620 = vmul.f32 %v5608, %v5127
        %v5621 = vmul.f32 %v5611, %v5127
        %v5622 = vmul.f32 %v5614, %v5127
        %v5623 = vadd.f32 %v5615, 1e-05
        %v5624 = vadd.f32 %v5616, 1e-05
        %v5625 = vadd.f32 %v5617, 1e-05
        %v5626 = vadd.f32 %v5618, 1e-05
        %v5627 = vadd.f32 %v5619, 1e-05
        %v5628 = vadd.f32 %v5620, 1e-05
        %v5629 = vadd.f32 %v5621, 1e-05
        %v5630 = vadd.f32 %v5622, 1e-05
        %v5631 = vrsqrt.pop %v5623
        %v5632 = vrsqrt.pop %v5624
        %v5633 = vrsqrt.pop %v5625
        %v5634 = vrsqrt.pop %v5626
        %v5635 = vrsqrt.pop %v5627
        %v5636 = vrsqrt.pop %v5628
        %v5637 = vrsqrt.pop %v5629
        %v5638 = vrsqrt.pop %v5630
        %v5639 = vmul.f32 %v5575, %v5631
        %v5640 = vmul.f32 %v5576, %v5632
        %v5641 = vmul.f32 %v5577, %v5633
        %v5642 = vmul.f32 %v5578, %v5634
        %v5643 = vmul.f32 %v5579, %v5635
        %v5644 = vmul.f32 %v5580, %v5636
        %v5645 = vmul.f32 %v5581, %v5637
        %v5646 = vmul.f32 %v5582, %v5638
        %v5648 = vlaneseq
        %v5649 = vshrl.u32 %v5648, 7
        %v5650 = vsub.s32 0, %v5649
        %v5651 = vrot.slane %v5541, %v5650
        %v5653 = vmul.f32 %v5639, %v5651
        %v5654 = vmul.f32 %v5640, %v5651
        %v5655 = vmul.f32 %v5641, %v5651
        %v5656 = vmul.f32 %v5642, %v5651
        %v5657 = vmul.f32 %v5643, %v5651
        %v5658 = vmul.f32 %v5644, %v5651
        %v5659 = vmul.f32 %v5645, %v5651
        %v5660 = vmul.f32 %v5646, %v5651
        %v5662 = vlaneseq
        %v5663 = vshrl.u32 %v5662, 7
        %v5664 = vsub.s32 0, %v5663
        %v5665 = vrot.slane %v5542, %v5664
        %v5667 = vadd.f32 %v5653, %v5665
        %v5668 = vadd.f32 %v5654, %v5665
        %v5669 = vadd.f32 %v5655, %v5665
        %v5670 = vadd.f32 %v5656, %v5665
        %v5671 = vadd.f32 %v5657, %v5665
        %v5672 = vadd.f32 %v5658, %v5665
        %v5673 = vadd.f32 %v5659, %v5665
        %v5674 = vadd.f32 %v5660, %v5665
        %5675 = vst.msk [vmem:[#allocation2] sm:$0xff] %vm1041, %v5667
        %5676 = vst.msk [vmem:[#allocation2 + $0x8] sm:$0xff] %vm1041, %v5668
        %5677 = vst.msk [vmem:[#allocation2 + $0x10] sm:$0xff] %vm1041, %v5669
        %5678 = vst.msk [vmem:[#allocation2 + $0x18] sm:$0xff] %vm1041, %v5670
        %5679 = vst.msk [vmem:[#allocation2 + $0x20] sm:$0xff] %vm1041, %v5671
        %5680 = vst.msk [vmem:[#allocation2 + $0x28] sm:$0xff] %vm1041, %v5672
        %5681 = vst.msk [vmem:[#allocation2 + $0x30] sm:$0xff] %vm1041, %v5673
        %5682 = vst.msk [vmem:[#allocation2 + $0x38] sm:$0xff] %vm1041, %v5674
        %p5683 = scmp.eq.s32.totalorder %s37, 1
        // Predicated region
        $region97: #{tpu_custom_call.1} parent=91 // pred_check
          %p5684 = pneg %p5683
        $region98: #{tpu_custom_call.1} parent=91 // pred_check_branch
          %5686 = sbr.rel (%p5684) target = $region100
        $region99: #{tpu_custom_call.1} parent=91 // pred_region
          %v5687 = vld [vmem:[%s16] sm:$0x1]
          %v5689 = vlaneseq
          %v5690 = vshrl.u32 %v5689, 7
          %v5691 = vsub.s32 0, %v5690
          %v5692 = vrot.slane %v5687, %v5691
          %v5694 = vmul.f32 %v5667, %v5692
          %v5695 = vmul.f32 %v5668, %v5692
          %v5696 = vmul.f32 %v5669, %v5692
          %v5697 = vmul.f32 %v5670, %v5692
          %v5698 = vmul.f32 %v5671, %v5692
          %v5699 = vmul.f32 %v5672, %v5692
          %v5700 = vmul.f32 %v5673, %v5692
          %v5701 = vmul.f32 %v5674, %v5692
          %v5710 = vrot.slane %v5695, 7
          %vm5711 = vcmask 1041409
          %v5712 = vsel %vm5711, %v5710, %v5694
          %v5713 = vrot.slane %v5696, 6
          %vm5714 = vcmask 1042434
          %v5715 = vsel %vm5714, %v5713, %v5712
          %v5716 = vrot.slane %v5697, 5
          %vm5717 = vcmask 1043459
          %v5718 = vsel %vm5717, %v5716, %v5715
          %v5719 = vrot.slane %v5698, 4
          %vm5720 = vcmask 1044484
          %v5721 = vsel %vm5720, %v5719, %v5718
          %v5722 = vrot.slane %v5699, 3
          %vm5723 = vcmask 1045509
          %v5724 = vsel %vm5723, %v5722, %v5721
          %v5725 = vrot.slane %v5700, 2
          %vm5726 = vcmask 1046534
          %v5727 = vsel %vm5726, %v5725, %v5724
          %v5728 = vrot.slane %v5701, 1
          %vm5729 = vcmask 1047559
          %v5730 = vsel %vm5729, %v5728, %v5727
          %v5732 = vsel %vm1041, %v5730, 0.0
          %5733 = vadd.xlane.f32.xlu0 %v5732
          %v5734 = vpop.xlane.xlu0 %5733
          %v5735 = vld [vmem:[#allocation4] sm:$0x1]
          %v5737 = vlaneseq
          %v5738 = vshrl.u32 %v5737, 7
          %v5739 = vsub.s32 0, %v5738
          %v5740 = vrot.slane %v5735, %v5739
          %v5742 = vadd.f32 %v5734, %v5740
          %v5743 = vxor.u32 %v5742, 2147483648
          %v5744 = vmul.f32 %v5743, 1.442695
          %v5745 = vpow.pop %v5744
          %v5746 = vadd.f32 %v5745, 1.0
          %v5747 = vrcp.pop %v5746
          %v5748 = vmul.f32 1.0, %v5747
          %v5749 = vlaneseq
          %v5750 = vand.u32 %v5749, 127
          %vm5751 = vcmp.eq.s32.totalorder %v5750, 0
          %vm5752 = vcmp.eq.s32.totalorder %v5750, 1
          %5754 = vset.pattern.permute.xlu0 0
          %5755 = vperm.xlu0 %5754, %v5742
          %v5756 = vpop.permute.xlu0 %5755
          %v5758 = vsel %vm5752, %v5756, 0.0
          %5760 = vset.pattern.permute.xlu0 0
          %5761 = vperm.xlu0 %5760, %v5748
          %v5762 = vpop.permute.xlu0 %5761
          %v5764 = vsel %vm5751, %v5762, %v5758
          %5765 = vst [vmem:[#allocation5] sm:$0xff] %v5764
        $region100: #{tpu_custom_call.1} parent=91 // pred_fallthru
          _
        // Predicated region
        $region101: #{tpu_custom_call.1} parent=91 // pred_check
          %p5766 = pneg %p510
        $region102: #{tpu_custom_call.1} parent=91 // pred_check_branch
          %5768 = sbr.rel (%p5766) target = $region104
        $region103: #{tpu_custom_call.1} parent=91 // pred_region
          %s5770 = ssub.s32 128, 128
          %5771 = vsyncadd [#allocation6], %s5770
          %s5772 = smul.addr %s36, 128
          %s5773 = scalar_lea.hbm %s18, %s5772
          %s5775 = sshll.u32 [#allocation5], 4
          %s5776 = int_to_ptr.vmem [resolvable:$true] %s5775
          %5778 = dma.vmem_to_hbm [thread:$0]  %s5776, 128, %s5773, [#allocation6]
        $region104: #{tpu_custom_call.1} parent=91 // pred_fallthru
          _
        // Predicated region
        $region105: #{tpu_custom_call.1} parent=91 // pred_check
          %p5779 = pneg %p510
        $region106: #{tpu_custom_call.1} parent=91 // pred_check_branch
          %5781 = sbr.rel (%p5779) target = $region108
        $region107: #{tpu_custom_call.1} parent=91 // pred_region
          %5782 = dma.done [#allocation6], 128
        $region108: #{tpu_custom_call.1} parent=91 // pred_fallthru
          _
      $region92: #{tpu_custom_call.1} parent=5 // pred_fallthru
        _
      %p5783 = scmp.le.s32.totalorder 2, %s27
      // Predicated region
      $region109: #{tpu_custom_call.1} parent=5 // pred_check
        %p5784 = pneg %p5783
      $region110: #{tpu_custom_call.1} parent=5 // pred_check_branch
        %5786 = sbr.rel (%p5784) target = $region112
      $region111: #{tpu_custom_call.1} parent=5 // pred_region
        %s5787 = ssub.s32 %s27, 2
      $region112: #{tpu_custom_call.1} parent=5 // pred_fallthru
        _
    $region6: #{tpu_custom_call.1} parent=1 // loop_footer
      %s31 = sadd.s32 1, %s27
    $region7: #{tpu_custom_call.1} parent=1 // loop_footer_branch
      %26 = sbr.rel target = $region3
    $region8: #{tpu_custom_call.1} parent=1 // loop_exit
      _
    %5788 = vsyncpa [#allocation6], 1
    %s5789 = scalar_lea.sflag [#allocation6], 1
    %5790 = vsyncpa %s5789, 1

</llo_original>
